<compile_context>
chip_gen: v6e
topology: v6e:2x2x1
jax: 0.10.0
libtpu: 0.0.40
codegen_flags: <defaults>
</compile_context>

<pallas_src>
import math
from functools import partial

import jax
import jax.numpy as jnp
from jax.experimental import pallas as pl
from jax.experimental.pallas import tpu as pltpu


# ----------------------------------------------------------------------------
# Banded (Toeplitz) weights: band[kh, wi*C+ci, wo*C+co] = w[kh, wi-wo+1, ci, co]
# for |wi-wo| <= 1, else 0.  Out-of-range taps are simply absent => exact SAME
# column zero-padding.
# ----------------------------------------------------------------------------
def _banded_weights(w_hwio, W):
    KH, KW, C, _ = w_hwio.shape
    wi = jnp.arange(W)[:, None]
    wo = jnp.arange(W)[None, :]
    tap = wi - wo + (KW // 2)                      # kw tap index, valid iff in [0, KW)
    valid = (tap >= 0) & (tap < KW)
    blocks = w_hwio[:, jnp.clip(tap, 0, KW - 1), :, :]          # (KH, W, W, C, C)
    blocks = blocks * valid[None, :, :, None, None].astype(w_hwio.dtype)
    band = jnp.transpose(blocks, (0, 1, 3, 2, 4)).reshape(KH, W * C, W * C)
    return band


# ----------------------------------------------------------------------------
# Fused ResBlock kernel: one grid step = one lane-dense (ROWS, W*C) output slab
# ----------------------------------------------------------------------------
def _make_resblock_kernel(*, H, WC, ROWS, Hcp, KH, res_scale):
    PAD = KH - 1          # zero rows above / below the image inside the scratch

    def kernel(x_ref, w1_ref, b1_ref, w2_ref, b2_ref, o_ref, xpad_ref):
        # x_ref   : (1, H, W*C)      bf16  flat image, resident per batch element
        # w*_ref  : (KH, W*C, W*C)   bf16  banded conv weights (resident)
        # b*_ref  : (1, W*C)         f32   bias tiled along W
        # o_ref   : (1, ROWS, W*C)   f32   lane-dense output slab
        # xpad_ref: (Hscr, W*C)      bf16  row-padded image (VMEM scratch)
        rb = pl.program_id(1)
        r0 = pl.multiple_of(rb * ROWS, ROWS)

        # Build the row-padded image once per batch element (rb axis is "arbitrary").
        @pl.when(rb == 0)
        def _():
            xpad_ref[...] = jnp.zeros(xpad_ref.shape, xpad_ref.dtype)
            xpad_ref[PAD:PAD + H, :] = x_ref[0]

        # One aligned dynamic load covering this block's conv1 halo + residual rows.
        xh = xpad_ref[pl.ds(r0, Hcp + PAD), :]                    # (Hcp+2, WC) bf16

        # ---- conv1 + bias + ReLU over Hcp halo rows (banded weights, K = N = W*C)
        a1 = jnp.dot(xh[0:Hcp, :], w1_ref[0],
                     preferred_element_type=jnp.float32)
        for kh in range(1, KH):
            a1 = a1 + jnp.dot(xh[kh:kh + Hcp, :], w1_ref[kh],
                              preferred_element_type=jnp.float32)
        y = jnp.maximum(a1 + b1_ref[...], 0.0)                    # (Hcp, WC) f32

        # conv2's SAME row padding: conv1 rows outside the image must read as 0.
        # Single fused mask (column padding is already encoded in the bands).
        ii = jax.lax.broadcasted_iota(jnp.int32, (Hcp, 1), 0)
        gi = r0 - 1 + ii                                          # global image row
        y = jnp.where((gi >= 0) & (gi < H), y, 0.0).astype(jnp.bfloat16)

        # ---- conv2 + bias over the ROWS output rows of this block
        a2 = jnp.dot(y[0:ROWS, :], w2_ref[0],
                     preferred_element_type=jnp.float32)
        for kh in range(1, KH):
            a2 = a2 + jnp.dot(y[kh:kh + ROWS, :], w2_ref[kh],
                              preferred_element_type=jnp.float32)
        out = a2 + b2_ref[...]
        if res_scale != 1.0:                                      # trace-time skip
            out = out * res_scale

        # Fused residual add from the already-resident bf16 image rows.
        out = out + xh[PAD:PAD + ROWS, :].astype(jnp.float32)
        o_ref[0] = out.astype(o_ref.dtype)

    return kernel


# ----------------------------------------------------------------------------
# Public wrapper: NCHW in / NCHW out, conv weights in HWIO (KH, KW, Cin, Cout)
# ----------------------------------------------------------------------------
def resblock_forward(x_nchw, w1, b1, w2, b2, *, res_scale=1.0, block_rows=16,
                     out_dtype=jnp.float32):
    N, C, H, W = x_nchw.shape
    KH, KW, cin, cout = w1.shape
    assert (KH, KW) == (3, 3) and cin == C and cout == C
    assert w2.shape == (KH, KW, C, C)

    ROWS = min(block_rows, H)
    assert H % ROWS == 0, "demo requires H divisible by block_rows"
    WC = W * C
    Hcp = ((ROWS + KH - 1 + 7) // 8) * 8        # conv1 halo rows, sublane-aligned
    PAD = KH - 1
    Hscr = H - ROWS + Hcp + PAD                 # row-padded scratch height

    # NCHW -> NHWC, cast fused into the transpose, bitcast-reshape to (N, H, W*C).
    # No padded HBM copy, no separate f32 residual array.
    x_flat = jnp.transpose(x_nchw, (0, 2, 3, 1)).astype(jnp.bfloat16).reshape(N, H, WC)

    w1b = _banded_weights(w1.astype(jnp.float32), W).astype(jnp.bfloat16)
    w2b = _banded_weights(w2.astype(jnp.float32), W).astype(jnp.bfloat16)
    b1t = jnp.tile(b1.astype(jnp.float32), W).reshape(1, WC)
    b2t = jnp.tile(b2.astype(jnp.float32), W).reshape(1, WC)

    kernel = _make_resblock_kernel(H=H, WC=WC, ROWS=ROWS, Hcp=Hcp, KH=KH,
                                   res_scale=float(res_scale))

    flops = 2 * 2 * KH * KW * C * C * H * W * N
    bytes_accessed = (N * H * WC * 2                       # bf16 image in
                      + N * H * WC * jnp.dtype(out_dtype).itemsize
                      + 2 * KH * WC * WC * 2               # banded weights
                      + 2 * WC * 4)                        # biases

    out_flat = pl.pallas_call(
        kernel,
        out_shape=jax.ShapeDtypeStruct((N, H, WC), out_dtype),
        grid=(N, H // ROWS),
        in_specs=[
            pl.BlockSpec((1, H, WC), lambda n, rb: (n, 0, 0)),      # flat bf16 image
            pl.BlockSpec((KH, WC, WC), lambda n, rb: (0, 0, 0)),    # banded w1 (resident)
            pl.BlockSpec((1, WC), lambda n, rb: (0, 0)),            # b1 tiled
            pl.BlockSpec((KH, WC, WC), lambda n, rb: (0, 0, 0)),    # banded w2 (resident)
            pl.BlockSpec((1, WC), lambda n, rb: (0, 0)),            # b2 tiled
        ],
        out_specs=pl.BlockSpec((1, ROWS, WC), lambda n, rb: (n, rb, 0)),
        scratch_shapes=[pltpu.VMEM((Hscr, WC), jnp.bfloat16)],
        compiler_params=pltpu.CompilerParams(
            # rb carries the padded-image scratch within a batch element -> arbitrary.
            dimension_semantics=("parallel", "arbitrary"),
            # ~6 MiB used (weights dominate, double-buffered); explicit limit with
            # headroom keeps v7x (32 MiB scoped / 64 MiB physical) honest.
            # Note: the weight / image specs could use pipeline_mode=pl.Buffered(1)
            # (their block index never changes) to halve that further.
            vmem_limit_bytes=32 * 1024 * 1024),
        cost_estimate=pl.CostEstimate(flops=flops, transcendentals=0,
                                      bytes_accessed=bytes_accessed),
    )(x_flat, w1b, b1t, w2b, b2t)

    return jnp.transpose(out_flat.reshape(N, H, W, C), (0, 3, 1, 2))


# ----------------------------------------------------------------------------
# Reference (plain JAX/XLA) with the same bf16-input / f32-accumulate recipe
# ----------------------------------------------------------------------------
def resblock_reference(x_nchw, w1, b1, w2, b2, res_scale):
    x = jnp.transpose(x_nchw, (0, 2, 3, 1)).astype(jnp.float32)
    dn = ("NHWC", "HWIO", "NHWC")
    y = jax.lax.conv_general_dilated(
        x.astype(jnp.bfloat16), w1.astype(jnp.bfloat16), (1, 1), "SAME",
        dimension_numbers=dn, preferred_element_type=jnp.float32) + b1
    y = jnp.maximum(y, 0.0)
    y = jax.lax.conv_general_dilated(
        y.astype(jnp.bfloat16), w2.astype(jnp.bfloat16), (1, 1), "SAME",
        dimension_numbers=dn, preferred_element_type=jnp.float32) + b2
    y = y * res_scale + x
    return jnp.transpose(y, (0, 3, 1, 2))


# ----------------------------------------------------------------------------
# Deterministic torch-Conv2d-like init (HWIO layout)
# ----------------------------------------------------------------------------
def _conv_init(key, kh, kw, cin, cout):
    k_w, k_b = jax.random.split(key)
    bound = 1.0 / math.sqrt(cin * kh * kw)
    w = jax.random.uniform(k_w, (kh, kw, cin, cout), jnp.float32, -bound, bound)
    b = jax.random.uniform(k_b, (cout,), jnp.float32, -bound, bound)
    return {"w": w, "b": b}


# ----------------------------------------------------------------------------
if __name__ == "__main__":
    key = jax.random.PRNGKey(0)
    kx, k1, k2 = jax.random.split(key, 3)

    # ResBlock(n_feats=32, kernel_size=3, res_scale=1.0) on a (2, 32, 16, 16) input.
    N, C, H, W = 2, 32, 16, 16
    RES_SCALE = 1.0

    x = jax.random.uniform(kx, (N, C, H, W), jnp.float32, -1.0, 1.0)   # NCHW
    p1 = _conv_init(k1, 3, 3, C, C)
    p2 = _conv_init(k2, 3, 3, C, C)

    fwd = jax.jit(partial(resblock_forward, res_scale=RES_SCALE, block_rows=16))
    out = jax.block_until_ready(fwd(x, p1["w"], p1["b"], p2["w"], p2["b"]))

    ref = resblock_reference(x, p1["w"], p1["b"], p2["w"], p2["b"], RES_SCALE)

    assert out.shape == (N, C, H, W), out.shape
    assert bool(jnp.all(jnp.isfinite(out)))
    assert bool(jnp.allclose(out, ref, rtol=2e-2, atol=2e-2)), \
        float(jnp.max(jnp.abs(out - ref)))
    print("KERNEL_OK")
</pallas_src>

<mosaic_0001>
module attributes {stable_mosaic.version = 11 : i64} {
  func.func @kernel(%arg0: i32, %arg1: i32, %arg2: memref<1x16x512xbf16, #tpu.memory_space<vmem>>, %arg3: memref<3x512x512xbf16, #tpu.memory_space<vmem>>, %arg4: memref<1x512xf32, #tpu.memory_space<vmem>>, %arg5: memref<3x512x512xbf16, #tpu.memory_space<vmem>>, %arg6: memref<1x512xf32, #tpu.memory_space<vmem>>, %arg7: memref<1x16x512xf32, #tpu.memory_space<vmem>>, %arg8: memref<26x512xbf16, #tpu.memory_space<vmem>>) attributes {dimension_semantics = [#tpu.dimension_semantics<parallel>, #tpu.dimension_semantics<arbitrary>], iteration_bounds = array<i64: 2, 1>, scalar_prefetch = 0 : i64, scratch_operands = 1 : i64, tpu.core_type = #tpu.core_type<tc>, window_params = [{transform_indices = @transform_0, window_bounds = array<i64: 1, 16, 512>}, {pipeline_mode = #tpu.pipeline_mode<synchronous>, transform_indices = @transform_1, window_bounds = array<i64: 3, 512, 512>}, {pipeline_mode = #tpu.pipeline_mode<synchronous>, transform_indices = @transform_2, window_bounds = array<i64: 1, 512>}, {pipeline_mode = #tpu.pipeline_mode<synchronous>, transform_indices = @transform_3, window_bounds = array<i64: 3, 512, 512>}, {pipeline_mode = #tpu.pipeline_mode<synchronous>, transform_indices = @transform_4, window_bounds = array<i64: 1, 512>}, {transform_indices = @transform_5, window_bounds = array<i64: 1, 16, 512>}]} {
    %c16_i32 = arith.constant 16 : i32
    %0 = arith.muli %arg1, %c16_i32 : i32
    %1 = tpu.assume_multiple %0, 16 : i32
    %c0_i32 = arith.constant 0 : i32
    %2 = arith.cmpi eq, %arg1, %c0_i32 : i32
    %3 = arith.extui %2 : i1 to i32
    %c0_i32_0 = arith.constant 0 : i32
    %4 = arith.cmpi ne, %3, %c0_i32_0 : i32
    scf.if %4 {
      %cst_33 = arith.constant 0.000000e+00 : bf16
      %63 = vector.broadcast %cst_33 : bf16 to vector<26x512xbf16>
      %c0_34 = arith.constant 0 : index
      %c0_35 = arith.constant 0 : index
      %64 = vector.load %arg8[%c0_34, %c0_35] : memref<26x512xbf16, #tpu.memory_space<vmem>>, vector<26x512xbf16>
      tpu.vector_store %arg8[%c0_34, %c0_35], %63 {strides = array<i32>} : memref<26x512xbf16, #tpu.memory_space<vmem>>, vector<26x512xbf16>,
      %c0_36 = arith.constant 0 : index
      %c0_37 = arith.constant 0 : index
      %c0_38 = arith.constant 0 : index
      %65 = vector.load %arg2[%c0_36, %c0_37, %c0_38] : memref<1x16x512xbf16, #tpu.memory_space<vmem>>, vector<1x16x512xbf16>
      %66 = vector.shape_cast %65 : vector<1x16x512xbf16> to vector<16x512xbf16>
      %c2_39 = arith.constant 2 : index
      %c0_40 = arith.constant 0 : index
      %67 = vector.load %arg8[%c2_39, %c0_40] : memref<26x512xbf16, #tpu.memory_space<vmem>>, vector<16x512xbf16>
      tpu.vector_store %arg8[%c2_39, %c0_40], %66 {strides = array<i32>} : memref<26x512xbf16, #tpu.memory_space<vmem>>, vector<16x512xbf16>,
    } else {
    }
    %5 = arith.index_cast %1 : i32 to index
    %c0 = arith.constant 0 : index
    %6 = vector.load %arg8[%5, %c0] : memref<26x512xbf16, #tpu.memory_space<vmem>>, vector<26x512xbf16>
    %7 = vector.extract_strided_slice %6 {offsets = [0, 0], sizes = [24, 512], strides = [1, 1]} : vector<26x512xbf16> to vector<24x512xbf16>
    %c0_1 = arith.constant 0 : index
    %c0_2 = arith.constant 0 : index
    %c0_3 = arith.constant 0 : index
    %8 = vector.load %arg3[%c0_1, %c0_2, %c0_3] : memref<3x512x512xbf16, #tpu.memory_space<vmem>>, vector<1x512x512xbf16>
    %9 = vector.shape_cast %8 : vector<1x512x512xbf16> to vector<512x512xbf16>
    %cst = arith.constant dense<0.000000e+00> : vector<24x512xf32>
    %10 = tpu.matmul %7, %9, %cst {dimension_numbers = #tpu.dot_dimension_numbers<[1], [0], [0], [1], [0, 0, 1, 1], [], []>} : vector<24x512xbf16>, vector<512x512xbf16>, vector<24x512xf32> -> vector<24x512xf32>
    %11 = vector.extract_strided_slice %6 {offsets = [1, 0], sizes = [24, 512], strides = [1, 1]} : vector<26x512xbf16> to vector<24x512xbf16>
    %c1 = arith.constant 1 : index
    %c0_4 = arith.constant 0 : index
    %c0_5 = arith.constant 0 : index
    %12 = vector.load %arg3[%c1, %c0_4, %c0_5] : memref<3x512x512xbf16, #tpu.memory_space<vmem>>, vector<1x512x512xbf16>
    %13 = vector.shape_cast %12 : vector<1x512x512xbf16> to vector<512x512xbf16>
    %cst_6 = arith.constant dense<0.000000e+00> : vector<24x512xf32>
    %14 = tpu.matmul %11, %13, %cst_6 {dimension_numbers = #tpu.dot_dimension_numbers<[1], [0], [0], [1], [0, 0, 1, 1], [], []>} : vector<24x512xbf16>, vector<512x512xbf16>, vector<24x512xf32> -> vector<24x512xf32>
    %15 = arith.addf %10, %14 : vector<24x512xf32>
    %16 = vector.extract_strided_slice %6 {offsets = [2, 0], sizes = [24, 512], strides = [1, 1]} : vector<26x512xbf16> to vector<24x512xbf16>
    %c2 = arith.constant 2 : index
    %c0_7 = arith.constant 0 : index
    %c0_8 = arith.constant 0 : index
    %17 = vector.load %arg3[%c2, %c0_7, %c0_8] : memref<3x512x512xbf16, #tpu.memory_space<vmem>>, vector<1x512x512xbf16>
    %18 = vector.shape_cast %17 : vector<1x512x512xbf16> to vector<512x512xbf16>
    %cst_9 = arith.constant dense<0.000000e+00> : vector<24x512xf32>
    %19 = tpu.matmul %16, %18, %cst_9 {dimension_numbers = #tpu.dot_dimension_numbers<[1], [0], [0], [1], [0, 0, 1, 1], [], []>} : vector<24x512xbf16>, vector<512x512xbf16>, vector<24x512xf32> -> vector<24x512xf32>
    %20 = arith.addf %15, %19 : vector<24x512xf32>
    %c0_10 = arith.constant 0 : index
    %c0_11 = arith.constant 0 : index
    %21 = vector.load %arg4[%c0_10, %c0_11] : memref<1x512xf32, #tpu.memory_space<vmem>>, vector<1x512xf32>
    %22 = vector.broadcast %21 : vector<1x512xf32> to vector<24x512xf32>
    %23 = arith.addf %20, %22 : vector<24x512xf32>
    %cst_12 = arith.constant 0.000000e+00 : f32
    %24 = vector.broadcast %cst_12 : f32 to vector<24x512xf32>
    %25 = arith.maximumf %23, %24 : vector<24x512xf32>
    %26 = tpu.iota {dimensions = array<i32: 0>} : vector<24x1xi32>
    %c1_i32 = arith.constant 1 : i32
    %27 = arith.subi %1, %c1_i32 : i32
    %28 = vector.broadcast %27 : i32 to vector<24x1xi32>
    %29 = arith.addi %28, %26 : vector<24x1xi32>
    %c0_i32_13 = arith.constant 0 : i32
    %30 = vector.broadcast %c0_i32_13 : i32 to vector<24x1xi32>
    %31 = arith.cmpi sge, %29, %30 : vector<24x1xi32>
    %c16_i32_14 = arith.constant 16 : i32
    %32 = vector.broadcast %c16_i32_14 : i32 to vector<24x1xi32>
    %33 = arith.cmpi slt, %29, %32 : vector<24x1xi32>
    %34 = arith.andi %31, %33 : vector<24x1xi1>
    %cst_15 = arith.constant 0.000000e+00 : f32
    %35 = vector.shape_cast %34 : vector<24x1xi1> to vector<24x1xi1>
    %36 = vector.broadcast %35 : vector<24x1xi1> to vector<24x512xi1>
    %37 = vector.broadcast %cst_15 : f32 to vector<24x512xf32>
    %38 = arith.select %36, %25, %37 : vector<24x512xi1>, vector<24x512xf32>
    %39 = arith.truncf %38 : vector<24x512xf32> to vector<24x512xbf16>
    %40 = vector.extract_strided_slice %39 {offsets = [0, 0], sizes = [16, 512], strides = [1, 1]} : vector<24x512xbf16> to vector<16x512xbf16>
    %c0_16 = arith.constant 0 : index
    %c0_17 = arith.constant 0 : index
    %c0_18 = arith.constant 0 : index
    %41 = vector.load %arg5[%c0_16, %c0_17, %c0_18] : memref<3x512x512xbf16, #tpu.memory_space<vmem>>, vector<1x512x512xbf16>
    %42 = vector.shape_cast %41 : vector<1x512x512xbf16> to vector<512x512xbf16>
    %cst_19 = arith.constant dense<0.000000e+00> : vector<16x512xf32>
    %43 = tpu.matmul %40, %42, %cst_19 {dimension_numbers = #tpu.dot_dimension_numbers<[1], [0], [0], [1], [0, 0, 1, 1], [], []>} : vector<16x512xbf16>, vector<512x512xbf16>, vector<16x512xf32> -> vector<16x512xf32>
    %44 = vector.extract_strided_slice %39 {offsets = [1, 0], sizes = [16, 512], strides = [1, 1]} : vector<24x512xbf16> to vector<16x512xbf16>
    %c1_20 = arith.constant 1 : index
    %c0_21 = arith.constant 0 : index
    %c0_22 = arith.constant 0 : index
    %45 = vector.load %arg5[%c1_20, %c0_21, %c0_22] : memref<3x512x512xbf16, #tpu.memory_space<vmem>>, vector<1x512x512xbf16>
    %46 = vector.shape_cast %45 : vector<1x512x512xbf16> to vector<512x512xbf16>
    %cst_23 = arith.constant dense<0.000000e+00> : vector<16x512xf32>
    %47 = tpu.matmul %44, %46, %cst_23 {dimension_numbers = #tpu.dot_dimension_numbers<[1], [0], [0], [1], [0, 0, 1, 1], [], []>} : vector<16x512xbf16>, vector<512x512xbf16>, vector<16x512xf32> -> vector<16x512xf32>
    %48 = arith.addf %43, %47 : vector<16x512xf32>
    %49 = vector.extract_strided_slice %39 {offsets = [2, 0], sizes = [16, 512], strides = [1, 1]} : vector<24x512xbf16> to vector<16x512xbf16>
    %c2_24 = arith.constant 2 : index
    %c0_25 = arith.constant 0 : index
    %c0_26 = arith.constant 0 : index
    %50 = vector.load %arg5[%c2_24, %c0_25, %c0_26] : memref<3x512x512xbf16, #tpu.memory_space<vmem>>, vector<1x512x512xbf16>
    %51 = vector.shape_cast %50 : vector<1x512x512xbf16> to vector<512x512xbf16>
    %cst_27 = arith.constant dense<0.000000e+00> : vector<16x512xf32>
    %52 = tpu.matmul %49, %51, %cst_27 {dimension_numbers = #tpu.dot_dimension_numbers<[1], [0], [0], [1], [0, 0, 1, 1], [], []>} : vector<16x512xbf16>, vector<512x512xbf16>, vector<16x512xf32> -> vector<16x512xf32>
    %53 = arith.addf %48, %52 : vector<16x512xf32>
    %c0_28 = arith.constant 0 : index
    %c0_29 = arith.constant 0 : index
    %54 = vector.load %arg6[%c0_28, %c0_29] : memref<1x512xf32, #tpu.memory_space<vmem>>, vector<1x512xf32>
    %55 = vector.broadcast %54 : vector<1x512xf32> to vector<16x512xf32>
    %56 = arith.addf %53, %55 : vector<16x512xf32>
    %57 = vector.extract_strided_slice %6 {offsets = [2, 0], sizes = [16, 512], strides = [1, 1]} : vector<26x512xbf16> to vector<16x512xbf16>
    %58 = arith.extf %57 : vector<16x512xbf16> to vector<16x512xf32>
    %59 = arith.addf %56, %58 : vector<16x512xf32>
    %c0_30 = arith.constant 0 : index
    %c0_31 = arith.constant 0 : index
    %c0_32 = arith.constant 0 : index
    %60 = vector.load %arg7[%c0_30, %c0_31, %c0_32] : memref<1x16x512xf32, #tpu.memory_space<vmem>>, vector<1x16x512xf32>
    %61 = vector.shape_cast %60 : vector<1x16x512xf32> to vector<16x512xf32>
    %62 = vector.shape_cast %59 : vector<16x512xf32> to vector<1x16x512xf32>
    tpu.vector_store %arg7[%c0_30, %c0_31, %c0_32], %62 {strides = array<i32>} : memref<1x16x512xf32, #tpu.memory_space<vmem>>, vector<1x16x512xf32>,
    return
  }
  func.func @transform_0(%arg0: i32, %arg1: i32) -> (i32, i32, i32) {
    %c0_i32 = arith.constant 0 : i32
    %c0_i32_0 = arith.constant 0 : i32
    %c0_i32_1 = arith.constant 0 : i32
    return %arg0, %c0_i32, %c0_i32_0 : i32, i32, i32
  }
  func.func @transform_1(%arg0: i32, %arg1: i32) -> (i32, i32, i32) {
    %c0_i32 = arith.constant 0 : i32
    %c0_i32_0 = arith.constant 0 : i32
    %c0_i32_1 = arith.constant 0 : i32
    %c0_i32_2 = arith.constant 0 : i32
    return %c0_i32, %c0_i32_0, %c0_i32_1 : i32, i32, i32
  }
  func.func @transform_2(%arg0: i32, %arg1: i32) -> (i32, i32) {
    %c0_i32 = arith.constant 0 : i32
    %c0_i32_0 = arith.constant 0 : i32
    %c0_i32_1 = arith.constant 0 : i32
    return %c0_i32, %c0_i32_0 : i32, i32
  }
  func.func @transform_3(%arg0: i32, %arg1: i32) -> (i32, i32, i32) {
    %c0_i32 = arith.constant 0 : i32
    %c0_i32_0 = arith.constant 0 : i32
    %c0_i32_1 = arith.constant 0 : i32
    %c0_i32_2 = arith.constant 0 : i32
    return %c0_i32, %c0_i32_0, %c0_i32_1 : i32, i32, i32
  }
  func.func @transform_4(%arg0: i32, %arg1: i32) -> (i32, i32) {
    %c0_i32 = arith.constant 0 : i32
    %c0_i32_0 = arith.constant 0 : i32
    %c0_i32_1 = arith.constant 0 : i32
    return %c0_i32, %c0_i32_0 : i32, i32
  }
  func.func @transform_5(%arg0: i32, %arg1: i32) -> (i32, i32, i32) {
    %c0_i32 = arith.constant 0 : i32
    %c0_i32_0 = arith.constant 0 : i32
    return %arg0, %arg1, %c0_i32 : i32, i32, i32
  }
}

</mosaic_0001>

<llo_original>
// kernel: tile.13
$region0: #{tile.13}
  #allocation0 [shape = 's32[1]{0}', space=sflag, size = 0x4, scoped, tag = 'scoped memory for tile.13']
  %s0 = inlined_call_operand.vmem [shape: f32[32], index: 0, kind: input, shape index: {}]
  %s1 = inlined_call_operand.vmem [shape: f32[16,32], index: 1, kind: output, shape index: {}]
  // Predicated region
  $region2: #{tile.13} parent=0 // pred_check
    _
  $region3: #{tile.13} parent=0 // pred_check_branch
    %3 = sbr.rel (0) target = $region5
  $region4: #{tile.13} parent=0 // pred_region
    _
  $region5: #{tile.13} parent=0 // pred_fallthru
    _
  %v4 = vld [vmem:[%s0] ss:$0 sm:$0xff]
  %5 = vst [vmem:[%s1] sm:$0xff] %v4
  %s6 = scalar_lea.vmem %s1, 8
  %7 = vst [vmem:[%s6] sm:$0xff] %v4

// kernel: tile.14
$region0: #{tile.14}
  %s0 = inlined_call_operand.vmem [shape: f32[16,32], index: 0, kind: input, shape index: {}]
  %s1 = inlined_call_operand.vmem [shape: f32[1,512], index: 1, kind: output, shape index: {}]
  $region1: #{tile.14} parent=0
    #allocation0 [shape = 'u8[16384]{0}', space=vmem, size = 0x4000, scoped, tag = 'scoped mem for output reshape']
    %v2 = vld [vmem:[%s0] ss:$4 sm:$0xf]
    %vm3 = vcmask 261120
    %4 = vst.msk [vmem:[#allocation0] ss:$8 sm:$0xf] %vm3, %v2
    %s5 = scalar_lea.vmem %s0, 3
    %v6 = vld [vmem:[%s5] ss:$4 sm:$0xf]
    %7 = vrot.lane.b32.xlu0 %v6, 96
    %v8 = vpop.permute.xlu0 %7
    %vm9 = vcmask 1048320
    %10 = vst.msk [vmem:[#allocation0] ss:$8 sm:$0xf] %vm9, %v8
    %s11 = scalar_lea.vmem %s0, 2
    %v12 = vld [vmem:[%s11] ss:$4 sm:$0xf]
    %13 = vrot.lane.b32.xlu0 %v12, 64
    %v14 = vpop.permute.xlu0 %13
    %vm15 = vcmask 785920
    %16 = vst.msk [vmem:[#allocation0] ss:$8 sm:$0xf] %vm15, %v14
    %s17 = scalar_lea.vmem %s0, 1
    %v18 = vld [vmem:[%s17] ss:$4 sm:$0xf]
    %19 = vrot.lane.b32.xlu0 %v18, 32
    %v20 = vpop.permute.xlu0 %19
    %vm21 = vcmask 523520
    %22 = vst.msk [vmem:[#allocation0] ss:$8 sm:$0xf] %vm21, %v20
    %s24 = sshll.u32 1, 1
    %s25 = ssub.s32 %s24, 1
    %v27 = vld [vmem:[#allocation0] sm:%s25]
    %s28 = sshll.u32 1, 1
    %s29 = ssub.s32 %s28, 1
    %30 = vst [vmem:[%s1] sm:%s29] %v27
    %s31 = scalar_lea.vmem [#allocation0], 8
    %v32 = vld [vmem:[%s31] sm:%s25]
    %s33 = sshll.u32 1, 1
    %s34 = ssub.s32 %s33, 1
    %s35 = scalar_lea.vmem %s1, 1
    %36 = vst [vmem:[%s35] sm:%s34] %v32
    %s37 = scalar_lea.vmem [#allocation0], 16
    %v38 = vld [vmem:[%s37] sm:%s25]
    %s39 = sshll.u32 1, 1
    %s40 = ssub.s32 %s39, 1
    %s41 = smul.addr 1, 2
    %s42 = scalar_lea.vmem %s1, %s41
    %43 = vst [vmem:[%s42] sm:%s40] %v38
    %s44 = scalar_lea.vmem [#allocation0], 24
    %v45 = vld [vmem:[%s44] sm:%s25]
    %s46 = sshll.u32 1, 1
    %s47 = ssub.s32 %s46, 1
    %s48 = smul.addr 1, 3
    %s49 = scalar_lea.vmem %s1, %s48
    %50 = vst [vmem:[%s49] sm:%s47] %v45

// kernel: resblock_forward.1
$region0: #{resblock_forward.1}
  #allocation0 [shape = 'u32[]', space=smem, size = 0x4, offset = 0x4, fixed_abs, tag = 'smem constant byte address 0x4 - core index']
  #allocation1 [shape = 'u32[144,128]{1,0:T(1,128)}', space=vmem, size = 0x12000, scoped, tag = 'internal scratch']
  #allocation2 [shape = 'bf16[26,512]{1,0:T(8,128)(2,1)}', space=vmem, size = 0x8000, scoped, tag = 'scratch operand']
  %s0 = inlined_call_operand.vmem [shape: bf16[2,16,512], index: 0, kind: input, shape index: {}]
  %s1 = inlined_call_operand.vmem [shape: bf16[3,512,512], index: 1, kind: input, shape index: {}]
  %s2 = inlined_call_operand.vmem [shape: f32[1,512], index: 2, kind: input, shape index: {}]
  %s3 = inlined_call_operand.vmem [shape: bf16[3,512,512], index: 3, kind: input, shape index: {}]
  %s4 = inlined_call_operand.vmem [shape: f32[1,512], index: 4, kind: input, shape index: {}]
  %s5 = inlined_call_operand.vmem [shape: f32[2,16,512], index: 5, kind: output, shape index: {}]
  %s6 = sld [smem:[#allocation0]]
  $region57: #{resblock_forward.1} parent=0
    _
  %s8 = ssub.s32 1, %s6
  %s9 = scalar_select 0, %s8, %s6
  loop: start=0, step=1, limit=4
  $region2: #{resblock_forward.1} parent=0 // loop_pre_header
    _
  $region3: #{resblock_forward.1} parent=0 // loop_header
    %s11 = sphi 0, %s15
    %p12 = scmp.ge.s32.totalorder %s11, 4
    %s18 = sphi 0, %s30
    %s19 = sphi 0, %s26
    %s20 = sphi 0, %s18
    %s21 = sphi 0, %s19
    %s22 = sphi 0, %s20
    %s23 = sphi 0, %s21
    %s33 = sphi 0, %s35
    %s36 = sphi 0, %s33
    %s37 = sphi 0, %s36
    %s53 = sphi 0, %s37
    %s57 = sphi 0, %s57
    %s59 = sphi 0, %s57
    %s60 = sphi 0, %s59
    %s74 = sphi 0, %s60
    %s78 = sphi 0, %s78
    %s80 = sphi 0, %s78
    %s81 = sphi 0, %s80
    %s95 = sphi 0, %s81
    %s99 = sphi 0, %s99
    %s101 = sphi 0, %s99
    %s102 = sphi 0, %s101
    %s116 = sphi 0, %s102
    %s120 = sphi 0, %s120
    %s122 = sphi 0, %s120
    %s123 = sphi 0, %s122
    %s137 = sphi 0, %s123
    %s145 = sphi 0, %s147
    %s148 = sphi 0, %s145
    %s149 = sphi 0, %s148
    %s165 = sphi 0, %s149
  $region4: #{resblock_forward.1} parent=0 // loop_header_branch
    %14 = sbr.rel (%p12) target = $region8
  $region5: #{resblock_forward.1} parent=0 // loop_body
    %s16 = ssub.s32 %s11, 1
    %s17 = ssub.s32 %s11, 2
    %s24 = sadd.s32 1, %s19
    %p25 = scmp.ge.s32.totalorder %s24, 1
    %s26 = scalar_select %p25, 0, %s24
    %s27 = sadd.s32 1, %s18
    %s28 = scalar_select %p25, %s27, %s18
    %p29 = scmp.ge.s32.totalorder %s28, 2
    %s30 = scalar_select %p29, 0, %s28
    %s31 = ssub.s32 %s18, %s30
    %p32 = scmp.eq.s32.totalorder %s31, 0
    %s34 = sadd.s32 %s33, 1
    %s35 = scalar_select %p32, %s33, %s34
    %p38 = pneg %p32
    %p39 = scmp.eq.s32.totalorder %s11, 1
    %p40 = por %p38, %p39
    %p41 = scmp.ne.s32.totalorder %s33, %s36
    %p42 = scmp.eq.s32.totalorder %s11, 0
    %p43 = por %p41, %p42
    %p44 = scmp.ne.s32.totalorder %s33, %s36
    %p45 = scmp.eq.s32.totalorder %s16, 1
    %p46 = por %p44, %p45
    %p47 = scmp.ne.s32.totalorder %s36, %s37
    %p48 = scmp.eq.s32.totalorder %s16, 0
    %p49 = por %p47, %p48
    %p50 = scmp.ne.s32.totalorder %s36, %s37
    %p51 = scmp.eq.s32.totalorder %s17, 1
    %p52 = por %p50, %p51
    %p54 = scmp.ne.s32.totalorder %s37, %s53
    %p55 = scmp.eq.s32.totalorder %s17, 0
    %p56 = por %p54, %p55
    %s58 = sadd.s32 %s57, 1
    %p61 = scmp.eq.s32.totalorder %s11, 1
    %p62 = scmp.ne.s32.totalorder %s57, %s59
    %p63 = scmp.eq.s32.totalorder %s11, 0
    %p64 = por %p62, %p63
    %p65 = scmp.ne.s32.totalorder %s57, %s59
    %p66 = scmp.eq.s32.totalorder %s16, 1
    %p67 = por %p65, %p66
    %p68 = scmp.ne.s32.totalorder %s59, %s60
    %p69 = scmp.eq.s32.totalorder %s16, 0
    %p70 = por %p68, %p69
    %p71 = scmp.ne.s32.totalorder %s59, %s60
    %p72 = scmp.eq.s32.totalorder %s17, 1
    %p73 = por %p71, %p72
    %p75 = scmp.ne.s32.totalorder %s60, %s74
    %p76 = scmp.eq.s32.totalorder %s17, 0
    %p77 = por %p75, %p76
    %s79 = sadd.s32 %s78, 1
    %p82 = scmp.eq.s32.totalorder %s11, 1
    %p83 = scmp.ne.s32.totalorder %s78, %s80
    %p84 = scmp.eq.s32.totalorder %s11, 0
    %p85 = por %p83, %p84
    %p86 = scmp.ne.s32.totalorder %s78, %s80
    %p87 = scmp.eq.s32.totalorder %s16, 1
    %p88 = por %p86, %p87
    %p89 = scmp.ne.s32.totalorder %s80, %s81
    %p90 = scmp.eq.s32.totalorder %s16, 0
    %p91 = por %p89, %p90
    %p92 = scmp.ne.s32.totalorder %s80, %s81
    %p93 = scmp.eq.s32.totalorder %s17, 1
    %p94 = por %p92, %p93
    %p96 = scmp.ne.s32.totalorder %s81, %s95
    %p97 = scmp.eq.s32.totalorder %s17, 0
    %p98 = por %p96, %p97
    %s100 = sadd.s32 %s99, 1
    %p103 = scmp.eq.s32.totalorder %s11, 1
    %p104 = scmp.ne.s32.totalorder %s99, %s101
    %p105 = scmp.eq.s32.totalorder %s11, 0
    %p106 = por %p104, %p105
    %p107 = scmp.ne.s32.totalorder %s99, %s101
    %p108 = scmp.eq.s32.totalorder %s16, 1
    %p109 = por %p107, %p108
    %p110 = scmp.ne.s32.totalorder %s101, %s102
    %p111 = scmp.eq.s32.totalorder %s16, 0
    %p112 = por %p110, %p111
    %p113 = scmp.ne.s32.totalorder %s101, %s102
    %p114 = scmp.eq.s32.totalorder %s17, 1
    %p115 = por %p113, %p114
    %p117 = scmp.ne.s32.totalorder %s102, %s116
    %p118 = scmp.eq.s32.totalorder %s17, 0
    %p119 = por %p117, %p118
    %s121 = sadd.s32 %s120, 1
    %p124 = scmp.eq.s32.totalorder %s11, 1
    %p125 = scmp.ne.s32.totalorder %s120, %s122
    %p126 = scmp.eq.s32.totalorder %s11, 0
    %p127 = por %p125, %p126
    %p128 = scmp.ne.s32.totalorder %s120, %s122
    %p129 = scmp.eq.s32.totalorder %s16, 1
    %p130 = por %p128, %p129
    %p131 = scmp.ne.s32.totalorder %s122, %s123
    %p132 = scmp.eq.s32.totalorder %s16, 0
    %p133 = por %p131, %p132
    %p134 = scmp.ne.s32.totalorder %s122, %s123
    %p135 = scmp.eq.s32.totalorder %s17, 1
    %p136 = por %p134, %p135
    %p138 = scmp.ne.s32.totalorder %s123, %s137
    %p139 = scmp.eq.s32.totalorder %s17, 0
    %p140 = por %p138, %p139
    %s141 = ssub.s32 %s18, %s30
    %s142 = ssub.s32 %s19, %s26
    %s143 = sor.u32 %s141, %s142
    %p144 = scmp.eq.s32.totalorder %s143, 0
    %s146 = sadd.s32 %s145, 1
    %s147 = scalar_select %p144, %s145, %s146
    %p150 = pneg %p144
    %p151 = scmp.eq.s32.totalorder %s11, 1
    %p152 = por %p150, %p151
    %p153 = scmp.ne.s32.totalorder %s145, %s148
    %p154 = scmp.eq.s32.totalorder %s11, 0
    %p155 = por %p153, %p154
    %p156 = scmp.ne.s32.totalorder %s145, %s148
    %p157 = scmp.eq.s32.totalorder %s16, 1
    %p158 = por %p156, %p157
    %p159 = scmp.ne.s32.totalorder %s148, %s149
    %p160 = scmp.eq.s32.totalorder %s16, 0
    %p161 = por %p159, %p160
    %p162 = scmp.ne.s32.totalorder %s148, %s149
    %p163 = scmp.eq.s32.totalorder %s17, 1
    %p164 = por %p162, %p163
    %p166 = scmp.ne.s32.totalorder %s149, %s165
    %p167 = scmp.eq.s32.totalorder %s17, 0
    %p168 = por %p166, %p167
    %p169 = scmp.le.s32.totalorder 1, %s11
    %p170 = scmp.lt.s32.totalorder %s11, 3
    %p171 = pnand %p169, %p170
    %p172 = pneg %p171
    // Predicated region
    $region9: #{resblock_forward.1} parent=5 // pred_check
      _
    $region10: #{resblock_forward.1} parent=5 // pred_check_branch
      %174 = sbr.rel (%p171) target = $region12
    $region11: #{resblock_forward.1} parent=5 // pred_region
      %s175 = ssub.s32 %s11, 1
      // Predicated region
      $region13: #{resblock_forward.1} parent=11 // pred_check
        %p176 = pneg %p70
      $region14: #{resblock_forward.1} parent=11 // pred_check_branch
        %178 = sbr.rel (%p176) target = $region16
      $region15: #{resblock_forward.1} parent=11 // pred_region
        _
      $region16: #{resblock_forward.1} parent=11 // pred_fallthru
        _
      // Predicated region
      $region17: #{resblock_forward.1} parent=11 // pred_check
        %p179 = pneg %p91
      $region18: #{resblock_forward.1} parent=11 // pred_check_branch
        %181 = sbr.rel (%p179) target = $region20
      $region19: #{resblock_forward.1} parent=11 // pred_region
        _
      $region20: #{resblock_forward.1} parent=11 // pred_fallthru
        _
      // Predicated region
      $region21: #{resblock_forward.1} parent=11 // pred_check
        %p182 = pneg %p112
      $region22: #{resblock_forward.1} parent=11 // pred_check_branch
        %184 = sbr.rel (%p182) target = $region24
      $region23: #{resblock_forward.1} parent=11 // pred_region
        _
      $region24: #{resblock_forward.1} parent=11 // pred_fallthru
        _
      // Predicated region
      $region25: #{resblock_forward.1} parent=11 // pred_check
        %p185 = pneg %p133
      $region26: #{resblock_forward.1} parent=11 // pred_check_branch
        %187 = sbr.rel (%p185) target = $region28
      $region27: #{resblock_forward.1} parent=11 // pred_region
        _
      $region28: #{resblock_forward.1} parent=11 // pred_fallthru
        _
    $region12: #{resblock_forward.1} parent=5 // pred_fallthru
      _
    %p188 = scmp.lt.s32.totalorder %s11, 2
    // Predicated region
    $region29: #{resblock_forward.1} parent=5 // pred_check
      %p189 = pneg %p188
    $region30: #{resblock_forward.1} parent=5 // pred_check_branch
      %191 = sbr.rel (%p189) target = $region32
    $region31: #{resblock_forward.1} parent=5 // pred_region
      // Predicated region
      $region33: #{resblock_forward.1} parent=31 // pred_check
        %p192 = pneg %p43
      $region34: #{resblock_forward.1} parent=31 // pred_check_branch
        %194 = sbr.rel (%p192) target = $region36
      $region35: #{resblock_forward.1} parent=31 // pred_region
        %p195 = scmp.lt.s32.totalorder %s18, 1
        %s196 = scalar_select %p195, %s18, 1
        %s197 = smul.addr %s196, 8
        %s198 = smul.addr %s197, 4
        %s199 = scalar_lea.vmem %s0, %s198
      $region36: #{resblock_forward.1} parent=31 // pred_fallthru
        _
    $region32: #{resblock_forward.1} parent=5 // pred_fallthru
      _
    %p200 = scmp.le.s32.totalorder 1, %s11
    %p201 = scmp.lt.s32.totalorder %s11, 3
    %p202 = pnand %p200, %p201
    %p203 = pneg %p202
    // Predicated region
    $region37: #{resblock_forward.1} parent=5 // pred_check
      _
    $region38: #{resblock_forward.1} parent=5 // pred_check_branch
      %205 = sbr.rel (%p202) target = $region40
    $region39: #{resblock_forward.1} parent=5 // pred_region
      %s206 = ssub.s32 %s11, 1
      %p207 = scmp.lt.s32.totalorder %s20, 1
      %s208 = scalar_select %p207, %s20, 1
      %s209 = smul.addr %s208, 8
      %s210 = smul.addr %s209, 4
      %s211 = scalar_lea.vmem %s0, %s210
      %p212 = pneg %p49
      %p213 = pneg %p46
      %p214 = pneg %p70
      %p215 = pneg %p67
      %p216 = pneg %p91
      %p217 = pneg %p88
      %p218 = pneg %p112
      %p219 = pneg %p109
      %p220 = pneg %p133
      %p221 = pneg %p130
      %p222 = pneg %p161
      %p223 = pneg %p158
      %s224 = smul.u32 2, %s21
      %p225 = scmp.lt.s32.totalorder %s20, 1
      %s226 = scalar_select %p225, %s20, 1
      %p227 = scmp.lt.s32.totalorder %s224, 1
      %s228 = scalar_select %p227, %s224, 1
      %s229 = smul.addr %s228, 4
      %s230 = smul.addr %s226, 8
      %s231 = sadd.s32 %s229, %s230
      %s232 = smul.addr %s231, 8
      %s233 = scalar_lea.vmem %s5, %s232
      %p234 = scmp.lt.s32.totalorder %s20, 1
      %s235 = scalar_select %p234, %s20, 1
      %s236 = smul.addr %s235, 8
      %s237 = smul.addr %s236, 4
      %s238 = scalar_lea.vmem %s0, %s237
      %s239 = smul.u32 2, %s21
      %p240 = scmp.lt.s32.totalorder %s20, 1
      %s241 = scalar_select %p240, %s20, 1
      %p242 = scmp.lt.s32.totalorder %s239, 1
      %s243 = scalar_select %p242, %s239, 1
      %s244 = smul.addr %s243, 4
      %s245 = smul.addr %s241, 8
      %s246 = sadd.s32 %s244, %s245
      %s247 = smul.addr %s246, 8
      %s248 = scalar_lea.vmem %s5, %s247
      %s249 = smul.u32 2, %s21
      %s251 = smul.u32 %s21, 16
      %p252 = scmp.eq.s32.totalorder %s21, 0
      // Predicated region
      $region41: #{resblock_forward.1} parent=39 // pred_check
        %p253 = pneg %p252
      $region42: #{resblock_forward.1} parent=39 // pred_check_branch
        %255 = sbr.rel (%p253) target = $region44
      $region43: #{resblock_forward.1} parent=39 // pred_region
        %256 = vst [vmem:[#allocation2] sm:$0xff] 0
        %257 = vst [vmem:[#allocation2 + $0x8] sm:$0xff] 0
        %258 = vst [vmem:[#allocation2 + $0x10] sm:$0xff] 0
        %259 = vst [vmem:[#allocation2 + $0x18] sm:$0xff] 0
        %260 = vst [vmem:[#allocation2 + $0x20] sm:$0xff] 0
        %261 = vst [vmem:[#allocation2 + $0x28] sm:$0xff] 0
        %262 = vst [vmem:[#allocation2 + $0x30] sm:$0x11] 0
        %263 = vst [vmem:[#allocation2 + $0x38] sm:$0x11] 0
        %v264 = vld [vmem:[%s238] sm:$0xff]
        %v265 = vld [vmem:[%s238 + $0x8] sm:$0xff]
        %v266 = vld [vmem:[%s238 + $0x10] sm:$0xff]
        %v267 = vld [vmem:[%s238 + $0x18] sm:$0xff]
        %vm272 = vcmask 1040384
        %vm273 = vcmask 1044484
        %vm274 = vmor %vm272, %vm273
        %v275 = vrot.slane %v264, 7
        %v276 = vrot.slane %v265, 7
        %v277 = vrot.slane %v275, 4
        %v278 = vrot.slane %v266, 7
        %v279 = vsel %vm274, %v277, %v278
        %v280 = vrot.slane %v276, 4
        %v281 = vrot.slane %v267, 7
        %v282 = vsel %vm274, %v280, %v281
        %v283 = vrot.slane %v278, 4
        %v284 = vrot.slane %v281, 4
        %291 = vst [vmem:[#allocation2] sm:$0xee] %v275
        %292 = vst [vmem:[#allocation2 + $0x8] sm:$0xee] %v276
        %293 = vst [vmem:[#allocation2 + $0x10] sm:$0xff] %v279
        %294 = vst [vmem:[#allocation2 + $0x18] sm:$0xff] %v282
        %295 = vst [vmem:[#allocation2 + $0x20] sm:$0x11] %v283
        %296 = vst [vmem:[#allocation2 + $0x28] sm:$0x11] %v284
      $region44: #{resblock_forward.1} parent=39 // pred_fallthru
        _
      %s297 = sshra.s32 %s251, 3
      %s298 = sand.u32 %s251, 7
      %s299 = smul.u32 %s297, 4
      %s300 = smul.addr %s299, 4
      %s301 = scalar_lea.vmem [#allocation2], %s300
      %v302 = vld [vmem:[%s301] sm:$0xff]
      %v303 = vld [vmem:[%s301 + $0x8] sm:$0xff]
      %v304 = vld [vmem:[%s301 + $0x10] sm:$0xff]
      %v305 = vld [vmem:[%s301 + $0x18] sm:$0xff]
      %v306 = vld [vmem:[%s301 + $0x20] sm:$0xff]
      %v307 = vld [vmem:[%s301 + $0x28] sm:$0xff]
      %v308 = vld [vmem:[%s301 + $0x30] sm:$0x11]
      %v309 = vld [vmem:[%s301 + $0x38] sm:$0x11]
      %v310 = vld [vmem:[%s1] sm:$0xff]
      %v311 = vld [vmem:[%s1 + $0x8] sm:$0xff]
      %v312 = vld [vmem:[%s1 + $0x10] sm:$0xff]
      %v313 = vld [vmem:[%s1 + $0x18] sm:$0xff]
      %v314 = vld [vmem:[%s1 + $0x20] sm:$0xff]
      %v315 = vld [vmem:[%s1 + $0x28] sm:$0xff]
      %v316 = vld [vmem:[%s1 + $0x30] sm:$0xff]
      %v317 = vld [vmem:[%s1 + $0x38] sm:$0xff]
      %v318 = vld [vmem:[%s1 + $0x40] sm:$0xff]
      %v319 = vld [vmem:[%s1 + $0x48] sm:$0xff]
      %v320 = vld [vmem:[%s1 + $0x50] sm:$0xff]
      %v321 = vld [vmem:[%s1 + $0x58] sm:$0xff]
      %v322 = vld [vmem:[%s1 + $0x60] sm:$0xff]
      %v323 = vld [vmem:[%s1 + $0x68] sm:$0xff]
      %v324 = vld [vmem:[%s1 + $0x70] sm:$0xff]
      %v325 = vld [vmem:[%s1 + $0x78] sm:$0xff]
      %v326 = vld [vmem:[%s1 + $0x80] sm:$0xff]
      %v327 = vld [vmem:[%s1 + $0x88] sm:$0xff]
      %v328 = vld [vmem:[%s1 + $0x90] sm:$0xff]
      %v329 = vld [vmem:[%s1 + $0x98] sm:$0xff]
      %v330 = vld [vmem:[%s1 + $0xa0] sm:$0xff]
      %v331 = vld [vmem:[%s1 + $0xa8] sm:$0xff]
      %v332 = vld [vmem:[%s1 + $0xb0] sm:$0xff]
      %v333 = vld [vmem:[%s1 + $0xb8] sm:$0xff]
      %v334 = vld [vmem:[%s1 + $0xc0] sm:$0xff]
      %v335 = vld [vmem:[%s1 + $0xc8] sm:$0xff]
      %v336 = vld [vmem:[%s1 + $0xd0] sm:$0xff]
      %v337 = vld [vmem:[%s1 + $0xd8] sm:$0xff]
      %v338 = vld [vmem:[%s1 + $0xe0] sm:$0xff]
      %v339 = vld [vmem:[%s1 + $0xe8] sm:$0xff]
      %v340 = vld [vmem:[%s1 + $0xf0] sm:$0xff]
      %v341 = vld [vmem:[%s1 + $0xf8] sm:$0xff]
      %v342 = vld [vmem:[%s1 + $0x100] sm:$0xff]
      %v343 = vld [vmem:[%s1 + $0x108] sm:$0xff]
      %v344 = vld [vmem:[%s1 + $0x110] sm:$0xff]
      %v345 = vld [vmem:[%s1 + $0x118] sm:$0xff]
      %v346 = vld [vmem:[%s1 + $0x120] sm:$0xff]
      %v347 = vld [vmem:[%s1 + $0x128] sm:$0xff]
      %v348 = vld [vmem:[%s1 + $0x130] sm:$0xff]
      %v349 = vld [vmem:[%s1 + $0x138] sm:$0xff]
      %v350 = vld [vmem:[%s1 + $0x140] sm:$0xff]
      %v351 = vld [vmem:[%s1 + $0x148] sm:$0xff]
      %v352 = vld [vmem:[%s1 + $0x150] sm:$0xff]
      %v353 = vld [vmem:[%s1 + $0x158] sm:$0xff]
      %v354 = vld [vmem:[%s1 + $0x160] sm:$0xff]
      %v355 = vld [vmem:[%s1 + $0x168] sm:$0xff]
      %v356 = vld [vmem:[%s1 + $0x170] sm:$0xff]
      %v357 = vld [vmem:[%s1 + $0x178] sm:$0xff]
      %v358 = vld [vmem:[%s1 + $0x180] sm:$0xff]
      %v359 = vld [vmem:[%s1 + $0x188] sm:$0xff]
      %v360 = vld [vmem:[%s1 + $0x190] sm:$0xff]
      %v361 = vld [vmem:[%s1 + $0x198] sm:$0xff]
      %v362 = vld [vmem:[%s1 + $0x1a0] sm:$0xff]
      %v363 = vld [vmem:[%s1 + $0x1a8] sm:$0xff]
      %v364 = vld [vmem:[%s1 + $0x1b0] sm:$0xff]
      %v365 = vld [vmem:[%s1 + $0x1b8] sm:$0xff]
      %v366 = vld [vmem:[%s1 + $0x1c0] sm:$0xff]
      %v367 = vld [vmem:[%s1 + $0x1c8] sm:$0xff]
      %v368 = vld [vmem:[%s1 + $0x1d0] sm:$0xff]
      %v369 = vld [vmem:[%s1 + $0x1d8] sm:$0xff]
      %v370 = vld [vmem:[%s1 + $0x1e0] sm:$0xff]
      %v371 = vld [vmem:[%s1 + $0x1e8] sm:$0xff]
      %v372 = vld [vmem:[%s1 + $0x1f0] sm:$0xff]
      %v373 = vld [vmem:[%s1 + $0x1f8] sm:$0xff]
      %v374 = vld [vmem:[%s1 + $0x200] sm:$0xff]
      %v375 = vld [vmem:[%s1 + $0x208] sm:$0xff]
      %v376 = vld [vmem:[%s1 + $0x210] sm:$0xff]
      %v377 = vld [vmem:[%s1 + $0x218] sm:$0xff]
      %v378 = vld [vmem:[%s1 + $0x220] sm:$0xff]
      %v379 = vld [vmem:[%s1 + $0x228] sm:$0xff]
      %v380 = vld [vmem:[%s1 + $0x230] sm:$0xff]
      %v381 = vld [vmem:[%s1 + $0x238] sm:$0xff]
      %v382 = vld [vmem:[%s1 + $0x240] sm:$0xff]
      %v383 = vld [vmem:[%s1 + $0x248] sm:$0xff]
      %v384 = vld [vmem:[%s1 + $0x250] sm:$0xff]
      %v385 = vld [vmem:[%s1 + $0x258] sm:$0xff]
      %v386 = vld [vmem:[%s1 + $0x260] sm:$0xff]
      %v387 = vld [vmem:[%s1 + $0x268] sm:$0xff]
      %v388 = vld [vmem:[%s1 + $0x270] sm:$0xff]
      %v389 = vld [vmem:[%s1 + $0x278] sm:$0xff]
      %v390 = vld [vmem:[%s1 + $0x280] sm:$0xff]
      %v391 = vld [vmem:[%s1 + $0x288] sm:$0xff]
      %v392 = vld [vmem:[%s1 + $0x290] sm:$0xff]
      %v393 = vld [vmem:[%s1 + $0x298] sm:$0xff]
      %v394 = vld [vmem:[%s1 + $0x2a0] sm:$0xff]
      %v395 = vld [vmem:[%s1 + $0x2a8] sm:$0xff]
      %v396 = vld [vmem:[%s1 + $0x2b0] sm:$0xff]
      %v397 = vld [vmem:[%s1 + $0x2b8] sm:$0xff]
      %v398 = vld [vmem:[%s1 + $0x2c0] sm:$0xff]
      %v399 = vld [vmem:[%s1 + $0x2c8] sm:$0xff]
      %v400 = vld [vmem:[%s1 + $0x2d0] sm:$0xff]
      %v401 = vld [vmem:[%s1 + $0x2d8] sm:$0xff]
      %v402 = vld [vmem:[%s1 + $0x2e0] sm:$0xff]
      %v403 = vld [vmem:[%s1 + $0x2e8] sm:$0xff]
      %v404 = vld [vmem:[%s1 + $0x2f0] sm:$0xff]
      %v405 = vld [vmem:[%s1 + $0x2f8] sm:$0xff]
      %v406 = vld [vmem:[%s1 + $0x300] sm:$0xff]
      %v407 = vld [vmem:[%s1 + $0x308] sm:$0xff]
      %v408 = vld [vmem:[%s1 + $0x310] sm:$0xff]
      %v409 = vld [vmem:[%s1 + $0x318] sm:$0xff]
      %v410 = vld [vmem:[%s1 + $0x320] sm:$0xff]
      %v411 = vld [vmem:[%s1 + $0x328] sm:$0xff]
      %v412 = vld [vmem:[%s1 + $0x330] sm:$0xff]
      %v413 = vld [vmem:[%s1 + $0x338] sm:$0xff]
      %v414 = vld [vmem:[%s1 + $0x340] sm:$0xff]
      %v415 = vld [vmem:[%s1 + $0x348] sm:$0xff]
      %v416 = vld [vmem:[%s1 + $0x350] sm:$0xff]
      %v417 = vld [vmem:[%s1 + $0x358] sm:$0xff]
      %v418 = vld [vmem:[%s1 + $0x360] sm:$0xff]
      %v419 = vld [vmem:[%s1 + $0x368] sm:$0xff]
      %v420 = vld [vmem:[%s1 + $0x370] sm:$0xff]
      %v421 = vld [vmem:[%s1 + $0x378] sm:$0xff]
      %v422 = vld [vmem:[%s1 + $0x380] sm:$0xff]
      %v423 = vld [vmem:[%s1 + $0x388] sm:$0xff]
      %v424 = vld [vmem:[%s1 + $0x390] sm:$0xff]
      %v425 = vld [vmem:[%s1 + $0x398] sm:$0xff]
      %v426 = vld [vmem:[%s1 + $0x3a0] sm:$0xff]
      %v427 = vld [vmem:[%s1 + $0x3a8] sm:$0xff]
      %v428 = vld [vmem:[%s1 + $0x3b0] sm:$0xff]
      %v429 = vld [vmem:[%s1 + $0x3b8] sm:$0xff]
      %v430 = vld [vmem:[%s1 + $0x3c0] sm:$0xff]
      %v431 = vld [vmem:[%s1 + $0x3c8] sm:$0xff]
      %v432 = vld [vmem:[%s1 + $0x3d0] sm:$0xff]
      %v433 = vld [vmem:[%s1 + $0x3d8] sm:$0xff]
      %v434 = vld [vmem:[%s1 + $0x3e0] sm:$0xff]
      %v435 = vld [vmem:[%s1 + $0x3e8] sm:$0xff]
      %v436 = vld [vmem:[%s1 + $0x3f0] sm:$0xff]
      %v437 = vld [vmem:[%s1 + $0x3f8] sm:$0xff]
      %s438 = scalar_lea.vmem %s1, 1024
      %v439 = vld [vmem:[%s438] sm:$0xff]
      %v440 = vld [vmem:[%s438 + $0x8] sm:$0xff]
      %v441 = vld [vmem:[%s438 + $0x10] sm:$0xff]
      %v442 = vld [vmem:[%s438 + $0x18] sm:$0xff]
      %v443 = vld [vmem:[%s438 + $0x20] sm:$0xff]
      %v444 = vld [vmem:[%s438 + $0x28] sm:$0xff]
      %v445 = vld [vmem:[%s438 + $0x30] sm:$0xff]
      %v446 = vld [vmem:[%s438 + $0x38] sm:$0xff]
      %v447 = vld [vmem:[%s438 + $0x40] sm:$0xff]
      %v448 = vld [vmem:[%s438 + $0x48] sm:$0xff]
      %v449 = vld [vmem:[%s438 + $0x50] sm:$0xff]
      %v450 = vld [vmem:[%s438 + $0x58] sm:$0xff]
      %v451 = vld [vmem:[%s438 + $0x60] sm:$0xff]
      %v452 = vld [vmem:[%s438 + $0x68] sm:$0xff]
      %v453 = vld [vmem:[%s438 + $0x70] sm:$0xff]
      %v454 = vld [vmem:[%s438 + $0x78] sm:$0xff]
      %v455 = vld [vmem:[%s438 + $0x80] sm:$0xff]
      %v456 = vld [vmem:[%s438 + $0x88] sm:$0xff]
      %v457 = vld [vmem:[%s438 + $0x90] sm:$0xff]
      %v458 = vld [vmem:[%s438 + $0x98] sm:$0xff]
      %v459 = vld [vmem:[%s438 + $0xa0] sm:$0xff]
      %v460 = vld [vmem:[%s438 + $0xa8] sm:$0xff]
      %v461 = vld [vmem:[%s438 + $0xb0] sm:$0xff]
      %v462 = vld [vmem:[%s438 + $0xb8] sm:$0xff]
      %v463 = vld [vmem:[%s438 + $0xc0] sm:$0xff]
      %v464 = vld [vmem:[%s438 + $0xc8] sm:$0xff]
      %v465 = vld [vmem:[%s438 + $0xd0] sm:$0xff]
      %v466 = vld [vmem:[%s438 + $0xd8] sm:$0xff]
      %v467 = vld [vmem:[%s438 + $0xe0] sm:$0xff]
      %v468 = vld [vmem:[%s438 + $0xe8] sm:$0xff]
      %v469 = vld [vmem:[%s438 + $0xf0] sm:$0xff]
      %v470 = vld [vmem:[%s438 + $0xf8] sm:$0xff]
      %v471 = vld [vmem:[%s438 + $0x100] sm:$0xff]
      %v472 = vld [vmem:[%s438 + $0x108] sm:$0xff]
      %v473 = vld [vmem:[%s438 + $0x110] sm:$0xff]
      %v474 = vld [vmem:[%s438 + $0x118] sm:$0xff]
      %v475 = vld [vmem:[%s438 + $0x120] sm:$0xff]
      %v476 = vld [vmem:[%s438 + $0x128] sm:$0xff]
      %v477 = vld [vmem:[%s438 + $0x130] sm:$0xff]
      %v478 = vld [vmem:[%s438 + $0x138] sm:$0xff]
      %v479 = vld [vmem:[%s438 + $0x140] sm:$0xff]
      %v480 = vld [vmem:[%s438 + $0x148] sm:$0xff]
      %v481 = vld [vmem:[%s438 + $0x150] sm:$0xff]
      %v482 = vld [vmem:[%s438 + $0x158] sm:$0xff]
      %v483 = vld [vmem:[%s438 + $0x160] sm:$0xff]
      %v484 = vld [vmem:[%s438 + $0x168] sm:$0xff]
      %v485 = vld [vmem:[%s438 + $0x170] sm:$0xff]
      %v486 = vld [vmem:[%s438 + $0x178] sm:$0xff]
      %v487 = vld [vmem:[%s438 + $0x180] sm:$0xff]
      %v488 = vld [vmem:[%s438 + $0x188] sm:$0xff]
      %v489 = vld [vmem:[%s438 + $0x190] sm:$0xff]
      %v490 = vld [vmem:[%s438 + $0x198] sm:$0xff]
      %v491 = vld [vmem:[%s438 + $0x1a0] sm:$0xff]
      %v492 = vld [vmem:[%s438 + $0x1a8] sm:$0xff]
      %v493 = vld [vmem:[%s438 + $0x1b0] sm:$0xff]
      %v494 = vld [vmem:[%s438 + $0x1b8] sm:$0xff]
      %v495 = vld [vmem:[%s438 + $0x1c0] sm:$0xff]
      %v496 = vld [vmem:[%s438 + $0x1c8] sm:$0xff]
      %v497 = vld [vmem:[%s438 + $0x1d0] sm:$0xff]
      %v498 = vld [vmem:[%s438 + $0x1d8] sm:$0xff]
      %v499 = vld [vmem:[%s438 + $0x1e0] sm:$0xff]
      %v500 = vld [vmem:[%s438 + $0x1e8] sm:$0xff]
      %v501 = vld [vmem:[%s438 + $0x1f0] sm:$0xff]
      %v502 = vld [vmem:[%s438 + $0x1f8] sm:$0xff]
      %v503 = vld [vmem:[%s438 + $0x200] sm:$0xff]
      %v504 = vld [vmem:[%s438 + $0x208] sm:$0xff]
      %v505 = vld [vmem:[%s438 + $0x210] sm:$0xff]
      %v506 = vld [vmem:[%s438 + $0x218] sm:$0xff]
      %v507 = vld [vmem:[%s438 + $0x220] sm:$0xff]
      %v508 = vld [vmem:[%s438 + $0x228] sm:$0xff]
      %v509 = vld [vmem:[%s438 + $0x230] sm:$0xff]
      %v510 = vld [vmem:[%s438 + $0x238] sm:$0xff]
      %v511 = vld [vmem:[%s438 + $0x240] sm:$0xff]
      %v512 = vld [vmem:[%s438 + $0x248] sm:$0xff]
      %v513 = vld [vmem:[%s438 + $0x250] sm:$0xff]
      %v514 = vld [vmem:[%s438 + $0x258] sm:$0xff]
      %v515 = vld [vmem:[%s438 + $0x260] sm:$0xff]
      %v516 = vld [vmem:[%s438 + $0x268] sm:$0xff]
      %v517 = vld [vmem:[%s438 + $0x270] sm:$0xff]
      %v518 = vld [vmem:[%s438 + $0x278] sm:$0xff]
      %v519 = vld [vmem:[%s438 + $0x280] sm:$0xff]
      %v520 = vld [vmem:[%s438 + $0x288] sm:$0xff]
      %v521 = vld [vmem:[%s438 + $0x290] sm:$0xff]
      %v522 = vld [vmem:[%s438 + $0x298] sm:$0xff]
      %v523 = vld [vmem:[%s438 + $0x2a0] sm:$0xff]
      %v524 = vld [vmem:[%s438 + $0x2a8] sm:$0xff]
      %v525 = vld [vmem:[%s438 + $0x2b0] sm:$0xff]
      %v526 = vld [vmem:[%s438 + $0x2b8] sm:$0xff]
      %v527 = vld [vmem:[%s438 + $0x2c0] sm:$0xff]
      %v528 = vld [vmem:[%s438 + $0x2c8] sm:$0xff]
      %v529 = vld [vmem:[%s438 + $0x2d0] sm:$0xff]
      %v530 = vld [vmem:[%s438 + $0x2d8] sm:$0xff]
      %v531 = vld [vmem:[%s438 + $0x2e0] sm:$0xff]
      %v532 = vld [vmem:[%s438 + $0x2e8] sm:$0xff]
      %v533 = vld [vmem:[%s438 + $0x2f0] sm:$0xff]
      %v534 = vld [vmem:[%s438 + $0x2f8] sm:$0xff]
      %v535 = vld [vmem:[%s438 + $0x300] sm:$0xff]
      %v536 = vld [vmem:[%s438 + $0x308] sm:$0xff]
      %v537 = vld [vmem:[%s438 + $0x310] sm:$0xff]
      %v538 = vld [vmem:[%s438 + $0x318] sm:$0xff]
      %v539 = vld [vmem:[%s438 + $0x320] sm:$0xff]
      %v540 = vld [vmem:[%s438 + $0x328] sm:$0xff]
      %v541 = vld [vmem:[%s438 + $0x330] sm:$0xff]
      %v542 = vld [vmem:[%s438 + $0x338] sm:$0xff]
      %v543 = vld [vmem:[%s438 + $0x340] sm:$0xff]
      %v544 = vld [vmem:[%s438 + $0x348] sm:$0xff]
      %v545 = vld [vmem:[%s438 + $0x350] sm:$0xff]
      %v546 = vld [vmem:[%s438 + $0x358] sm:$0xff]
      %v547 = vld [vmem:[%s438 + $0x360] sm:$0xff]
      %v548 = vld [vmem:[%s438 + $0x368] sm:$0xff]
      %v549 = vld [vmem:[%s438 + $0x370] sm:$0xff]
      %v550 = vld [vmem:[%s438 + $0x378] sm:$0xff]
      %v551 = vld [vmem:[%s438 + $0x380] sm:$0xff]
      %v552 = vld [vmem:[%s438 + $0x388] sm:$0xff]
      %v553 = vld [vmem:[%s438 + $0x390] sm:$0xff]
      %v554 = vld [vmem:[%s438 + $0x398] sm:$0xff]
      %v555 = vld [vmem:[%s438 + $0x3a0] sm:$0xff]
      %v556 = vld [vmem:[%s438 + $0x3a8] sm:$0xff]
      %v557 = vld [vmem:[%s438 + $0x3b0] sm:$0xff]
      %v558 = vld [vmem:[%s438 + $0x3b8] sm:$0xff]
      %v559 = vld [vmem:[%s438 + $0x3c0] sm:$0xff]
      %v560 = vld [vmem:[%s438 + $0x3c8] sm:$0xff]
      %v561 = vld [vmem:[%s438 + $0x3d0] sm:$0xff]
      %v562 = vld [vmem:[%s438 + $0x3d8] sm:$0xff]
      %v563 = vld [vmem:[%s438 + $0x3e0] sm:$0xff]
      %v564 = vld [vmem:[%s438 + $0x3e8] sm:$0xff]
      %v565 = vld [vmem:[%s438 + $0x3f0] sm:$0xff]
      %v566 = vld [vmem:[%s438 + $0x3f8] sm:$0xff]
      %v575 = vunpack.c.l.b16 %v302
      %v576 = vunpack.c.h.b16 %v302
      %v577 = vunpack.c.l.b16 %v303
      %v578 = vunpack.c.h.b16 %v303
      %v579 = vunpack.c.l.b16 %v304
      %v580 = vunpack.c.h.b16 %v304
      %v581 = vunpack.c.l.b16 %v305
      %v582 = vunpack.c.h.b16 %v305
      %v583 = vunpack.c.l.b16 %v306
      %v584 = vunpack.c.h.b16 %v306
      %v585 = vunpack.c.l.b16 %v307
      %v586 = vunpack.c.h.b16 %v307
      %v587 = vunpack.c.l.b16 %v308
      %v588 = vunpack.c.h.b16 %v308
      %v589 = vunpack.c.l.b16 %v309
      %v590 = vunpack.c.h.b16 %v309
      %v591 = vpack.c.b16 %v579, %v575
      %v592 = vpack.c.b16 %v580, %v576
      %v593 = vpack.c.b16 %v581, %v577
      %v594 = vpack.c.b16 %v582, %v578
      %v595 = vpack.c.b16 %v587, %v583
      %v596 = vpack.c.b16 %v588, %v584
      %v597 = vpack.c.b16 %v589, %v585
      %v598 = vpack.c.b16 %v590, %v586
      %vm599 = vsmask.f32 7424
      %v601 = vshrl.u32 %v591, 16
      %v603 = vshll.u32 %v591, 16
      %v605 = vrot.slane %v603, 1
      %v606 = vor.u32 %v601, %v605
      %v608 = vshll.u32 %v595, 16
      %v610 = vrot.slane %v608, 1
      %v611 = vsel %vm599, %v606, %v610
      %v613 = vshrl.u32 %v592, 16
      %v615 = vshll.u32 %v592, 16
      %v617 = vrot.slane %v615, 1
      %v618 = vor.u32 %v613, %v617
      %v620 = vshll.u32 %v596, 16
      %v622 = vrot.slane %v620, 1
      %v623 = vsel %vm599, %v618, %v622
      %v625 = vshrl.u32 %v593, 16
      %v627 = vshll.u32 %v593, 16
      %v629 = vrot.slane %v627, 1
      %v630 = vor.u32 %v625, %v629
      %v632 = vshll.u32 %v597, 16
      %v634 = vrot.slane %v632, 1
      %v635 = vsel %vm599, %v630, %v634
      %v637 = vshrl.u32 %v594, 16
      %v639 = vshll.u32 %v594, 16
      %v641 = vrot.slane %v639, 1
      %v642 = vor.u32 %v637, %v641
      %v644 = vshll.u32 %v598, 16
      %v646 = vrot.slane %v644, 1
      %v647 = vsel %vm599, %v642, %v646
      %v648 = vshrl.u32 %v595, 16
      %v650 = vor.u32 %v648, %v610
      %v651 = vshrl.u32 %v596, 16
      %v653 = vor.u32 %v651, %v622
      %v654 = vshrl.u32 %v597, 16
      %v656 = vor.u32 %v654, %v634
      %v657 = vshrl.u32 %v598, 16
      %v659 = vor.u32 %v657, %v646
      %v796 = vunpack.c.l.b16 %v439
      %v797 = vunpack.c.h.b16 %v439
      %v798 = vunpack.c.l.b16 %v440
      %v799 = vunpack.c.h.b16 %v440
      %v800 = vunpack.c.l.b16 %v441
      %v801 = vunpack.c.h.b16 %v441
      %v802 = vunpack.c.l.b16 %v442
      %v803 = vunpack.c.h.b16 %v442
      %v804 = vunpack.c.l.b16 %v443
      %v805 = vunpack.c.h.b16 %v443
      %v806 = vunpack.c.l.b16 %v444
      %v807 = vunpack.c.h.b16 %v444
      %v808 = vunpack.c.l.b16 %v445
      %v809 = vunpack.c.h.b16 %v445
      %v810 = vunpack.c.l.b16 %v446
      %v811 = vunpack.c.h.b16 %v446
      %v812 = vunpack.c.l.b16 %v447
      %v813 = vunpack.c.h.b16 %v447
      %v814 = vunpack.c.l.b16 %v448
      %v815 = vunpack.c.h.b16 %v448
      %v816 = vunpack.c.l.b16 %v449
      %v817 = vunpack.c.h.b16 %v449
      %v818 = vunpack.c.l.b16 %v450
      %v819 = vunpack.c.h.b16 %v450
      %v820 = vunpack.c.l.b16 %v451
      %v821 = vunpack.c.h.b16 %v451
      %v822 = vunpack.c.l.b16 %v452
      %v823 = vunpack.c.h.b16 %v452
      %v824 = vunpack.c.l.b16 %v453
      %v825 = vunpack.c.h.b16 %v453
      %v826 = vunpack.c.l.b16 %v454
      %v827 = vunpack.c.h.b16 %v454
      %v828 = vunpack.c.l.b16 %v455
      %v829 = vunpack.c.h.b16 %v455
      %v830 = vunpack.c.l.b16 %v456
      %v831 = vunpack.c.h.b16 %v456
      %v832 = vunpack.c.l.b16 %v457
      %v833 = vunpack.c.h.b16 %v457
      %v834 = vunpack.c.l.b16 %v458
      %v835 = vunpack.c.h.b16 %v458
      %v836 = vunpack.c.l.b16 %v459
      %v837 = vunpack.c.h.b16 %v459
      %v838 = vunpack.c.l.b16 %v460
      %v839 = vunpack.c.h.b16 %v460
      %v840 = vunpack.c.l.b16 %v461
      %v841 = vunpack.c.h.b16 %v461
      %v842 = vunpack.c.l.b16 %v462
      %v843 = vunpack.c.h.b16 %v462
      %v844 = vunpack.c.l.b16 %v463
      %v845 = vunpack.c.h.b16 %v463
      %v846 = vunpack.c.l.b16 %v464
      %v847 = vunpack.c.h.b16 %v464
      %v848 = vunpack.c.l.b16 %v465
      %v849 = vunpack.c.h.b16 %v465
      %v850 = vunpack.c.l.b16 %v466
      %v851 = vunpack.c.h.b16 %v466
      %v852 = vunpack.c.l.b16 %v467
      %v853 = vunpack.c.h.b16 %v467
      %v854 = vunpack.c.l.b16 %v468
      %v855 = vunpack.c.h.b16 %v468
      %v856 = vunpack.c.l.b16 %v469
      %v857 = vunpack.c.h.b16 %v469
      %v858 = vunpack.c.l.b16 %v470
      %v859 = vunpack.c.h.b16 %v470
      %v860 = vunpack.c.l.b16 %v471
      %v861 = vunpack.c.h.b16 %v471
      %v862 = vunpack.c.l.b16 %v472
      %v863 = vunpack.c.h.b16 %v472
      %v864 = vunpack.c.l.b16 %v473
      %v865 = vunpack.c.h.b16 %v473
      %v866 = vunpack.c.l.b16 %v474
      %v867 = vunpack.c.h.b16 %v474
      %v868 = vunpack.c.l.b16 %v475
      %v869 = vunpack.c.h.b16 %v475
      %v870 = vunpack.c.l.b16 %v476
      %v871 = vunpack.c.h.b16 %v476
      %v872 = vunpack.c.l.b16 %v477
      %v873 = vunpack.c.h.b16 %v477
      %v874 = vunpack.c.l.b16 %v478
      %v875 = vunpack.c.h.b16 %v478
      %v876 = vunpack.c.l.b16 %v479
      %v877 = vunpack.c.h.b16 %v479
      %v878 = vunpack.c.l.b16 %v480
      %v879 = vunpack.c.h.b16 %v480
      %v880 = vunpack.c.l.b16 %v481
      %v881 = vunpack.c.h.b16 %v481
      %v882 = vunpack.c.l.b16 %v482
      %v883 = vunpack.c.h.b16 %v482
      %v884 = vunpack.c.l.b16 %v483
      %v885 = vunpack.c.h.b16 %v483
      %v886 = vunpack.c.l.b16 %v484
      %v887 = vunpack.c.h.b16 %v484
      %v888 = vunpack.c.l.b16 %v485
      %v889 = vunpack.c.h.b16 %v485
      %v890 = vunpack.c.l.b16 %v486
      %v891 = vunpack.c.h.b16 %v486
      %v892 = vunpack.c.l.b16 %v487
      %v893 = vunpack.c.h.b16 %v487
      %v894 = vunpack.c.l.b16 %v488
      %v895 = vunpack.c.h.b16 %v488
      %v896 = vunpack.c.l.b16 %v489
      %v897 = vunpack.c.h.b16 %v489
      %v898 = vunpack.c.l.b16 %v490
      %v899 = vunpack.c.h.b16 %v490
      %v900 = vunpack.c.l.b16 %v491
      %v901 = vunpack.c.h.b16 %v491
      %v902 = vunpack.c.l.b16 %v492
      %v903 = vunpack.c.h.b16 %v492
      %v904 = vunpack.c.l.b16 %v493
      %v905 = vunpack.c.h.b16 %v493
      %v906 = vunpack.c.l.b16 %v494
      %v907 = vunpack.c.h.b16 %v494
      %v908 = vunpack.c.l.b16 %v495
      %v909 = vunpack.c.h.b16 %v495
      %v910 = vunpack.c.l.b16 %v496
      %v911 = vunpack.c.h.b16 %v496
      %v912 = vunpack.c.l.b16 %v497
      %v913 = vunpack.c.h.b16 %v497
      %v914 = vunpack.c.l.b16 %v498
      %v915 = vunpack.c.h.b16 %v498
      %v916 = vunpack.c.l.b16 %v499
      %v917 = vunpack.c.h.b16 %v499
      %v918 = vunpack.c.l.b16 %v500
      %v919 = vunpack.c.h.b16 %v500
      %v920 = vunpack.c.l.b16 %v501
      %v921 = vunpack.c.h.b16 %v501
      %v922 = vunpack.c.l.b16 %v502
      %v923 = vunpack.c.h.b16 %v502
      %v924 = vunpack.c.l.b16 %v503
      %v925 = vunpack.c.h.b16 %v503
      %v926 = vunpack.c.l.b16 %v504
      %v927 = vunpack.c.h.b16 %v504
      %v928 = vunpack.c.l.b16 %v505
      %v929 = vunpack.c.h.b16 %v505
      %v930 = vunpack.c.l.b16 %v506
      %v931 = vunpack.c.h.b16 %v506
      %v932 = vunpack.c.l.b16 %v507
      %v933 = vunpack.c.h.b16 %v507
      %v934 = vunpack.c.l.b16 %v508
      %v935 = vunpack.c.h.b16 %v508
      %v936 = vunpack.c.l.b16 %v509
      %v937 = vunpack.c.h.b16 %v509
      %v938 = vunpack.c.l.b16 %v510
      %v939 = vunpack.c.h.b16 %v510
      %v940 = vunpack.c.l.b16 %v511
      %v941 = vunpack.c.h.b16 %v511
      %v942 = vunpack.c.l.b16 %v512
      %v943 = vunpack.c.h.b16 %v512
      %v944 = vunpack.c.l.b16 %v513
      %v945 = vunpack.c.h.b16 %v513
      %v946 = vunpack.c.l.b16 %v514
      %v947 = vunpack.c.h.b16 %v514
      %v948 = vunpack.c.l.b16 %v515
      %v949 = vunpack.c.h.b16 %v515
      %v950 = vunpack.c.l.b16 %v516
      %v951 = vunpack.c.h.b16 %v516
      %v952 = vunpack.c.l.b16 %v517
      %v953 = vunpack.c.h.b16 %v517
      %v954 = vunpack.c.l.b16 %v518
      %v955 = vunpack.c.h.b16 %v518
      %v956 = vunpack.c.l.b16 %v519
      %v957 = vunpack.c.h.b16 %v519
      %v958 = vunpack.c.l.b16 %v520
      %v959 = vunpack.c.h.b16 %v520
      %v960 = vunpack.c.l.b16 %v521
      %v961 = vunpack.c.h.b16 %v521
      %v962 = vunpack.c.l.b16 %v522
      %v963 = vunpack.c.h.b16 %v522
      %v964 = vunpack.c.l.b16 %v523
      %v965 = vunpack.c.h.b16 %v523
      %v966 = vunpack.c.l.b16 %v524
      %v967 = vunpack.c.h.b16 %v524
      %v968 = vunpack.c.l.b16 %v525
      %v969 = vunpack.c.h.b16 %v525
      %v970 = vunpack.c.l.b16 %v526
      %v971 = vunpack.c.h.b16 %v526
      %v972 = vunpack.c.l.b16 %v527
      %v973 = vunpack.c.h.b16 %v527
      %v974 = vunpack.c.l.b16 %v528
      %v975 = vunpack.c.h.b16 %v528
      %v976 = vunpack.c.l.b16 %v529
      %v977 = vunpack.c.h.b16 %v529
      %v978 = vunpack.c.l.b16 %v530
      %v979 = vunpack.c.h.b16 %v530
      %v980 = vunpack.c.l.b16 %v531
      %v981 = vunpack.c.h.b16 %v531
      %v982 = vunpack.c.l.b16 %v532
      %v983 = vunpack.c.h.b16 %v532
      %v984 = vunpack.c.l.b16 %v533
      %v985 = vunpack.c.h.b16 %v533
      %v986 = vunpack.c.l.b16 %v534
      %v987 = vunpack.c.h.b16 %v534
      %v988 = vunpack.c.l.b16 %v535
      %v989 = vunpack.c.h.b16 %v535
      %v990 = vunpack.c.l.b16 %v536
      %v991 = vunpack.c.h.b16 %v536
      %v992 = vunpack.c.l.b16 %v537
      %v993 = vunpack.c.h.b16 %v537
      %v994 = vunpack.c.l.b16 %v538
      %v995 = vunpack.c.h.b16 %v538
      %v996 = vunpack.c.l.b16 %v539
      %v997 = vunpack.c.h.b16 %v539
      %v998 = vunpack.c.l.b16 %v540
      %v999 = vunpack.c.h.b16 %v540
      %v1000 = vunpack.c.l.b16 %v541
      %v1001 = vunpack.c.h.b16 %v541
      %v1002 = vunpack.c.l.b16 %v542
      %v1003 = vunpack.c.h.b16 %v542
      %v1004 = vunpack.c.l.b16 %v543
      %v1005 = vunpack.c.h.b16 %v543
      %v1006 = vunpack.c.l.b16 %v544
      %v1007 = vunpack.c.h.b16 %v544
      %v1008 = vunpack.c.l.b16 %v545
      %v1009 = vunpack.c.h.b16 %v545
      %v1010 = vunpack.c.l.b16 %v546
      %v1011 = vunpack.c.h.b16 %v546
      %v1012 = vunpack.c.l.b16 %v547
      %v1013 = vunpack.c.h.b16 %v547
      %v1014 = vunpack.c.l.b16 %v548
      %v1015 = vunpack.c.h.b16 %v548
      %v1016 = vunpack.c.l.b16 %v549
      %v1017 = vunpack.c.h.b16 %v549
      %v1018 = vunpack.c.l.b16 %v550
      %v1019 = vunpack.c.h.b16 %v550
      %v1020 = vunpack.c.l.b16 %v551
      %v1021 = vunpack.c.h.b16 %v551
      %v1022 = vunpack.c.l.b16 %v552
      %v1023 = vunpack.c.h.b16 %v552
      %v1024 = vunpack.c.l.b16 %v553
      %v1025 = vunpack.c.h.b16 %v553
      %v1026 = vunpack.c.l.b16 %v554
      %v1027 = vunpack.c.h.b16 %v554
      %v1028 = vunpack.c.l.b16 %v555
      %v1029 = vunpack.c.h.b16 %v555
      %v1030 = vunpack.c.l.b16 %v556
      %v1031 = vunpack.c.h.b16 %v556
      %v1032 = vunpack.c.l.b16 %v557
      %v1033 = vunpack.c.h.b16 %v557
      %v1034 = vunpack.c.l.b16 %v558
      %v1035 = vunpack.c.h.b16 %v558
      %v1036 = vunpack.c.l.b16 %v559
      %v1037 = vunpack.c.h.b16 %v559
      %v1038 = vunpack.c.l.b16 %v560
      %v1039 = vunpack.c.h.b16 %v560
      %v1040 = vunpack.c.l.b16 %v561
      %v1041 = vunpack.c.h.b16 %v561
      %v1042 = vunpack.c.l.b16 %v562
      %v1043 = vunpack.c.h.b16 %v562
      %v1044 = vunpack.c.l.b16 %v563
      %v1045 = vunpack.c.h.b16 %v563
      %v1046 = vunpack.c.l.b16 %v564
      %v1047 = vunpack.c.h.b16 %v564
      %v1048 = vunpack.c.l.b16 %v565
      %v1049 = vunpack.c.h.b16 %v565
      %v1050 = vunpack.c.l.b16 %v566
      %v1051 = vunpack.c.h.b16 %v566
      %v1052 = vpack.c.b16 %v800, %v796
      %v1053 = vpack.c.b16 %v801, %v797
      %v1054 = vpack.c.b16 %v802, %v798
      %v1055 = vpack.c.b16 %v803, %v799
      %v1056 = vpack.c.b16 %v808, %v804
      %v1057 = vpack.c.b16 %v809, %v805
      %v1058 = vpack.c.b16 %v810, %v806
      %v1059 = vpack.c.b16 %v811, %v807
      %v1060 = vpack.c.b16 %v816, %v812
      %v1061 = vpack.c.b16 %v817, %v813
      %v1062 = vpack.c.b16 %v818, %v814
      %v1063 = vpack.c.b16 %v819, %v815
      %v1064 = vpack.c.b16 %v824, %v820
      %v1065 = vpack.c.b16 %v825, %v821
      %v1066 = vpack.c.b16 %v826, %v822
      %v1067 = vpack.c.b16 %v827, %v823
      %v1068 = vpack.c.b16 %v832, %v828
      %v1069 = vpack.c.b16 %v833, %v829
      %v1070 = vpack.c.b16 %v834, %v830
      %v1071 = vpack.c.b16 %v835, %v831
      %v1072 = vpack.c.b16 %v840, %v836
      %v1073 = vpack.c.b16 %v841, %v837
      %v1074 = vpack.c.b16 %v842, %v838
      %v1075 = vpack.c.b16 %v843, %v839
      %v1076 = vpack.c.b16 %v848, %v844
      %v1077 = vpack.c.b16 %v849, %v845
      %v1078 = vpack.c.b16 %v850, %v846
      %v1079 = vpack.c.b16 %v851, %v847
      %v1080 = vpack.c.b16 %v856, %v852
      %v1081 = vpack.c.b16 %v857, %v853
      %v1082 = vpack.c.b16 %v858, %v854
      %v1083 = vpack.c.b16 %v859, %v855
      %v1084 = vpack.c.b16 %v864, %v860
      %v1085 = vpack.c.b16 %v865, %v861
      %v1086 = vpack.c.b16 %v866, %v862
      %v1087 = vpack.c.b16 %v867, %v863
      %v1088 = vpack.c.b16 %v872, %v868
      %v1089 = vpack.c.b16 %v873, %v869
      %v1090 = vpack.c.b16 %v874, %v870
      %v1091 = vpack.c.b16 %v875, %v871
      %v1092 = vpack.c.b16 %v880, %v876
      %v1093 = vpack.c.b16 %v881, %v877
      %v1094 = vpack.c.b16 %v882, %v878
      %v1095 = vpack.c.b16 %v883, %v879
      %v1096 = vpack.c.b16 %v888, %v884
      %v1097 = vpack.c.b16 %v889, %v885
      %v1098 = vpack.c.b16 %v890, %v886
      %v1099 = vpack.c.b16 %v891, %v887
      %v1100 = vpack.c.b16 %v896, %v892
      %v1101 = vpack.c.b16 %v897, %v893
      %v1102 = vpack.c.b16 %v898, %v894
      %v1103 = vpack.c.b16 %v899, %v895
      %v1104 = vpack.c.b16 %v904, %v900
      %v1105 = vpack.c.b16 %v905, %v901
      %v1106 = vpack.c.b16 %v906, %v902
      %v1107 = vpack.c.b16 %v907, %v903
      %v1108 = vpack.c.b16 %v912, %v908
      %v1109 = vpack.c.b16 %v913, %v909
      %v1110 = vpack.c.b16 %v914, %v910
      %v1111 = vpack.c.b16 %v915, %v911
      %v1112 = vpack.c.b16 %v920, %v916
      %v1113 = vpack.c.b16 %v921, %v917
      %v1114 = vpack.c.b16 %v922, %v918
      %v1115 = vpack.c.b16 %v923, %v919
      %v1116 = vpack.c.b16 %v928, %v924
      %v1117 = vpack.c.b16 %v929, %v925
      %v1118 = vpack.c.b16 %v930, %v926
      %v1119 = vpack.c.b16 %v931, %v927
      %v1120 = vpack.c.b16 %v936, %v932
      %v1121 = vpack.c.b16 %v937, %v933
      %v1122 = vpack.c.b16 %v938, %v934
      %v1123 = vpack.c.b16 %v939, %v935
      %v1124 = vpack.c.b16 %v944, %v940
      %v1125 = vpack.c.b16 %v945, %v941
      %v1126 = vpack.c.b16 %v946, %v942
      %v1127 = vpack.c.b16 %v947, %v943
      %v1128 = vpack.c.b16 %v952, %v948
      %v1129 = vpack.c.b16 %v953, %v949
      %v1130 = vpack.c.b16 %v954, %v950
      %v1131 = vpack.c.b16 %v955, %v951
      %v1132 = vpack.c.b16 %v960, %v956
      %v1133 = vpack.c.b16 %v961, %v957
      %v1134 = vpack.c.b16 %v962, %v958
      %v1135 = vpack.c.b16 %v963, %v959
      %v1136 = vpack.c.b16 %v968, %v964
      %v1137 = vpack.c.b16 %v969, %v965
      %v1138 = vpack.c.b16 %v970, %v966
      %v1139 = vpack.c.b16 %v971, %v967
      %v1140 = vpack.c.b16 %v976, %v972
      %v1141 = vpack.c.b16 %v977, %v973
      %v1142 = vpack.c.b16 %v978, %v974
      %v1143 = vpack.c.b16 %v979, %v975
      %v1144 = vpack.c.b16 %v984, %v980
      %v1145 = vpack.c.b16 %v985, %v981
      %v1146 = vpack.c.b16 %v986, %v982
      %v1147 = vpack.c.b16 %v987, %v983
      %v1148 = vpack.c.b16 %v992, %v988
      %v1149 = vpack.c.b16 %v993, %v989
      %v1150 = vpack.c.b16 %v994, %v990
      %v1151 = vpack.c.b16 %v995, %v991
      %v1152 = vpack.c.b16 %v1000, %v996
      %v1153 = vpack.c.b16 %v1001, %v997
      %v1154 = vpack.c.b16 %v1002, %v998
      %v1155 = vpack.c.b16 %v1003, %v999
      %v1156 = vpack.c.b16 %v1008, %v1004
      %v1157 = vpack.c.b16 %v1009, %v1005
      %v1158 = vpack.c.b16 %v1010, %v1006
      %v1159 = vpack.c.b16 %v1011, %v1007
      %v1160 = vpack.c.b16 %v1016, %v1012
      %v1161 = vpack.c.b16 %v1017, %v1013
      %v1162 = vpack.c.b16 %v1018, %v1014
      %v1163 = vpack.c.b16 %v1019, %v1015
      %v1164 = vpack.c.b16 %v1024, %v1020
      %v1165 = vpack.c.b16 %v1025, %v1021
      %v1166 = vpack.c.b16 %v1026, %v1022
      %v1167 = vpack.c.b16 %v1027, %v1023
      %v1168 = vpack.c.b16 %v1032, %v1028
      %v1169 = vpack.c.b16 %v1033, %v1029
      %v1170 = vpack.c.b16 %v1034, %v1030
      %v1171 = vpack.c.b16 %v1035, %v1031
      %v1172 = vpack.c.b16 %v1040, %v1036
      %v1173 = vpack.c.b16 %v1041, %v1037
      %v1174 = vpack.c.b16 %v1042, %v1038
      %v1175 = vpack.c.b16 %v1043, %v1039
      %v1176 = vpack.c.b16 %v1048, %v1044
      %v1177 = vpack.c.b16 %v1049, %v1045
      %v1178 = vpack.c.b16 %v1050, %v1046
      %v1179 = vpack.c.b16 %v1051, %v1047
      %1308 = vmatprep.subr.bf16.mxu0 %v1081
      %1309 = vmatpush1.bf16.msra.mxu0 %v1080
      %1310 = vmatprep.subr.bf16.mxu0 %v1077
      %1311 = vmatpush1.bf16.msra.mxu0 %v1076
      %1312 = vmatprep.subr.bf16.mxu0 %v1073
      %1313 = vmatpush1.bf16.msra.mxu0 %v1072
      %1314 = vmatprep.subr.bf16.mxu0 %v1069
      %1315 = vmatpush1.bf16.msra.mxu0 %v1068
      %1316 = vmatprep.subr.bf16.mxu0 %v1065
      %1317 = vmatpush1.bf16.msra.mxu0 %v1064
      %1318 = vmatprep.subr.bf16.mxu0 %v1061
      %1319 = vmatpush1.bf16.msra.mxu0 %v1060
      %1320 = vmatprep.subr.bf16.mxu0 %v1057
      %1321 = vmatpush1.bf16.msra.mxu0 %v1056
      %1322 = vmatprep.subr.bf16.mxu0 %v1053
      %1323 = vmatpush1.bf16.msra.mxu0 %v1052
      %1324 = vmatprep.subr.bf16.mxu0 %v1113
      %1325 = vmatpush2.bf16.msra.mxu0 %v1112
      %1326 = vmatprep.subr.bf16.mxu0 %v1109
      %1327 = vmatpush2.bf16.msra.mxu0 %v1108
      %1328 = vmatprep.subr.bf16.mxu0 %v1105
      %1329 = vmatpush2.bf16.msra.mxu0 %v1104
      %1330 = vmatprep.subr.bf16.mxu0 %v1101
      %1331 = vmatpush2.bf16.msra.mxu0 %v1100
      %1332 = vmatprep.subr.bf16.mxu0 %v1097
      %1333 = vmatpush2.bf16.msra.mxu0 %v1096
      %1334 = vmatprep.subr.bf16.mxu0 %v1093
      %1335 = vmatpush2.bf16.msra.mxu0 %v1092
      %1336 = vmatprep.subr.bf16.mxu0 %v1089
      %1337 = vmatpush2.bf16.msra.mxu0 %v1088
      %1338 = vmatprep.subr.bf16.mxu0 %v1085
      %1339 = vmatpush2.bf16.msra.mxu0 %v1084
      %1340 = vmatprep.mubr.bf16.mxu0 %v623
      %1341 = vmatmul.mubr.bf16.gmra.mxu0 %v611
      %v1342 = vpop.f32.mrf.mxu0
      %v1343 = vadd.f32 0.0, %v1342
      %v1344 = vpop.f32.mrf.mxu0
      %v1345 = vadd.f32 0.0, %v1344
      %v1346 = vpop.f32.mrf.mxu0
      %v1347 = vadd.f32 0.0, %v1346
      %v1348 = vpop.f32.mrf.mxu0
      %v1349 = vadd.f32 0.0, %v1348
      %1350 = vmatprep.mubr.bf16.mxu0 %v653
      %1351 = vmatmul.mubr.bf16.gmra.mxu0 %v650
      %v1352 = vpop.f32.mrf.mxu0
      %v1353 = vadd.f32 0.0, %v1352
      %v1354 = vpop.f32.mrf.mxu0
      %v1355 = vadd.f32 0.0, %v1354
      %v1356 = vpop.f32.mrf.mxu0
      %v1357 = vpop.f32.mrf.mxu0
      %1358 = vdwg.mxu0
      %1359 = vmatprep.subr.bf16.mxu0 %v1145
      %1360 = vmatpush1.bf16.msra.mxu0 %v1144
      %1361 = vmatprep.subr.bf16.mxu0 %v1141
      %1362 = vmatpush1.bf16.msra.mxu0 %v1140
      %1363 = vmatprep.subr.bf16.mxu0 %v1137
      %1364 = vmatpush1.bf16.msra.mxu0 %v1136
      %1365 = vmatprep.subr.bf16.mxu0 %v1133
      %1366 = vmatpush1.bf16.msra.mxu0 %v1132
      %1367 = vmatprep.subr.bf16.mxu0 %v1129
      %1368 = vmatpush1.bf16.msra.mxu0 %v1128
      %1369 = vmatprep.subr.bf16.mxu0 %v1125
      %1370 = vmatpush1.bf16.msra.mxu0 %v1124
      %1371 = vmatprep.subr.bf16.mxu0 %v1121
      %1372 = vmatpush1.bf16.msra.mxu0 %v1120
      %1373 = vmatprep.subr.bf16.mxu0 %v1117
      %1374 = vmatpush1.bf16.msra.mxu0 %v1116
      %1375 = vmatprep.subr.bf16.mxu0 %v1177
      %1376 = vmatpush2.bf16.msra.mxu0 %v1176
      %1377 = vmatprep.subr.bf16.mxu0 %v1173
      %1378 = vmatpush2.bf16.msra.mxu0 %v1172
      %1379 = vmatprep.subr.bf16.mxu0 %v1169
      %1380 = vmatpush2.bf16.msra.mxu0 %v1168
      %1381 = vmatprep.subr.bf16.mxu0 %v1165
      %1382 = vmatpush2.bf16.msra.mxu0 %v1164
      %1383 = vmatprep.subr.bf16.mxu0 %v1161
      %1384 = vmatpush2.bf16.msra.mxu0 %v1160
      %1385 = vmatprep.subr.bf16.mxu0 %v1157
      %1386 = vmatpush2.bf16.msra.mxu0 %v1156
      %1387 = vmatprep.subr.bf16.mxu0 %v1153
      %1388 = vmatpush2.bf16.msra.mxu0 %v1152
      %1389 = vmatprep.subr.bf16.mxu0 %v1149
      %1390 = vmatpush2.bf16.msra.mxu0 %v1148
      %1391 = vmatprep.mubr.bf16.mxu0 %v647
      %1392 = vmatmul.mubr.bf16.gmra.mxu0 %v635
      %v1393 = vpop.f32.mrf.mxu0
      %v1394 = vadd.f32 %v1343, %v1393
      %v1395 = vpop.f32.mrf.mxu0
      %v1396 = vadd.f32 %v1345, %v1395
      %v1397 = vpop.f32.mrf.mxu0
      %v1398 = vadd.f32 %v1347, %v1397
      %v1399 = vpop.f32.mrf.mxu0
      %v1400 = vadd.f32 %v1349, %v1399
      %1401 = vmatprep.mubr.bf16.mxu0 %v659
      %1402 = vmatmul.mubr.bf16.gmra.mxu0 %v656
      %v1403 = vpop.f32.mrf.mxu0
      %v1404 = vadd.f32 %v1353, %v1403
      %v1405 = vpop.f32.mrf.mxu0
      %v1406 = vadd.f32 %v1355, %v1405
      %v1407 = vpop.f32.mrf.mxu0
      %v1408 = vpop.f32.mrf.mxu0
      %1409 = vdwg.mxu0
      %1410 = vmatprep.subr.bf16.mxu0 %v1083
      %1411 = vmatpush1.bf16.msra.mxu0 %v1082
      %1412 = vmatprep.subr.bf16.mxu0 %v1079
      %1413 = vmatpush1.bf16.msra.mxu0 %v1078
      %1414 = vmatprep.subr.bf16.mxu0 %v1075
      %1415 = vmatpush1.bf16.msra.mxu0 %v1074
      %1416 = vmatprep.subr.bf16.mxu0 %v1071
      %1417 = vmatpush1.bf16.msra.mxu0 %v1070
      %1418 = vmatprep.subr.bf16.mxu0 %v1067
      %1419 = vmatpush1.bf16.msra.mxu0 %v1066
      %1420 = vmatprep.subr.bf16.mxu0 %v1063
      %1421 = vmatpush1.bf16.msra.mxu0 %v1062
      %1422 = vmatprep.subr.bf16.mxu0 %v1059
      %1423 = vmatpush1.bf16.msra.mxu0 %v1058
      %1424 = vmatprep.subr.bf16.mxu0 %v1055
      %1425 = vmatpush1.bf16.msra.mxu0 %v1054
      %1426 = vmatprep.subr.bf16.mxu0 %v1115
      %1427 = vmatpush2.bf16.msra.mxu0 %v1114
      %1428 = vmatprep.subr.bf16.mxu0 %v1111
      %1429 = vmatpush2.bf16.msra.mxu0 %v1110
      %1430 = vmatprep.subr.bf16.mxu0 %v1107
      %1431 = vmatpush2.bf16.msra.mxu0 %v1106
      %1432 = vmatprep.subr.bf16.mxu0 %v1103
      %1433 = vmatpush2.bf16.msra.mxu0 %v1102
      %1434 = vmatprep.subr.bf16.mxu0 %v1099
      %1435 = vmatpush2.bf16.msra.mxu0 %v1098
      %1436 = vmatprep.subr.bf16.mxu0 %v1095
      %1437 = vmatpush2.bf16.msra.mxu0 %v1094
      %1438 = vmatprep.subr.bf16.mxu0 %v1091
      %1439 = vmatpush2.bf16.msra.mxu0 %v1090
      %1440 = vmatprep.subr.bf16.mxu0 %v1087
      %1441 = vmatpush2.bf16.msra.mxu0 %v1086
      %1442 = vmatprep.mubr.bf16.mxu0 %v623
      %1443 = vmatmul.mubr.bf16.gmra.mxu0 %v611
      %v1444 = vpop.f32.mrf.mxu0
      %v1445 = vadd.f32 0.0, %v1444
      %v1446 = vpop.f32.mrf.mxu0
      %v1447 = vadd.f32 0.0, %v1446
      %v1448 = vpop.f32.mrf.mxu0
      %v1449 = vadd.f32 0.0, %v1448
      %v1450 = vpop.f32.mrf.mxu0
      %v1451 = vadd.f32 0.0, %v1450
      %1452 = vmatprep.mubr.bf16.mxu0 %v653
      %1453 = vmatmul.mubr.bf16.gmra.mxu0 %v650
      %v1454 = vpop.f32.mrf.mxu0
      %v1455 = vadd.f32 0.0, %v1454
      %v1456 = vpop.f32.mrf.mxu0
      %v1457 = vadd.f32 0.0, %v1456
      %v1458 = vpop.f32.mrf.mxu0
      %v1459 = vpop.f32.mrf.mxu0
      %1460 = vdwg.mxu0
      %1461 = vmatprep.subr.bf16.mxu0 %v1147
      %1462 = vmatpush1.bf16.msra.mxu0 %v1146
      %1463 = vmatprep.subr.bf16.mxu0 %v1143
      %1464 = vmatpush1.bf16.msra.mxu0 %v1142
      %1465 = vmatprep.subr.bf16.mxu0 %v1139
      %1466 = vmatpush1.bf16.msra.mxu0 %v1138
      %1467 = vmatprep.subr.bf16.mxu0 %v1135
      %1468 = vmatpush1.bf16.msra.mxu0 %v1134
      %1469 = vmatprep.subr.bf16.mxu0 %v1131
      %1470 = vmatpush1.bf16.msra.mxu0 %v1130
      %1471 = vmatprep.subr.bf16.mxu0 %v1127
      %1472 = vmatpush1.bf16.msra.mxu0 %v1126
      %1473 = vmatprep.subr.bf16.mxu0 %v1123
      %1474 = vmatpush1.bf16.msra.mxu0 %v1122
      %1475 = vmatprep.subr.bf16.mxu0 %v1119
      %1476 = vmatpush1.bf16.msra.mxu0 %v1118
      %1477 = vmatprep.subr.bf16.mxu0 %v1179
      %1478 = vmatpush2.bf16.msra.mxu0 %v1178
      %1479 = vmatprep.subr.bf16.mxu0 %v1175
      %1480 = vmatpush2.bf16.msra.mxu0 %v1174
      %1481 = vmatprep.subr.bf16.mxu0 %v1171
      %1482 = vmatpush2.bf16.msra.mxu0 %v1170
      %1483 = vmatprep.subr.bf16.mxu0 %v1167
      %1484 = vmatpush2.bf16.msra.mxu0 %v1166
      %1485 = vmatprep.subr.bf16.mxu0 %v1163
      %1486 = vmatpush2.bf16.msra.mxu0 %v1162
      %1487 = vmatprep.subr.bf16.mxu0 %v1159
      %1488 = vmatpush2.bf16.msra.mxu0 %v1158
      %1489 = vmatprep.subr.bf16.mxu0 %v1155
      %1490 = vmatpush2.bf16.msra.mxu0 %v1154
      %1491 = vmatprep.subr.bf16.mxu0 %v1151
      %1492 = vmatpush2.bf16.msra.mxu0 %v1150
      %1493 = vmatprep.mubr.bf16.mxu0 %v647
      %1494 = vmatmul.mubr.bf16.gmra.mxu0 %v635
      %v1495 = vpop.f32.mrf.mxu0
      %v1496 = vadd.f32 %v1445, %v1495
      %v1497 = vpop.f32.mrf.mxu0
      %v1498 = vadd.f32 %v1447, %v1497
      %v1499 = vpop.f32.mrf.mxu0
      %v1500 = vadd.f32 %v1449, %v1499
      %v1501 = vpop.f32.mrf.mxu0
      %v1502 = vadd.f32 %v1451, %v1501
      %1503 = vmatprep.mubr.bf16.mxu0 %v659
      %1504 = vmatmul.mubr.bf16.gmra.mxu0 %v656
      %v1505 = vpop.f32.mrf.mxu0
      %v1506 = vadd.f32 %v1455, %v1505
      %v1507 = vpop.f32.mrf.mxu0
      %v1508 = vadd.f32 %v1457, %v1507
      %v1509 = vpop.f32.mrf.mxu0
      %v1510 = vpop.f32.mrf.mxu0
      %1511 = vdwg.mxu0
      %v1512 = vpack.c.b16 %v583, %v583
      %v1513 = vpack.c.b16 %v584, %v584
      %v1514 = vpack.c.b16 %v585, %v585
      %v1515 = vpack.c.b16 %v586, %v586
      %v1652 = vunpack.c.l.b16 %v310
      %v1653 = vunpack.c.h.b16 %v310
      %v1654 = vunpack.c.l.b16 %v311
      %v1655 = vunpack.c.h.b16 %v311
      %v1656 = vunpack.c.l.b16 %v312
      %v1657 = vunpack.c.h.b16 %v312
      %v1658 = vunpack.c.l.b16 %v313
      %v1659 = vunpack.c.h.b16 %v313
      %v1660 = vunpack.c.l.b16 %v314
      %v1661 = vunpack.c.h.b16 %v314
      %v1662 = vunpack.c.l.b16 %v315
      %v1663 = vunpack.c.h.b16 %v315
      %v1664 = vunpack.c.l.b16 %v316
      %v1665 = vunpack.c.h.b16 %v316
      %v1666 = vunpack.c.l.b16 %v317
      %v1667 = vunpack.c.h.b16 %v317
      %v1668 = vunpack.c.l.b16 %v318
      %v1669 = vunpack.c.h.b16 %v318
      %v1670 = vunpack.c.l.b16 %v319
      %v1671 = vunpack.c.h.b16 %v319
      %v1672 = vunpack.c.l.b16 %v320
      %v1673 = vunpack.c.h.b16 %v320
      %v1674 = vunpack.c.l.b16 %v321
      %v1675 = vunpack.c.h.b16 %v321
      %v1676 = vunpack.c.l.b16 %v322
      %v1677 = vunpack.c.h.b16 %v322
      %v1678 = vunpack.c.l.b16 %v323
      %v1679 = vunpack.c.h.b16 %v323
      %v1680 = vunpack.c.l.b16 %v324
      %v1681 = vunpack.c.h.b16 %v324
      %v1682 = vunpack.c.l.b16 %v325
      %v1683 = vunpack.c.h.b16 %v325
      %v1684 = vunpack.c.l.b16 %v326
      %v1685 = vunpack.c.h.b16 %v326
      %v1686 = vunpack.c.l.b16 %v327
      %v1687 = vunpack.c.h.b16 %v327
      %v1688 = vunpack.c.l.b16 %v328
      %v1689 = vunpack.c.h.b16 %v328
      %v1690 = vunpack.c.l.b16 %v329
      %v1691 = vunpack.c.h.b16 %v329
      %v1692 = vunpack.c.l.b16 %v330
      %v1693 = vunpack.c.h.b16 %v330
      %v1694 = vunpack.c.l.b16 %v331
      %v1695 = vunpack.c.h.b16 %v331
      %v1696 = vunpack.c.l.b16 %v332
      %v1697 = vunpack.c.h.b16 %v332
      %v1698 = vunpack.c.l.b16 %v333
      %v1699 = vunpack.c.h.b16 %v333
      %v1700 = vunpack.c.l.b16 %v334
      %v1701 = vunpack.c.h.b16 %v334
      %v1702 = vunpack.c.l.b16 %v335
      %v1703 = vunpack.c.h.b16 %v335
      %v1704 = vunpack.c.l.b16 %v336
      %v1705 = vunpack.c.h.b16 %v336
      %v1706 = vunpack.c.l.b16 %v337
      %v1707 = vunpack.c.h.b16 %v337
      %v1708 = vunpack.c.l.b16 %v338
      %v1709 = vunpack.c.h.b16 %v338
      %v1710 = vunpack.c.l.b16 %v339
      %v1711 = vunpack.c.h.b16 %v339
      %v1712 = vunpack.c.l.b16 %v340
      %v1713 = vunpack.c.h.b16 %v340
      %v1714 = vunpack.c.l.b16 %v341
      %v1715 = vunpack.c.h.b16 %v341
      %v1716 = vunpack.c.l.b16 %v342
      %v1717 = vunpack.c.h.b16 %v342
      %v1718 = vunpack.c.l.b16 %v343
      %v1719 = vunpack.c.h.b16 %v343
      %v1720 = vunpack.c.l.b16 %v344
      %v1721 = vunpack.c.h.b16 %v344
      %v1722 = vunpack.c.l.b16 %v345
      %v1723 = vunpack.c.h.b16 %v345
      %v1724 = vunpack.c.l.b16 %v346
      %v1725 = vunpack.c.h.b16 %v346
      %v1726 = vunpack.c.l.b16 %v347
      %v1727 = vunpack.c.h.b16 %v347
      %v1728 = vunpack.c.l.b16 %v348
      %v1729 = vunpack.c.h.b16 %v348
      %v1730 = vunpack.c.l.b16 %v349
      %v1731 = vunpack.c.h.b16 %v349
      %v1732 = vunpack.c.l.b16 %v350
      %v1733 = vunpack.c.h.b16 %v350
      %v1734 = vunpack.c.l.b16 %v351
      %v1735 = vunpack.c.h.b16 %v351
      %v1736 = vunpack.c.l.b16 %v352
      %v1737 = vunpack.c.h.b16 %v352
      %v1738 = vunpack.c.l.b16 %v353
      %v1739 = vunpack.c.h.b16 %v353
      %v1740 = vunpack.c.l.b16 %v354
      %v1741 = vunpack.c.h.b16 %v354
      %v1742 = vunpack.c.l.b16 %v355
      %v1743 = vunpack.c.h.b16 %v355
      %v1744 = vunpack.c.l.b16 %v356
      %v1745 = vunpack.c.h.b16 %v356
      %v1746 = vunpack.c.l.b16 %v357
      %v1747 = vunpack.c.h.b16 %v357
      %v1748 = vunpack.c.l.b16 %v358
      %v1749 = vunpack.c.h.b16 %v358
      %v1750 = vunpack.c.l.b16 %v359
      %v1751 = vunpack.c.h.b16 %v359
      %v1752 = vunpack.c.l.b16 %v360
      %v1753 = vunpack.c.h.b16 %v360
      %v1754 = vunpack.c.l.b16 %v361
      %v1755 = vunpack.c.h.b16 %v361
      %v1756 = vunpack.c.l.b16 %v362
      %v1757 = vunpack.c.h.b16 %v362
      %v1758 = vunpack.c.l.b16 %v363
      %v1759 = vunpack.c.h.b16 %v363
      %v1760 = vunpack.c.l.b16 %v364
      %v1761 = vunpack.c.h.b16 %v364
      %v1762 = vunpack.c.l.b16 %v365
      %v1763 = vunpack.c.h.b16 %v365
      %v1764 = vunpack.c.l.b16 %v366
      %v1765 = vunpack.c.h.b16 %v366
      %v1766 = vunpack.c.l.b16 %v367
      %v1767 = vunpack.c.h.b16 %v367
      %v1768 = vunpack.c.l.b16 %v368
      %v1769 = vunpack.c.h.b16 %v368
      %v1770 = vunpack.c.l.b16 %v369
      %v1771 = vunpack.c.h.b16 %v369
      %v1772 = vunpack.c.l.b16 %v370
      %v1773 = vunpack.c.h.b16 %v370
      %v1774 = vunpack.c.l.b16 %v371
      %v1775 = vunpack.c.h.b16 %v371
      %v1776 = vunpack.c.l.b16 %v372
      %v1777 = vunpack.c.h.b16 %v372
      %v1778 = vunpack.c.l.b16 %v373
      %v1779 = vunpack.c.h.b16 %v373
      %v1780 = vunpack.c.l.b16 %v374
      %v1781 = vunpack.c.h.b16 %v374
      %v1782 = vunpack.c.l.b16 %v375
      %v1783 = vunpack.c.h.b16 %v375
      %v1784 = vunpack.c.l.b16 %v376
      %v1785 = vunpack.c.h.b16 %v376
      %v1786 = vunpack.c.l.b16 %v377
      %v1787 = vunpack.c.h.b16 %v377
      %v1788 = vunpack.c.l.b16 %v378
      %v1789 = vunpack.c.h.b16 %v378
      %v1790 = vunpack.c.l.b16 %v379
      %v1791 = vunpack.c.h.b16 %v379
      %v1792 = vunpack.c.l.b16 %v380
      %v1793 = vunpack.c.h.b16 %v380
      %v1794 = vunpack.c.l.b16 %v381
      %v1795 = vunpack.c.h.b16 %v381
      %v1796 = vunpack.c.l.b16 %v382
      %v1797 = vunpack.c.h.b16 %v382
      %v1798 = vunpack.c.l.b16 %v383
      %v1799 = vunpack.c.h.b16 %v383
      %v1800 = vunpack.c.l.b16 %v384
      %v1801 = vunpack.c.h.b16 %v384
      %v1802 = vunpack.c.l.b16 %v385
      %v1803 = vunpack.c.h.b16 %v385
      %v1804 = vunpack.c.l.b16 %v386
      %v1805 = vunpack.c.h.b16 %v386
      %v1806 = vunpack.c.l.b16 %v387
      %v1807 = vunpack.c.h.b16 %v387
      %v1808 = vunpack.c.l.b16 %v388
      %v1809 = vunpack.c.h.b16 %v388
      %v1810 = vunpack.c.l.b16 %v389
      %v1811 = vunpack.c.h.b16 %v389
      %v1812 = vunpack.c.l.b16 %v390
      %v1813 = vunpack.c.h.b16 %v390
      %v1814 = vunpack.c.l.b16 %v391
      %v1815 = vunpack.c.h.b16 %v391
      %v1816 = vunpack.c.l.b16 %v392
      %v1817 = vunpack.c.h.b16 %v392
      %v1818 = vunpack.c.l.b16 %v393
      %v1819 = vunpack.c.h.b16 %v393
      %v1820 = vunpack.c.l.b16 %v394
      %v1821 = vunpack.c.h.b16 %v394
      %v1822 = vunpack.c.l.b16 %v395
      %v1823 = vunpack.c.h.b16 %v395
      %v1824 = vunpack.c.l.b16 %v396
      %v1825 = vunpack.c.h.b16 %v396
      %v1826 = vunpack.c.l.b16 %v397
      %v1827 = vunpack.c.h.b16 %v397
      %v1828 = vunpack.c.l.b16 %v398
      %v1829 = vunpack.c.h.b16 %v398
      %v1830 = vunpack.c.l.b16 %v399
      %v1831 = vunpack.c.h.b16 %v399
      %v1832 = vunpack.c.l.b16 %v400
      %v1833 = vunpack.c.h.b16 %v400
      %v1834 = vunpack.c.l.b16 %v401
      %v1835 = vunpack.c.h.b16 %v401
      %v1836 = vunpack.c.l.b16 %v402
      %v1837 = vunpack.c.h.b16 %v402
      %v1838 = vunpack.c.l.b16 %v403
      %v1839 = vunpack.c.h.b16 %v403
      %v1840 = vunpack.c.l.b16 %v404
      %v1841 = vunpack.c.h.b16 %v404
      %v1842 = vunpack.c.l.b16 %v405
      %v1843 = vunpack.c.h.b16 %v405
      %v1844 = vunpack.c.l.b16 %v406
      %v1845 = vunpack.c.h.b16 %v406
      %v1846 = vunpack.c.l.b16 %v407
      %v1847 = vunpack.c.h.b16 %v407
      %v1848 = vunpack.c.l.b16 %v408
      %v1849 = vunpack.c.h.b16 %v408
      %v1850 = vunpack.c.l.b16 %v409
      %v1851 = vunpack.c.h.b16 %v409
      %v1852 = vunpack.c.l.b16 %v410
      %v1853 = vunpack.c.h.b16 %v410
      %v1854 = vunpack.c.l.b16 %v411
      %v1855 = vunpack.c.h.b16 %v411
      %v1856 = vunpack.c.l.b16 %v412
      %v1857 = vunpack.c.h.b16 %v412
      %v1858 = vunpack.c.l.b16 %v413
      %v1859 = vunpack.c.h.b16 %v413
      %v1860 = vunpack.c.l.b16 %v414
      %v1861 = vunpack.c.h.b16 %v414
      %v1862 = vunpack.c.l.b16 %v415
      %v1863 = vunpack.c.h.b16 %v415
      %v1864 = vunpack.c.l.b16 %v416
      %v1865 = vunpack.c.h.b16 %v416
      %v1866 = vunpack.c.l.b16 %v417
      %v1867 = vunpack.c.h.b16 %v417
      %v1868 = vunpack.c.l.b16 %v418
      %v1869 = vunpack.c.h.b16 %v418
      %v1870 = vunpack.c.l.b16 %v419
      %v1871 = vunpack.c.h.b16 %v419
      %v1872 = vunpack.c.l.b16 %v420
      %v1873 = vunpack.c.h.b16 %v420
      %v1874 = vunpack.c.l.b16 %v421
      %v1875 = vunpack.c.h.b16 %v421
      %v1876 = vunpack.c.l.b16 %v422
      %v1877 = vunpack.c.h.b16 %v422
      %v1878 = vunpack.c.l.b16 %v423
      %v1879 = vunpack.c.h.b16 %v423
      %v1880 = vunpack.c.l.b16 %v424
      %v1881 = vunpack.c.h.b16 %v424
      %v1882 = vunpack.c.l.b16 %v425
      %v1883 = vunpack.c.h.b16 %v425
      %v1884 = vunpack.c.l.b16 %v426
      %v1885 = vunpack.c.h.b16 %v426
      %v1886 = vunpack.c.l.b16 %v427
      %v1887 = vunpack.c.h.b16 %v427
      %v1888 = vunpack.c.l.b16 %v428
      %v1889 = vunpack.c.h.b16 %v428
      %v1890 = vunpack.c.l.b16 %v429
      %v1891 = vunpack.c.h.b16 %v429
      %v1892 = vunpack.c.l.b16 %v430
      %v1893 = vunpack.c.h.b16 %v430
      %v1894 = vunpack.c.l.b16 %v431
      %v1895 = vunpack.c.h.b16 %v431
      %v1896 = vunpack.c.l.b16 %v432
      %v1897 = vunpack.c.h.b16 %v432
      %v1898 = vunpack.c.l.b16 %v433
      %v1899 = vunpack.c.h.b16 %v433
      %v1900 = vunpack.c.l.b16 %v434
      %v1901 = vunpack.c.h.b16 %v434
      %v1902 = vunpack.c.l.b16 %v435
      %v1903 = vunpack.c.h.b16 %v435
      %v1904 = vunpack.c.l.b16 %v436
      %v1905 = vunpack.c.h.b16 %v436
      %v1906 = vunpack.c.l.b16 %v437
      %v1907 = vunpack.c.h.b16 %v437
      %v1908 = vpack.c.b16 %v1656, %v1652
      %v1909 = vpack.c.b16 %v1657, %v1653
      %v1910 = vpack.c.b16 %v1658, %v1654
      %v1911 = vpack.c.b16 %v1659, %v1655
      %v1912 = vpack.c.b16 %v1664, %v1660
      %v1913 = vpack.c.b16 %v1665, %v1661
      %v1914 = vpack.c.b16 %v1666, %v1662
      %v1915 = vpack.c.b16 %v1667, %v1663
      %v1916 = vpack.c.b16 %v1672, %v1668
      %v1917 = vpack.c.b16 %v1673, %v1669
      %v1918 = vpack.c.b16 %v1674, %v1670
      %v1919 = vpack.c.b16 %v1675, %v1671
      %v1920 = vpack.c.b16 %v1680, %v1676
      %v1921 = vpack.c.b16 %v1681, %v1677
      %v1922 = vpack.c.b16 %v1682, %v1678
      %v1923 = vpack.c.b16 %v1683, %v1679
      %v1924 = vpack.c.b16 %v1688, %v1684
      %v1925 = vpack.c.b16 %v1689, %v1685
      %v1926 = vpack.c.b16 %v1690, %v1686
      %v1927 = vpack.c.b16 %v1691, %v1687
      %v1928 = vpack.c.b16 %v1696, %v1692
      %v1929 = vpack.c.b16 %v1697, %v1693
      %v1930 = vpack.c.b16 %v1698, %v1694
      %v1931 = vpack.c.b16 %v1699, %v1695
      %v1932 = vpack.c.b16 %v1704, %v1700
      %v1933 = vpack.c.b16 %v1705, %v1701
      %v1934 = vpack.c.b16 %v1706, %v1702
      %v1935 = vpack.c.b16 %v1707, %v1703
      %v1936 = vpack.c.b16 %v1712, %v1708
      %v1937 = vpack.c.b16 %v1713, %v1709
      %v1938 = vpack.c.b16 %v1714, %v1710
      %v1939 = vpack.c.b16 %v1715, %v1711
      %v1940 = vpack.c.b16 %v1720, %v1716
      %v1941 = vpack.c.b16 %v1721, %v1717
      %v1942 = vpack.c.b16 %v1722, %v1718
      %v1943 = vpack.c.b16 %v1723, %v1719
      %v1944 = vpack.c.b16 %v1728, %v1724
      %v1945 = vpack.c.b16 %v1729, %v1725
      %v1946 = vpack.c.b16 %v1730, %v1726
      %v1947 = vpack.c.b16 %v1731, %v1727
      %v1948 = vpack.c.b16 %v1736, %v1732
      %v1949 = vpack.c.b16 %v1737, %v1733
      %v1950 = vpack.c.b16 %v1738, %v1734
      %v1951 = vpack.c.b16 %v1739, %v1735
      %v1952 = vpack.c.b16 %v1744, %v1740
      %v1953 = vpack.c.b16 %v1745, %v1741
      %v1954 = vpack.c.b16 %v1746, %v1742
      %v1955 = vpack.c.b16 %v1747, %v1743
      %v1956 = vpack.c.b16 %v1752, %v1748
      %v1957 = vpack.c.b16 %v1753, %v1749
      %v1958 = vpack.c.b16 %v1754, %v1750
      %v1959 = vpack.c.b16 %v1755, %v1751
      %v1960 = vpack.c.b16 %v1760, %v1756
      %v1961 = vpack.c.b16 %v1761, %v1757
      %v1962 = vpack.c.b16 %v1762, %v1758
      %v1963 = vpack.c.b16 %v1763, %v1759
      %v1964 = vpack.c.b16 %v1768, %v1764
      %v1965 = vpack.c.b16 %v1769, %v1765
      %v1966 = vpack.c.b16 %v1770, %v1766
      %v1967 = vpack.c.b16 %v1771, %v1767
      %v1968 = vpack.c.b16 %v1776, %v1772
      %v1969 = vpack.c.b16 %v1777, %v1773
      %v1970 = vpack.c.b16 %v1778, %v1774
      %v1971 = vpack.c.b16 %v1779, %v1775
      %v1972 = vpack.c.b16 %v1784, %v1780
      %v1973 = vpack.c.b16 %v1785, %v1781
      %v1974 = vpack.c.b16 %v1786, %v1782
      %v1975 = vpack.c.b16 %v1787, %v1783
      %v1976 = vpack.c.b16 %v1792, %v1788
      %v1977 = vpack.c.b16 %v1793, %v1789
      %v1978 = vpack.c.b16 %v1794, %v1790
      %v1979 = vpack.c.b16 %v1795, %v1791
      %v1980 = vpack.c.b16 %v1800, %v1796
      %v1981 = vpack.c.b16 %v1801, %v1797
      %v1982 = vpack.c.b16 %v1802, %v1798
      %v1983 = vpack.c.b16 %v1803, %v1799
      %v1984 = vpack.c.b16 %v1808, %v1804
      %v1985 = vpack.c.b16 %v1809, %v1805
      %v1986 = vpack.c.b16 %v1810, %v1806
      %v1987 = vpack.c.b16 %v1811, %v1807
      %v1988 = vpack.c.b16 %v1816, %v1812
      %v1989 = vpack.c.b16 %v1817, %v1813
      %v1990 = vpack.c.b16 %v1818, %v1814
      %v1991 = vpack.c.b16 %v1819, %v1815
      %v1992 = vpack.c.b16 %v1824, %v1820
      %v1993 = vpack.c.b16 %v1825, %v1821
      %v1994 = vpack.c.b16 %v1826, %v1822
      %v1995 = vpack.c.b16 %v1827, %v1823
      %v1996 = vpack.c.b16 %v1832, %v1828
      %v1997 = vpack.c.b16 %v1833, %v1829
      %v1998 = vpack.c.b16 %v1834, %v1830
      %v1999 = vpack.c.b16 %v1835, %v1831
      %v2000 = vpack.c.b16 %v1840, %v1836
      %v2001 = vpack.c.b16 %v1841, %v1837
      %v2002 = vpack.c.b16 %v1842, %v1838
      %v2003 = vpack.c.b16 %v1843, %v1839
      %v2004 = vpack.c.b16 %v1848, %v1844
      %v2005 = vpack.c.b16 %v1849, %v1845
      %v2006 = vpack.c.b16 %v1850, %v1846
      %v2007 = vpack.c.b16 %v1851, %v1847
      %v2008 = vpack.c.b16 %v1856, %v1852
      %v2009 = vpack.c.b16 %v1857, %v1853
      %v2010 = vpack.c.b16 %v1858, %v1854
      %v2011 = vpack.c.b16 %v1859, %v1855
      %v2012 = vpack.c.b16 %v1864, %v1860
      %v2013 = vpack.c.b16 %v1865, %v1861
      %v2014 = vpack.c.b16 %v1866, %v1862
      %v2015 = vpack.c.b16 %v1867, %v1863
      %v2016 = vpack.c.b16 %v1872, %v1868
      %v2017 = vpack.c.b16 %v1873, %v1869
      %v2018 = vpack.c.b16 %v1874, %v1870
      %v2019 = vpack.c.b16 %v1875, %v1871
      %v2020 = vpack.c.b16 %v1880, %v1876
      %v2021 = vpack.c.b16 %v1881, %v1877
      %v2022 = vpack.c.b16 %v1882, %v1878
      %v2023 = vpack.c.b16 %v1883, %v1879
      %v2024 = vpack.c.b16 %v1888, %v1884
      %v2025 = vpack.c.b16 %v1889, %v1885
      %v2026 = vpack.c.b16 %v1890, %v1886
      %v2027 = vpack.c.b16 %v1891, %v1887
      %v2028 = vpack.c.b16 %v1896, %v1892
      %v2029 = vpack.c.b16 %v1897, %v1893
      %v2030 = vpack.c.b16 %v1898, %v1894
      %v2031 = vpack.c.b16 %v1899, %v1895
      %v2032 = vpack.c.b16 %v1904, %v1900
      %v2033 = vpack.c.b16 %v1905, %v1901
      %v2034 = vpack.c.b16 %v1906, %v1902
      %v2035 = vpack.c.b16 %v1907, %v1903
      %2164 = vmatprep.subr.bf16.mxu0 %v1937
      %2165 = vmatpush1.bf16.msra.mxu0 %v1936
      %2166 = vmatprep.subr.bf16.mxu0 %v1933
      %2167 = vmatpush1.bf16.msra.mxu0 %v1932
      %2168 = vmatprep.subr.bf16.mxu0 %v1929
      %2169 = vmatpush1.bf16.msra.mxu0 %v1928
      %2170 = vmatprep.subr.bf16.mxu0 %v1925
      %2171 = vmatpush1.bf16.msra.mxu0 %v1924
      %2172 = vmatprep.subr.bf16.mxu0 %v1921
      %2173 = vmatpush1.bf16.msra.mxu0 %v1920
      %2174 = vmatprep.subr.bf16.mxu0 %v1917
      %2175 = vmatpush1.bf16.msra.mxu0 %v1916
      %2176 = vmatprep.subr.bf16.mxu0 %v1913
      %2177 = vmatpush1.bf16.msra.mxu0 %v1912
      %2178 = vmatprep.subr.bf16.mxu0 %v1909
      %2179 = vmatpush1.bf16.msra.mxu0 %v1908
      %2180 = vmatprep.subr.bf16.mxu0 %v1969
      %2181 = vmatpush2.bf16.msra.mxu0 %v1968
      %2182 = vmatprep.subr.bf16.mxu0 %v1965
      %2183 = vmatpush2.bf16.msra.mxu0 %v1964
      %2184 = vmatprep.subr.bf16.mxu0 %v1961
      %2185 = vmatpush2.bf16.msra.mxu0 %v1960
      %2186 = vmatprep.subr.bf16.mxu0 %v1957
      %2187 = vmatpush2.bf16.msra.mxu0 %v1956
      %2188 = vmatprep.subr.bf16.mxu0 %v1953
      %2189 = vmatpush2.bf16.msra.mxu0 %v1952
      %2190 = vmatprep.subr.bf16.mxu0 %v1949
      %2191 = vmatpush2.bf16.msra.mxu0 %v1948
      %2192 = vmatprep.subr.bf16.mxu0 %v1945
      %2193 = vmatpush2.bf16.msra.mxu0 %v1944
      %2194 = vmatprep.subr.bf16.mxu0 %v1941
      %2195 = vmatpush2.bf16.msra.mxu0 %v1940
      %2196 = vmatprep.mubr.bf16.mxu0 %v592
      %2197 = vmatmul.mubr.bf16.gmra.mxu0 %v591
      %v2198 = vpop.f32.mrf.mxu0
      %v2199 = vadd.f32 %v1394, %v2198
      %v2200 = vpop.f32.mrf.mxu0
      %v2201 = vadd.f32 %v1396, %v2200
      %v2202 = vpop.f32.mrf.mxu0
      %v2203 = vadd.f32 %v1398, %v2202
      %v2204 = vpop.f32.mrf.mxu0
      %v2205 = vadd.f32 %v1400, %v2204
      %2206 = vmatprep.mubr.bf16.mxu0 %v1513
      %2207 = vmatmul.mubr.bf16.gmra.mxu0 %v1512
      %v2208 = vpop.f32.mrf.mxu0
      %v2209 = vadd.f32 %v1404, %v2208
      %v2210 = vpop.f32.mrf.mxu0
      %v2211 = vadd.f32 %v1406, %v2210
      %v2212 = vpop.f32.mrf.mxu0
      %v2213 = vpop.f32.mrf.mxu0
      %2214 = vdwg.mxu0
      %2215 = vmatprep.subr.bf16.mxu0 %v2001
      %2216 = vmatpush1.bf16.msra.mxu0 %v2000
      %2217 = vmatprep.subr.bf16.mxu0 %v1997
      %2218 = vmatpush1.bf16.msra.mxu0 %v1996
      %2219 = vmatprep.subr.bf16.mxu0 %v1993
      %2220 = vmatpush1.bf16.msra.mxu0 %v1992
      %2221 = vmatprep.subr.bf16.mxu0 %v1989
      %2222 = vmatpush1.bf16.msra.mxu0 %v1988
      %2223 = vmatprep.subr.bf16.mxu0 %v1985
      %2224 = vmatpush1.bf16.msra.mxu0 %v1984
      %2225 = vmatprep.subr.bf16.mxu0 %v1981
      %2226 = vmatpush1.bf16.msra.mxu0 %v1980
      %2227 = vmatprep.subr.bf16.mxu0 %v1977
      %2228 = vmatpush1.bf16.msra.mxu0 %v1976
      %2229 = vmatprep.subr.bf16.mxu0 %v1973
      %2230 = vmatpush1.bf16.msra.mxu0 %v1972
      %2231 = vmatprep.subr.bf16.mxu0 %v2033
      %2232 = vmatpush2.bf16.msra.mxu0 %v2032
      %2233 = vmatprep.subr.bf16.mxu0 %v2029
      %2234 = vmatpush2.bf16.msra.mxu0 %v2028
      %2235 = vmatprep.subr.bf16.mxu0 %v2025
      %2236 = vmatpush2.bf16.msra.mxu0 %v2024
      %2237 = vmatprep.subr.bf16.mxu0 %v2021
      %2238 = vmatpush2.bf16.msra.mxu0 %v2020
      %2239 = vmatprep.subr.bf16.mxu0 %v2017
      %2240 = vmatpush2.bf16.msra.mxu0 %v2016
      %2241 = vmatprep.subr.bf16.mxu0 %v2013
      %2242 = vmatpush2.bf16.msra.mxu0 %v2012
      %2243 = vmatprep.subr.bf16.mxu0 %v2009
      %2244 = vmatpush2.bf16.msra.mxu0 %v2008
      %2245 = vmatprep.subr.bf16.mxu0 %v2005
      %2246 = vmatpush2.bf16.msra.mxu0 %v2004
      %2247 = vmatprep.mubr.bf16.mxu0 %v594
      %2248 = vmatmul.mubr.bf16.gmra.mxu0 %v593
      %v2249 = vpop.f32.mrf.mxu0
      %v2250 = vadd.f32 %v2199, %v2249
      %v2251 = vpop.f32.mrf.mxu0
      %v2252 = vadd.f32 %v2201, %v2251
      %v2253 = vpop.f32.mrf.mxu0
      %v2254 = vadd.f32 %v2203, %v2253
      %v2255 = vpop.f32.mrf.mxu0
      %v2256 = vadd.f32 %v2205, %v2255
      %2257 = vmatprep.mubr.bf16.mxu0 %v1515
      %2258 = vmatmul.mubr.bf16.gmra.mxu0 %v1514
      %v2259 = vpop.f32.mrf.mxu0
      %v2260 = vadd.f32 %v2209, %v2259
      %v2261 = vpop.f32.mrf.mxu0
      %v2262 = vadd.f32 %v2211, %v2261
      %v2263 = vpop.f32.mrf.mxu0
      %v2264 = vpop.f32.mrf.mxu0
      %2265 = vdwg.mxu0
      %2266 = vmatprep.subr.bf16.mxu0 %v1939
      %2267 = vmatpush1.bf16.msra.mxu0 %v1938
      %2268 = vmatprep.subr.bf16.mxu0 %v1935
      %2269 = vmatpush1.bf16.msra.mxu0 %v1934
      %2270 = vmatprep.subr.bf16.mxu0 %v1931
      %2271 = vmatpush1.bf16.msra.mxu0 %v1930
      %2272 = vmatprep.subr.bf16.mxu0 %v1927
      %2273 = vmatpush1.bf16.msra.mxu0 %v1926
      %2274 = vmatprep.subr.bf16.mxu0 %v1923
      %2275 = vmatpush1.bf16.msra.mxu0 %v1922
      %2276 = vmatprep.subr.bf16.mxu0 %v1919
      %2277 = vmatpush1.bf16.msra.mxu0 %v1918
      %2278 = vmatprep.subr.bf16.mxu0 %v1915
      %2279 = vmatpush1.bf16.msra.mxu0 %v1914
      %2280 = vmatprep.subr.bf16.mxu0 %v1911
      %2281 = vmatpush1.bf16.msra.mxu0 %v1910
      %2282 = vmatprep.subr.bf16.mxu0 %v1971
      %2283 = vmatpush2.bf16.msra.mxu0 %v1970
      %2284 = vmatprep.subr.bf16.mxu0 %v1967
      %2285 = vmatpush2.bf16.msra.mxu0 %v1966
      %2286 = vmatprep.subr.bf16.mxu0 %v1963
      %2287 = vmatpush2.bf16.msra.mxu0 %v1962
      %2288 = vmatprep.subr.bf16.mxu0 %v1959
      %2289 = vmatpush2.bf16.msra.mxu0 %v1958
      %2290 = vmatprep.subr.bf16.mxu0 %v1955
      %2291 = vmatpush2.bf16.msra.mxu0 %v1954
      %2292 = vmatprep.subr.bf16.mxu0 %v1951
      %2293 = vmatpush2.bf16.msra.mxu0 %v1950
      %2294 = vmatprep.subr.bf16.mxu0 %v1947
      %2295 = vmatpush2.bf16.msra.mxu0 %v1946
      %2296 = vmatprep.subr.bf16.mxu0 %v1943
      %2297 = vmatpush2.bf16.msra.mxu0 %v1942
      %2298 = vmatprep.mubr.bf16.mxu0 %v592
      %2299 = vmatmul.mubr.bf16.gmra.mxu0 %v591
      %v2300 = vpop.f32.mrf.mxu0
      %v2301 = vadd.f32 %v1496, %v2300
      %v2302 = vpop.f32.mrf.mxu0
      %v2303 = vadd.f32 %v1498, %v2302
      %v2304 = vpop.f32.mrf.mxu0
      %v2305 = vadd.f32 %v1500, %v2304
      %v2306 = vpop.f32.mrf.mxu0
      %v2307 = vadd.f32 %v1502, %v2306
      %2308 = vmatprep.mubr.bf16.mxu0 %v1513
      %2309 = vmatmul.mubr.bf16.gmra.mxu0 %v1512
      %v2310 = vpop.f32.mrf.mxu0
      %v2311 = vadd.f32 %v1506, %v2310
      %v2312 = vpop.f32.mrf.mxu0
      %v2313 = vadd.f32 %v1508, %v2312
      %v2314 = vpop.f32.mrf.mxu0
      %v2315 = vpop.f32.mrf.mxu0
      %2316 = vdwg.mxu0
      %2317 = vmatprep.subr.bf16.mxu0 %v2003
      %2318 = vmatpush1.bf16.msra.mxu0 %v2002
      %2319 = vmatprep.subr.bf16.mxu0 %v1999
      %2320 = vmatpush1.bf16.msra.mxu0 %v1998
      %2321 = vmatprep.subr.bf16.mxu0 %v1995
      %2322 = vmatpush1.bf16.msra.mxu0 %v1994
      %2323 = vmatprep.subr.bf16.mxu0 %v1991
      %2324 = vmatpush1.bf16.msra.mxu0 %v1990
      %2325 = vmatprep.subr.bf16.mxu0 %v1987
      %2326 = vmatpush1.bf16.msra.mxu0 %v1986
      %2327 = vmatprep.subr.bf16.mxu0 %v1983
      %2328 = vmatpush1.bf16.msra.mxu0 %v1982
      %2329 = vmatprep.subr.bf16.mxu0 %v1979
      %2330 = vmatpush1.bf16.msra.mxu0 %v1978
      %2331 = vmatprep.subr.bf16.mxu0 %v1975
      %2332 = vmatpush1.bf16.msra.mxu0 %v1974
      %2333 = vmatprep.subr.bf16.mxu0 %v2035
      %2334 = vmatpush2.bf16.msra.mxu0 %v2034
      %2335 = vmatprep.subr.bf16.mxu0 %v2031
      %2336 = vmatpush2.bf16.msra.mxu0 %v2030
      %2337 = vmatprep.subr.bf16.mxu0 %v2027
      %2338 = vmatpush2.bf16.msra.mxu0 %v2026
      %2339 = vmatprep.subr.bf16.mxu0 %v2023
      %2340 = vmatpush2.bf16.msra.mxu0 %v2022
      %2341 = vmatprep.subr.bf16.mxu0 %v2019
      %2342 = vmatpush2.bf16.msra.mxu0 %v2018
      %2343 = vmatprep.subr.bf16.mxu0 %v2015
      %2344 = vmatpush2.bf16.msra.mxu0 %v2014
      %2345 = vmatprep.subr.bf16.mxu0 %v2011
      %2346 = vmatpush2.bf16.msra.mxu0 %v2010
      %2347 = vmatprep.subr.bf16.mxu0 %v2007
      %2348 = vmatpush2.bf16.msra.mxu0 %v2006
      %2349 = vmatprep.mubr.bf16.mxu0 %v594
      %2350 = vmatmul.mubr.bf16.gmra.mxu0 %v593
      %v2351 = vpop.f32.mrf.mxu0
      %v2352 = vadd.f32 %v2301, %v2351
      %v2353 = vpop.f32.mrf.mxu0
      %v2354 = vadd.f32 %v2303, %v2353
      %v2355 = vpop.f32.mrf.mxu0
      %v2356 = vadd.f32 %v2305, %v2355
      %v2357 = vpop.f32.mrf.mxu0
      %v2358 = vadd.f32 %v2307, %v2357
      %2359 = vmatprep.mubr.bf16.mxu0 %v1515
      %2360 = vmatmul.mubr.bf16.gmra.mxu0 %v1514
      %v2361 = vpop.f32.mrf.mxu0
      %v2362 = vadd.f32 %v2311, %v2361
      %v2363 = vpop.f32.mrf.mxu0
      %v2364 = vadd.f32 %v2313, %v2363
      %v2365 = vpop.f32.mrf.mxu0
      %v2366 = vpop.f32.mrf.mxu0
      %2367 = vdwg.mxu0
      %s2368 = scalar_lea.vmem %s1, 2048
      %v2369 = vld [vmem:[%s2368] sm:$0xff]
      %v2370 = vld [vmem:[%s2368 + $0x8] sm:$0xff]
      %v2371 = vld [vmem:[%s2368 + $0x10] sm:$0xff]
      %v2372 = vld [vmem:[%s2368 + $0x18] sm:$0xff]
      %v2373 = vld [vmem:[%s2368 + $0x20] sm:$0xff]
      %v2374 = vld [vmem:[%s2368 + $0x28] sm:$0xff]
      %v2375 = vld [vmem:[%s2368 + $0x30] sm:$0xff]
      %v2376 = vld [vmem:[%s2368 + $0x38] sm:$0xff]
      %v2377 = vld [vmem:[%s2368 + $0x40] sm:$0xff]
      %v2378 = vld [vmem:[%s2368 + $0x48] sm:$0xff]
      %v2379 = vld [vmem:[%s2368 + $0x50] sm:$0xff]
      %v2380 = vld [vmem:[%s2368 + $0x58] sm:$0xff]
      %v2381 = vld [vmem:[%s2368 + $0x60] sm:$0xff]
      %v2382 = vld [vmem:[%s2368 + $0x68] sm:$0xff]
      %v2383 = vld [vmem:[%s2368 + $0x70] sm:$0xff]
      %v2384 = vld [vmem:[%s2368 + $0x78] sm:$0xff]
      %v2385 = vld [vmem:[%s2368 + $0x80] sm:$0xff]
      %v2386 = vld [vmem:[%s2368 + $0x88] sm:$0xff]
      %v2387 = vld [vmem:[%s2368 + $0x90] sm:$0xff]
      %v2388 = vld [vmem:[%s2368 + $0x98] sm:$0xff]
      %v2389 = vld [vmem:[%s2368 + $0xa0] sm:$0xff]
      %v2390 = vld [vmem:[%s2368 + $0xa8] sm:$0xff]
      %v2391 = vld [vmem:[%s2368 + $0xb0] sm:$0xff]
      %v2392 = vld [vmem:[%s2368 + $0xb8] sm:$0xff]
      %v2393 = vld [vmem:[%s2368 + $0xc0] sm:$0xff]
      %v2394 = vld [vmem:[%s2368 + $0xc8] sm:$0xff]
      %v2395 = vld [vmem:[%s2368 + $0xd0] sm:$0xff]
      %v2396 = vld [vmem:[%s2368 + $0xd8] sm:$0xff]
      %v2397 = vld [vmem:[%s2368 + $0xe0] sm:$0xff]
      %v2398 = vld [vmem:[%s2368 + $0xe8] sm:$0xff]
      %v2399 = vld [vmem:[%s2368 + $0xf0] sm:$0xff]
      %v2400 = vld [vmem:[%s2368 + $0xf8] sm:$0xff]
      %v2401 = vld [vmem:[%s2368 + $0x100] sm:$0xff]
      %v2402 = vld [vmem:[%s2368 + $0x108] sm:$0xff]
      %v2403 = vld [vmem:[%s2368 + $0x110] sm:$0xff]
      %v2404 = vld [vmem:[%s2368 + $0x118] sm:$0xff]
      %v2405 = vld [vmem:[%s2368 + $0x120] sm:$0xff]
      %v2406 = vld [vmem:[%s2368 + $0x128] sm:$0xff]
      %v2407 = vld [vmem:[%s2368 + $0x130] sm:$0xff]
      %v2408 = vld [vmem:[%s2368 + $0x138] sm:$0xff]
      %v2409 = vld [vmem:[%s2368 + $0x140] sm:$0xff]
      %v2410 = vld [vmem:[%s2368 + $0x148] sm:$0xff]
      %v2411 = vld [vmem:[%s2368 + $0x150] sm:$0xff]
      %v2412 = vld [vmem:[%s2368 + $0x158] sm:$0xff]
      %v2413 = vld [vmem:[%s2368 + $0x160] sm:$0xff]
      %v2414 = vld [vmem:[%s2368 + $0x168] sm:$0xff]
      %v2415 = vld [vmem:[%s2368 + $0x170] sm:$0xff]
      %v2416 = vld [vmem:[%s2368 + $0x178] sm:$0xff]
      %v2417 = vld [vmem:[%s2368 + $0x180] sm:$0xff]
      %v2418 = vld [vmem:[%s2368 + $0x188] sm:$0xff]
      %v2419 = vld [vmem:[%s2368 + $0x190] sm:$0xff]
      %v2420 = vld [vmem:[%s2368 + $0x198] sm:$0xff]
      %v2421 = vld [vmem:[%s2368 + $0x1a0] sm:$0xff]
      %v2422 = vld [vmem:[%s2368 + $0x1a8] sm:$0xff]
      %v2423 = vld [vmem:[%s2368 + $0x1b0] sm:$0xff]
      %v2424 = vld [vmem:[%s2368 + $0x1b8] sm:$0xff]
      %v2425 = vld [vmem:[%s2368 + $0x1c0] sm:$0xff]
      %v2426 = vld [vmem:[%s2368 + $0x1c8] sm:$0xff]
      %v2427 = vld [vmem:[%s2368 + $0x1d0] sm:$0xff]
      %v2428 = vld [vmem:[%s2368 + $0x1d8] sm:$0xff]
      %v2429 = vld [vmem:[%s2368 + $0x1e0] sm:$0xff]
      %v2430 = vld [vmem:[%s2368 + $0x1e8] sm:$0xff]
      %v2431 = vld [vmem:[%s2368 + $0x1f0] sm:$0xff]
      %v2432 = vld [vmem:[%s2368 + $0x1f8] sm:$0xff]
      %v2433 = vld [vmem:[%s2368 + $0x200] sm:$0xff]
      %v2434 = vld [vmem:[%s2368 + $0x208] sm:$0xff]
      %v2435 = vld [vmem:[%s2368 + $0x210] sm:$0xff]
      %v2436 = vld [vmem:[%s2368 + $0x218] sm:$0xff]
      %v2437 = vld [vmem:[%s2368 + $0x220] sm:$0xff]
      %v2438 = vld [vmem:[%s2368 + $0x228] sm:$0xff]
      %v2439 = vld [vmem:[%s2368 + $0x230] sm:$0xff]
      %v2440 = vld [vmem:[%s2368 + $0x238] sm:$0xff]
      %v2441 = vld [vmem:[%s2368 + $0x240] sm:$0xff]
      %v2442 = vld [vmem:[%s2368 + $0x248] sm:$0xff]
      %v2443 = vld [vmem:[%s2368 + $0x250] sm:$0xff]
      %v2444 = vld [vmem:[%s2368 + $0x258] sm:$0xff]
      %v2445 = vld [vmem:[%s2368 + $0x260] sm:$0xff]
      %v2446 = vld [vmem:[%s2368 + $0x268] sm:$0xff]
      %v2447 = vld [vmem:[%s2368 + $0x270] sm:$0xff]
      %v2448 = vld [vmem:[%s2368 + $0x278] sm:$0xff]
      %v2449 = vld [vmem:[%s2368 + $0x280] sm:$0xff]
      %v2450 = vld [vmem:[%s2368 + $0x288] sm:$0xff]
      %v2451 = vld [vmem:[%s2368 + $0x290] sm:$0xff]
      %v2452 = vld [vmem:[%s2368 + $0x298] sm:$0xff]
      %v2453 = vld [vmem:[%s2368 + $0x2a0] sm:$0xff]
      %v2454 = vld [vmem:[%s2368 + $0x2a8] sm:$0xff]
      %v2455 = vld [vmem:[%s2368 + $0x2b0] sm:$0xff]
      %v2456 = vld [vmem:[%s2368 + $0x2b8] sm:$0xff]
      %v2457 = vld [vmem:[%s2368 + $0x2c0] sm:$0xff]
      %v2458 = vld [vmem:[%s2368 + $0x2c8] sm:$0xff]
      %v2459 = vld [vmem:[%s2368 + $0x2d0] sm:$0xff]
      %v2460 = vld [vmem:[%s2368 + $0x2d8] sm:$0xff]
      %v2461 = vld [vmem:[%s2368 + $0x2e0] sm:$0xff]
      %v2462 = vld [vmem:[%s2368 + $0x2e8] sm:$0xff]
      %v2463 = vld [vmem:[%s2368 + $0x2f0] sm:$0xff]
      %v2464 = vld [vmem:[%s2368 + $0x2f8] sm:$0xff]
      %v2465 = vld [vmem:[%s2368 + $0x300] sm:$0xff]
      %v2466 = vld [vmem:[%s2368 + $0x308] sm:$0xff]
      %v2467 = vld [vmem:[%s2368 + $0x310] sm:$0xff]
      %v2468 = vld [vmem:[%s2368 + $0x318] sm:$0xff]
      %v2469 = vld [vmem:[%s2368 + $0x320] sm:$0xff]
      %v2470 = vld [vmem:[%s2368 + $0x328] sm:$0xff]
      %v2471 = vld [vmem:[%s2368 + $0x330] sm:$0xff]
      %v2472 = vld [vmem:[%s2368 + $0x338] sm:$0xff]
      %v2473 = vld [vmem:[%s2368 + $0x340] sm:$0xff]
      %v2474 = vld [vmem:[%s2368 + $0x348] sm:$0xff]
      %v2475 = vld [vmem:[%s2368 + $0x350] sm:$0xff]
      %v2476 = vld [vmem:[%s2368 + $0x358] sm:$0xff]
      %v2477 = vld [vmem:[%s2368 + $0x360] sm:$0xff]
      %v2478 = vld [vmem:[%s2368 + $0x368] sm:$0xff]
      %v2479 = vld [vmem:[%s2368 + $0x370] sm:$0xff]
      %v2480 = vld [vmem:[%s2368 + $0x378] sm:$0xff]
      %v2481 = vld [vmem:[%s2368 + $0x380] sm:$0xff]
      %v2482 = vld [vmem:[%s2368 + $0x388] sm:$0xff]
      %v2483 = vld [vmem:[%s2368 + $0x390] sm:$0xff]
      %v2484 = vld [vmem:[%s2368 + $0x398] sm:$0xff]
      %v2485 = vld [vmem:[%s2368 + $0x3a0] sm:$0xff]
      %v2486 = vld [vmem:[%s2368 + $0x3a8] sm:$0xff]
      %v2487 = vld [vmem:[%s2368 + $0x3b0] sm:$0xff]
      %v2488 = vld [vmem:[%s2368 + $0x3b8] sm:$0xff]
      %v2489 = vld [vmem:[%s2368 + $0x3c0] sm:$0xff]
      %v2490 = vld [vmem:[%s2368 + $0x3c8] sm:$0xff]
      %v2491 = vld [vmem:[%s2368 + $0x3d0] sm:$0xff]
      %v2492 = vld [vmem:[%s2368 + $0x3d8] sm:$0xff]
      %v2493 = vld [vmem:[%s2368 + $0x3e0] sm:$0xff]
      %v2494 = vld [vmem:[%s2368 + $0x3e8] sm:$0xff]
      %v2495 = vld [vmem:[%s2368 + $0x3f0] sm:$0xff]
      %v2496 = vld [vmem:[%s2368 + $0x3f8] sm:$0xff]
      %vm2497 = vcmask 1046528
      %v2498 = vrot.slane %v591, 1
      %v2499 = vrot.slane %v595, 1
      %v2500 = vsel %vm2497, %v2498, %v2499
      %v2501 = vrot.slane %v592, 1
      %v2502 = vrot.slane %v596, 1
      %v2503 = vsel %vm2497, %v2501, %v2502
      %v2504 = vrot.slane %v593, 1
      %v2505 = vrot.slane %v597, 1
      %v2506 = vsel %vm2497, %v2504, %v2505
      %v2507 = vrot.slane %v594, 1
      %v2508 = vrot.slane %v598, 1
      %v2509 = vsel %vm2497, %v2507, %v2508
      %v2646 = vunpack.c.l.b16 %v2369
      %v2647 = vunpack.c.h.b16 %v2369
      %v2648 = vunpack.c.l.b16 %v2370
      %v2649 = vunpack.c.h.b16 %v2370
      %v2650 = vunpack.c.l.b16 %v2371
      %v2651 = vunpack.c.h.b16 %v2371
      %v2652 = vunpack.c.l.b16 %v2372
      %v2653 = vunpack.c.h.b16 %v2372
      %v2654 = vunpack.c.l.b16 %v2373
      %v2655 = vunpack.c.h.b16 %v2373
      %v2656 = vunpack.c.l.b16 %v2374
      %v2657 = vunpack.c.h.b16 %v2374
      %v2658 = vunpack.c.l.b16 %v2375
      %v2659 = vunpack.c.h.b16 %v2375
      %v2660 = vunpack.c.l.b16 %v2376
      %v2661 = vunpack.c.h.b16 %v2376
      %v2662 = vunpack.c.l.b16 %v2377
      %v2663 = vunpack.c.h.b16 %v2377
      %v2664 = vunpack.c.l.b16 %v2378
      %v2665 = vunpack.c.h.b16 %v2378
      %v2666 = vunpack.c.l.b16 %v2379
      %v2667 = vunpack.c.h.b16 %v2379
      %v2668 = vunpack.c.l.b16 %v2380
      %v2669 = vunpack.c.h.b16 %v2380
      %v2670 = vunpack.c.l.b16 %v2381
      %v2671 = vunpack.c.h.b16 %v2381
      %v2672 = vunpack.c.l.b16 %v2382
      %v2673 = vunpack.c.h.b16 %v2382
      %v2674 = vunpack.c.l.b16 %v2383
      %v2675 = vunpack.c.h.b16 %v2383
      %v2676 = vunpack.c.l.b16 %v2384
      %v2677 = vunpack.c.h.b16 %v2384
      %v2678 = vunpack.c.l.b16 %v2385
      %v2679 = vunpack.c.h.b16 %v2385
      %v2680 = vunpack.c.l.b16 %v2386
      %v2681 = vunpack.c.h.b16 %v2386
      %v2682 = vunpack.c.l.b16 %v2387
      %v2683 = vunpack.c.h.b16 %v2387
      %v2684 = vunpack.c.l.b16 %v2388
      %v2685 = vunpack.c.h.b16 %v2388
      %v2686 = vunpack.c.l.b16 %v2389
      %v2687 = vunpack.c.h.b16 %v2389
      %v2688 = vunpack.c.l.b16 %v2390
      %v2689 = vunpack.c.h.b16 %v2390
      %v2690 = vunpack.c.l.b16 %v2391
      %v2691 = vunpack.c.h.b16 %v2391
      %v2692 = vunpack.c.l.b16 %v2392
      %v2693 = vunpack.c.h.b16 %v2392
      %v2694 = vunpack.c.l.b16 %v2393
      %v2695 = vunpack.c.h.b16 %v2393
      %v2696 = vunpack.c.l.b16 %v2394
      %v2697 = vunpack.c.h.b16 %v2394
      %v2698 = vunpack.c.l.b16 %v2395
      %v2699 = vunpack.c.h.b16 %v2395
      %v2700 = vunpack.c.l.b16 %v2396
      %v2701 = vunpack.c.h.b16 %v2396
      %v2702 = vunpack.c.l.b16 %v2397
      %v2703 = vunpack.c.h.b16 %v2397
      %v2704 = vunpack.c.l.b16 %v2398
      %v2705 = vunpack.c.h.b16 %v2398
      %v2706 = vunpack.c.l.b16 %v2399
      %v2707 = vunpack.c.h.b16 %v2399
      %v2708 = vunpack.c.l.b16 %v2400
      %v2709 = vunpack.c.h.b16 %v2400
      %v2710 = vunpack.c.l.b16 %v2401
      %v2711 = vunpack.c.h.b16 %v2401
      %v2712 = vunpack.c.l.b16 %v2402
      %v2713 = vunpack.c.h.b16 %v2402
      %v2714 = vunpack.c.l.b16 %v2403
      %v2715 = vunpack.c.h.b16 %v2403
      %v2716 = vunpack.c.l.b16 %v2404
      %v2717 = vunpack.c.h.b16 %v2404
      %v2718 = vunpack.c.l.b16 %v2405
      %v2719 = vunpack.c.h.b16 %v2405
      %v2720 = vunpack.c.l.b16 %v2406
      %v2721 = vunpack.c.h.b16 %v2406
      %v2722 = vunpack.c.l.b16 %v2407
      %v2723 = vunpack.c.h.b16 %v2407
      %v2724 = vunpack.c.l.b16 %v2408
      %v2725 = vunpack.c.h.b16 %v2408
      %v2726 = vunpack.c.l.b16 %v2409
      %v2727 = vunpack.c.h.b16 %v2409
      %v2728 = vunpack.c.l.b16 %v2410
      %v2729 = vunpack.c.h.b16 %v2410
      %v2730 = vunpack.c.l.b16 %v2411
      %v2731 = vunpack.c.h.b16 %v2411
      %v2732 = vunpack.c.l.b16 %v2412
      %v2733 = vunpack.c.h.b16 %v2412
      %v2734 = vunpack.c.l.b16 %v2413
      %v2735 = vunpack.c.h.b16 %v2413
      %v2736 = vunpack.c.l.b16 %v2414
      %v2737 = vunpack.c.h.b16 %v2414
      %v2738 = vunpack.c.l.b16 %v2415
      %v2739 = vunpack.c.h.b16 %v2415
      %v2740 = vunpack.c.l.b16 %v2416
      %v2741 = vunpack.c.h.b16 %v2416
      %v2742 = vunpack.c.l.b16 %v2417
      %v2743 = vunpack.c.h.b16 %v2417
      %v2744 = vunpack.c.l.b16 %v2418
      %v2745 = vunpack.c.h.b16 %v2418
      %v2746 = vunpack.c.l.b16 %v2419
      %v2747 = vunpack.c.h.b16 %v2419
      %v2748 = vunpack.c.l.b16 %v2420
      %v2749 = vunpack.c.h.b16 %v2420
      %v2750 = vunpack.c.l.b16 %v2421
      %v2751 = vunpack.c.h.b16 %v2421
      %v2752 = vunpack.c.l.b16 %v2422
      %v2753 = vunpack.c.h.b16 %v2422
      %v2754 = vunpack.c.l.b16 %v2423
      %v2755 = vunpack.c.h.b16 %v2423
      %v2756 = vunpack.c.l.b16 %v2424
      %v2757 = vunpack.c.h.b16 %v2424
      %v2758 = vunpack.c.l.b16 %v2425
      %v2759 = vunpack.c.h.b16 %v2425
      %v2760 = vunpack.c.l.b16 %v2426
      %v2761 = vunpack.c.h.b16 %v2426
      %v2762 = vunpack.c.l.b16 %v2427
      %v2763 = vunpack.c.h.b16 %v2427
      %v2764 = vunpack.c.l.b16 %v2428
      %v2765 = vunpack.c.h.b16 %v2428
      %v2766 = vunpack.c.l.b16 %v2429
      %v2767 = vunpack.c.h.b16 %v2429
      %v2768 = vunpack.c.l.b16 %v2430
      %v2769 = vunpack.c.h.b16 %v2430
      %v2770 = vunpack.c.l.b16 %v2431
      %v2771 = vunpack.c.h.b16 %v2431
      %v2772 = vunpack.c.l.b16 %v2432
      %v2773 = vunpack.c.h.b16 %v2432
      %v2774 = vunpack.c.l.b16 %v2433
      %v2775 = vunpack.c.h.b16 %v2433
      %v2776 = vunpack.c.l.b16 %v2434
      %v2777 = vunpack.c.h.b16 %v2434
      %v2778 = vunpack.c.l.b16 %v2435
      %v2779 = vunpack.c.h.b16 %v2435
      %v2780 = vunpack.c.l.b16 %v2436
      %v2781 = vunpack.c.h.b16 %v2436
      %v2782 = vunpack.c.l.b16 %v2437
      %v2783 = vunpack.c.h.b16 %v2437
      %v2784 = vunpack.c.l.b16 %v2438
      %v2785 = vunpack.c.h.b16 %v2438
      %v2786 = vunpack.c.l.b16 %v2439
      %v2787 = vunpack.c.h.b16 %v2439
      %v2788 = vunpack.c.l.b16 %v2440
      %v2789 = vunpack.c.h.b16 %v2440
      %v2790 = vunpack.c.l.b16 %v2441
      %v2791 = vunpack.c.h.b16 %v2441
      %v2792 = vunpack.c.l.b16 %v2442
      %v2793 = vunpack.c.h.b16 %v2442
      %v2794 = vunpack.c.l.b16 %v2443
      %v2795 = vunpack.c.h.b16 %v2443
      %v2796 = vunpack.c.l.b16 %v2444
      %v2797 = vunpack.c.h.b16 %v2444
      %v2798 = vunpack.c.l.b16 %v2445
      %v2799 = vunpack.c.h.b16 %v2445
      %v2800 = vunpack.c.l.b16 %v2446
      %v2801 = vunpack.c.h.b16 %v2446
      %v2802 = vunpack.c.l.b16 %v2447
      %v2803 = vunpack.c.h.b16 %v2447
      %v2804 = vunpack.c.l.b16 %v2448
      %v2805 = vunpack.c.h.b16 %v2448
      %v2806 = vunpack.c.l.b16 %v2449
      %v2807 = vunpack.c.h.b16 %v2449
      %v2808 = vunpack.c.l.b16 %v2450
      %v2809 = vunpack.c.h.b16 %v2450
      %v2810 = vunpack.c.l.b16 %v2451
      %v2811 = vunpack.c.h.b16 %v2451
      %v2812 = vunpack.c.l.b16 %v2452
      %v2813 = vunpack.c.h.b16 %v2452
      %v2814 = vunpack.c.l.b16 %v2453
      %v2815 = vunpack.c.h.b16 %v2453
      %v2816 = vunpack.c.l.b16 %v2454
      %v2817 = vunpack.c.h.b16 %v2454
      %v2818 = vunpack.c.l.b16 %v2455
      %v2819 = vunpack.c.h.b16 %v2455
      %v2820 = vunpack.c.l.b16 %v2456
      %v2821 = vunpack.c.h.b16 %v2456
      %v2822 = vunpack.c.l.b16 %v2457
      %v2823 = vunpack.c.h.b16 %v2457
      %v2824 = vunpack.c.l.b16 %v2458
      %v2825 = vunpack.c.h.b16 %v2458
      %v2826 = vunpack.c.l.b16 %v2459
      %v2827 = vunpack.c.h.b16 %v2459
      %v2828 = vunpack.c.l.b16 %v2460
      %v2829 = vunpack.c.h.b16 %v2460
      %v2830 = vunpack.c.l.b16 %v2461
      %v2831 = vunpack.c.h.b16 %v2461
      %v2832 = vunpack.c.l.b16 %v2462
      %v2833 = vunpack.c.h.b16 %v2462
      %v2834 = vunpack.c.l.b16 %v2463
      %v2835 = vunpack.c.h.b16 %v2463
      %v2836 = vunpack.c.l.b16 %v2464
      %v2837 = vunpack.c.h.b16 %v2464
      %v2838 = vunpack.c.l.b16 %v2465
      %v2839 = vunpack.c.h.b16 %v2465
      %v2840 = vunpack.c.l.b16 %v2466
      %v2841 = vunpack.c.h.b16 %v2466
      %v2842 = vunpack.c.l.b16 %v2467
      %v2843 = vunpack.c.h.b16 %v2467
      %v2844 = vunpack.c.l.b16 %v2468
      %v2845 = vunpack.c.h.b16 %v2468
      %v2846 = vunpack.c.l.b16 %v2469
      %v2847 = vunpack.c.h.b16 %v2469
      %v2848 = vunpack.c.l.b16 %v2470
      %v2849 = vunpack.c.h.b16 %v2470
      %v2850 = vunpack.c.l.b16 %v2471
      %v2851 = vunpack.c.h.b16 %v2471
      %v2852 = vunpack.c.l.b16 %v2472
      %v2853 = vunpack.c.h.b16 %v2472
      %v2854 = vunpack.c.l.b16 %v2473
      %v2855 = vunpack.c.h.b16 %v2473
      %v2856 = vunpack.c.l.b16 %v2474
      %v2857 = vunpack.c.h.b16 %v2474
      %v2858 = vunpack.c.l.b16 %v2475
      %v2859 = vunpack.c.h.b16 %v2475
      %v2860 = vunpack.c.l.b16 %v2476
      %v2861 = vunpack.c.h.b16 %v2476
      %v2862 = vunpack.c.l.b16 %v2477
      %v2863 = vunpack.c.h.b16 %v2477
      %v2864 = vunpack.c.l.b16 %v2478
      %v2865 = vunpack.c.h.b16 %v2478
      %v2866 = vunpack.c.l.b16 %v2479
      %v2867 = vunpack.c.h.b16 %v2479
      %v2868 = vunpack.c.l.b16 %v2480
      %v2869 = vunpack.c.h.b16 %v2480
      %v2870 = vunpack.c.l.b16 %v2481
      %v2871 = vunpack.c.h.b16 %v2481
      %v2872 = vunpack.c.l.b16 %v2482
      %v2873 = vunpack.c.h.b16 %v2482
      %v2874 = vunpack.c.l.b16 %v2483
      %v2875 = vunpack.c.h.b16 %v2483
      %v2876 = vunpack.c.l.b16 %v2484
      %v2877 = vunpack.c.h.b16 %v2484
      %v2878 = vunpack.c.l.b16 %v2485
      %v2879 = vunpack.c.h.b16 %v2485
      %v2880 = vunpack.c.l.b16 %v2486
      %v2881 = vunpack.c.h.b16 %v2486
      %v2882 = vunpack.c.l.b16 %v2487
      %v2883 = vunpack.c.h.b16 %v2487
      %v2884 = vunpack.c.l.b16 %v2488
      %v2885 = vunpack.c.h.b16 %v2488
      %v2886 = vunpack.c.l.b16 %v2489
      %v2887 = vunpack.c.h.b16 %v2489
      %v2888 = vunpack.c.l.b16 %v2490
      %v2889 = vunpack.c.h.b16 %v2490
      %v2890 = vunpack.c.l.b16 %v2491
      %v2891 = vunpack.c.h.b16 %v2491
      %v2892 = vunpack.c.l.b16 %v2492
      %v2893 = vunpack.c.h.b16 %v2492
      %v2894 = vunpack.c.l.b16 %v2493
      %v2895 = vunpack.c.h.b16 %v2493
      %v2896 = vunpack.c.l.b16 %v2494
      %v2897 = vunpack.c.h.b16 %v2494
      %v2898 = vunpack.c.l.b16 %v2495
      %v2899 = vunpack.c.h.b16 %v2495
      %v2900 = vunpack.c.l.b16 %v2496
      %v2901 = vunpack.c.h.b16 %v2496
      %v2902 = vpack.c.b16 %v2650, %v2646
      %v2903 = vpack.c.b16 %v2651, %v2647
      %v2904 = vpack.c.b16 %v2652, %v2648
      %v2905 = vpack.c.b16 %v2653, %v2649
      %v2906 = vpack.c.b16 %v2658, %v2654
      %v2907 = vpack.c.b16 %v2659, %v2655
      %v2908 = vpack.c.b16 %v2660, %v2656
      %v2909 = vpack.c.b16 %v2661, %v2657
      %v2910 = vpack.c.b16 %v2666, %v2662
      %v2911 = vpack.c.b16 %v2667, %v2663
      %v2912 = vpack.c.b16 %v2668, %v2664
      %v2913 = vpack.c.b16 %v2669, %v2665
      %v2914 = vpack.c.b16 %v2674, %v2670
      %v2915 = vpack.c.b16 %v2675, %v2671
      %v2916 = vpack.c.b16 %v2676, %v2672
      %v2917 = vpack.c.b16 %v2677, %v2673
      %v2918 = vpack.c.b16 %v2682, %v2678
      %v2919 = vpack.c.b16 %v2683, %v2679
      %v2920 = vpack.c.b16 %v2684, %v2680
      %v2921 = vpack.c.b16 %v2685, %v2681
      %v2922 = vpack.c.b16 %v2690, %v2686
      %v2923 = vpack.c.b16 %v2691, %v2687
      %v2924 = vpack.c.b16 %v2692, %v2688
      %v2925 = vpack.c.b16 %v2693, %v2689
      %v2926 = vpack.c.b16 %v2698, %v2694
      %v2927 = vpack.c.b16 %v2699, %v2695
      %v2928 = vpack.c.b16 %v2700, %v2696
      %v2929 = vpack.c.b16 %v2701, %v2697
      %v2930 = vpack.c.b16 %v2706, %v2702
      %v2931 = vpack.c.b16 %v2707, %v2703
      %v2932 = vpack.c.b16 %v2708, %v2704
      %v2933 = vpack.c.b16 %v2709, %v2705
      %v2934 = vpack.c.b16 %v2714, %v2710
      %v2935 = vpack.c.b16 %v2715, %v2711
      %v2936 = vpack.c.b16 %v2716, %v2712
      %v2937 = vpack.c.b16 %v2717, %v2713
      %v2938 = vpack.c.b16 %v2722, %v2718
      %v2939 = vpack.c.b16 %v2723, %v2719
      %v2940 = vpack.c.b16 %v2724, %v2720
      %v2941 = vpack.c.b16 %v2725, %v2721
      %v2942 = vpack.c.b16 %v2730, %v2726
      %v2943 = vpack.c.b16 %v2731, %v2727
      %v2944 = vpack.c.b16 %v2732, %v2728
      %v2945 = vpack.c.b16 %v2733, %v2729
      %v2946 = vpack.c.b16 %v2738, %v2734
      %v2947 = vpack.c.b16 %v2739, %v2735
      %v2948 = vpack.c.b16 %v2740, %v2736
      %v2949 = vpack.c.b16 %v2741, %v2737
      %v2950 = vpack.c.b16 %v2746, %v2742
      %v2951 = vpack.c.b16 %v2747, %v2743
      %v2952 = vpack.c.b16 %v2748, %v2744
      %v2953 = vpack.c.b16 %v2749, %v2745
      %v2954 = vpack.c.b16 %v2754, %v2750
      %v2955 = vpack.c.b16 %v2755, %v2751
      %v2956 = vpack.c.b16 %v2756, %v2752
      %v2957 = vpack.c.b16 %v2757, %v2753
      %v2958 = vpack.c.b16 %v2762, %v2758
      %v2959 = vpack.c.b16 %v2763, %v2759
      %v2960 = vpack.c.b16 %v2764, %v2760
      %v2961 = vpack.c.b16 %v2765, %v2761
      %v2962 = vpack.c.b16 %v2770, %v2766
      %v2963 = vpack.c.b16 %v2771, %v2767
      %v2964 = vpack.c.b16 %v2772, %v2768
      %v2965 = vpack.c.b16 %v2773, %v2769
      %v2966 = vpack.c.b16 %v2778, %v2774
      %v2967 = vpack.c.b16 %v2779, %v2775
      %v2968 = vpack.c.b16 %v2780, %v2776
      %v2969 = vpack.c.b16 %v2781, %v2777
      %v2970 = vpack.c.b16 %v2786, %v2782
      %v2971 = vpack.c.b16 %v2787, %v2783
      %v2972 = vpack.c.b16 %v2788, %v2784
      %v2973 = vpack.c.b16 %v2789, %v2785
      %v2974 = vpack.c.b16 %v2794, %v2790
      %v2975 = vpack.c.b16 %v2795, %v2791
      %v2976 = vpack.c.b16 %v2796, %v2792
      %v2977 = vpack.c.b16 %v2797, %v2793
      %v2978 = vpack.c.b16 %v2802, %v2798
      %v2979 = vpack.c.b16 %v2803, %v2799
      %v2980 = vpack.c.b16 %v2804, %v2800
      %v2981 = vpack.c.b16 %v2805, %v2801
      %v2982 = vpack.c.b16 %v2810, %v2806
      %v2983 = vpack.c.b16 %v2811, %v2807
      %v2984 = vpack.c.b16 %v2812, %v2808
      %v2985 = vpack.c.b16 %v2813, %v2809
      %v2986 = vpack.c.b16 %v2818, %v2814
      %v2987 = vpack.c.b16 %v2819, %v2815
      %v2988 = vpack.c.b16 %v2820, %v2816
      %v2989 = vpack.c.b16 %v2821, %v2817
      %v2990 = vpack.c.b16 %v2826, %v2822
      %v2991 = vpack.c.b16 %v2827, %v2823
      %v2992 = vpack.c.b16 %v2828, %v2824
      %v2993 = vpack.c.b16 %v2829, %v2825
      %v2994 = vpack.c.b16 %v2834, %v2830
      %v2995 = vpack.c.b16 %v2835, %v2831
      %v2996 = vpack.c.b16 %v2836, %v2832
      %v2997 = vpack.c.b16 %v2837, %v2833
      %v2998 = vpack.c.b16 %v2842, %v2838
      %v2999 = vpack.c.b16 %v2843, %v2839
      %v3000 = vpack.c.b16 %v2844, %v2840
      %v3001 = vpack.c.b16 %v2845, %v2841
      %v3002 = vpack.c.b16 %v2850, %v2846
      %v3003 = vpack.c.b16 %v2851, %v2847
      %v3004 = vpack.c.b16 %v2852, %v2848
      %v3005 = vpack.c.b16 %v2853, %v2849
      %v3006 = vpack.c.b16 %v2858, %v2854
      %v3007 = vpack.c.b16 %v2859, %v2855
      %v3008 = vpack.c.b16 %v2860, %v2856
      %v3009 = vpack.c.b16 %v2861, %v2857
      %v3010 = vpack.c.b16 %v2866, %v2862
      %v3011 = vpack.c.b16 %v2867, %v2863
      %v3012 = vpack.c.b16 %v2868, %v2864
      %v3013 = vpack.c.b16 %v2869, %v2865
      %v3014 = vpack.c.b16 %v2874, %v2870
      %v3015 = vpack.c.b16 %v2875, %v2871
      %v3016 = vpack.c.b16 %v2876, %v2872
      %v3017 = vpack.c.b16 %v2877, %v2873
      %v3018 = vpack.c.b16 %v2882, %v2878
      %v3019 = vpack.c.b16 %v2883, %v2879
      %v3020 = vpack.c.b16 %v2884, %v2880
      %v3021 = vpack.c.b16 %v2885, %v2881
      %v3022 = vpack.c.b16 %v2890, %v2886
      %v3023 = vpack.c.b16 %v2891, %v2887
      %v3024 = vpack.c.b16 %v2892, %v2888
      %v3025 = vpack.c.b16 %v2893, %v2889
      %v3026 = vpack.c.b16 %v2898, %v2894
      %v3027 = vpack.c.b16 %v2899, %v2895
      %v3028 = vpack.c.b16 %v2900, %v2896
      %v3029 = vpack.c.b16 %v2901, %v2897
      %3158 = vmatprep.subr.bf16.mxu0 %v2931
      %3159 = vmatpush1.bf16.msra.mxu0 %v2930
      %3160 = vmatprep.subr.bf16.mxu0 %v2927
      %3161 = vmatpush1.bf16.msra.mxu0 %v2926
      %3162 = vmatprep.subr.bf16.mxu0 %v2923
      %3163 = vmatpush1.bf16.msra.mxu0 %v2922
      %3164 = vmatprep.subr.bf16.mxu0 %v2919
      %3165 = vmatpush1.bf16.msra.mxu0 %v2918
      %3166 = vmatprep.subr.bf16.mxu0 %v2915
      %3167 = vmatpush1.bf16.msra.mxu0 %v2914
      %3168 = vmatprep.subr.bf16.mxu0 %v2911
      %3169 = vmatpush1.bf16.msra.mxu0 %v2910
      %3170 = vmatprep.subr.bf16.mxu0 %v2907
      %3171 = vmatpush1.bf16.msra.mxu0 %v2906
      %3172 = vmatprep.subr.bf16.mxu0 %v2903
      %3173 = vmatpush1.bf16.msra.mxu0 %v2902
      %3174 = vmatprep.subr.bf16.mxu0 %v2963
      %3175 = vmatpush2.bf16.msra.mxu0 %v2962
      %3176 = vmatprep.subr.bf16.mxu0 %v2959
      %3177 = vmatpush2.bf16.msra.mxu0 %v2958
      %3178 = vmatprep.subr.bf16.mxu0 %v2955
      %3179 = vmatpush2.bf16.msra.mxu0 %v2954
      %3180 = vmatprep.subr.bf16.mxu0 %v2951
      %3181 = vmatpush2.bf16.msra.mxu0 %v2950
      %3182 = vmatprep.subr.bf16.mxu0 %v2947
      %3183 = vmatpush2.bf16.msra.mxu0 %v2946
      %3184 = vmatprep.subr.bf16.mxu0 %v2943
      %3185 = vmatpush2.bf16.msra.mxu0 %v2942
      %3186 = vmatprep.subr.bf16.mxu0 %v2939
      %3187 = vmatpush2.bf16.msra.mxu0 %v2938
      %3188 = vmatprep.subr.bf16.mxu0 %v2935
      %3189 = vmatpush2.bf16.msra.mxu0 %v2934
      %3190 = vmatprep.mubr.bf16.mxu0 %v2503
      %3191 = vmatmul.mubr.bf16.gmra.mxu0 %v2500
      %v3192 = vpop.f32.mrf.mxu0
      %v3193 = vadd.f32 0.0, %v3192
      %v3194 = vpop.f32.mrf.mxu0
      %v3195 = vadd.f32 0.0, %v3194
      %v3196 = vpop.f32.mrf.mxu0
      %v3197 = vadd.f32 0.0, %v3196
      %v3198 = vpop.f32.mrf.mxu0
      %v3199 = vadd.f32 0.0, %v3198
      %3200 = vmatprep.mubr.bf16.mxu0 %v2502
      %3201 = vmatmul.mubr.bf16.gmra.mxu0 %v2499
      %v3202 = vpop.f32.mrf.mxu0
      %v3203 = vadd.f32 0.0, %v3202
      %v3204 = vpop.f32.mrf.mxu0
      %v3205 = vadd.f32 0.0, %v3204
      %v3206 = vpop.f32.mrf.mxu0
      %v3207 = vpop.f32.mrf.mxu0
      %3208 = vdwg.mxu0
      %3209 = vmatprep.subr.bf16.mxu0 %v2995
      %3210 = vmatpush1.bf16.msra.mxu0 %v2994
      %3211 = vmatprep.subr.bf16.mxu0 %v2991
      %3212 = vmatpush1.bf16.msra.mxu0 %v2990
      %3213 = vmatprep.subr.bf16.mxu0 %v2987
      %3214 = vmatpush1.bf16.msra.mxu0 %v2986
      %3215 = vmatprep.subr.bf16.mxu0 %v2983
      %3216 = vmatpush1.bf16.msra.mxu0 %v2982
      %3217 = vmatprep.subr.bf16.mxu0 %v2979
      %3218 = vmatpush1.bf16.msra.mxu0 %v2978
      %3219 = vmatprep.subr.bf16.mxu0 %v2975
      %3220 = vmatpush1.bf16.msra.mxu0 %v2974
      %3221 = vmatprep.subr.bf16.mxu0 %v2971
      %3222 = vmatpush1.bf16.msra.mxu0 %v2970
      %3223 = vmatprep.subr.bf16.mxu0 %v2967
      %3224 = vmatpush1.bf16.msra.mxu0 %v2966
      %3225 = vmatprep.subr.bf16.mxu0 %v3027
      %3226 = vmatpush2.bf16.msra.mxu0 %v3026
      %3227 = vmatprep.subr.bf16.mxu0 %v3023
      %3228 = vmatpush2.bf16.msra.mxu0 %v3022
      %3229 = vmatprep.subr.bf16.mxu0 %v3019
      %3230 = vmatpush2.bf16.msra.mxu0 %v3018
      %3231 = vmatprep.subr.bf16.mxu0 %v3015
      %3232 = vmatpush2.bf16.msra.mxu0 %v3014
      %3233 = vmatprep.subr.bf16.mxu0 %v3011
      %3234 = vmatpush2.bf16.msra.mxu0 %v3010
      %3235 = vmatprep.subr.bf16.mxu0 %v3007
      %3236 = vmatpush2.bf16.msra.mxu0 %v3006
      %3237 = vmatprep.subr.bf16.mxu0 %v3003
      %3238 = vmatpush2.bf16.msra.mxu0 %v3002
      %3239 = vmatprep.subr.bf16.mxu0 %v2999
      %3240 = vmatpush2.bf16.msra.mxu0 %v2998
      %3241 = vmatprep.mubr.bf16.mxu0 %v2509
      %3242 = vmatmul.mubr.bf16.gmra.mxu0 %v2506
      %v3243 = vpop.f32.mrf.mxu0
      %v3244 = vadd.f32 %v3193, %v3243
      %v3245 = vpop.f32.mrf.mxu0
      %v3246 = vadd.f32 %v3195, %v3245
      %v3247 = vpop.f32.mrf.mxu0
      %v3248 = vadd.f32 %v3197, %v3247
      %v3249 = vpop.f32.mrf.mxu0
      %v3250 = vadd.f32 %v3199, %v3249
      %3251 = vmatprep.mubr.bf16.mxu0 %v2508
      %3252 = vmatmul.mubr.bf16.gmra.mxu0 %v2505
      %v3253 = vpop.f32.mrf.mxu0
      %v3254 = vadd.f32 %v3203, %v3253
      %v3255 = vpop.f32.mrf.mxu0
      %v3256 = vadd.f32 %v3205, %v3255
      %v3257 = vpop.f32.mrf.mxu0
      %v3258 = vpop.f32.mrf.mxu0
      %3259 = vdwg.mxu0
      %3260 = vmatprep.subr.bf16.mxu0 %v2933
      %3261 = vmatpush1.bf16.msra.mxu0 %v2932
      %3262 = vmatprep.subr.bf16.mxu0 %v2929
      %3263 = vmatpush1.bf16.msra.mxu0 %v2928
      %3264 = vmatprep.subr.bf16.mxu0 %v2925
      %3265 = vmatpush1.bf16.msra.mxu0 %v2924
      %3266 = vmatprep.subr.bf16.mxu0 %v2921
      %3267 = vmatpush1.bf16.msra.mxu0 %v2920
      %3268 = vmatprep.subr.bf16.mxu0 %v2917
      %3269 = vmatpush1.bf16.msra.mxu0 %v2916
      %3270 = vmatprep.subr.bf16.mxu0 %v2913
      %3271 = vmatpush1.bf16.msra.mxu0 %v2912
      %3272 = vmatprep.subr.bf16.mxu0 %v2909
      %3273 = vmatpush1.bf16.msra.mxu0 %v2908
      %3274 = vmatprep.subr.bf16.mxu0 %v2905
      %3275 = vmatpush1.bf16.msra.mxu0 %v2904
      %3276 = vmatprep.subr.bf16.mxu0 %v2965
      %3277 = vmatpush2.bf16.msra.mxu0 %v2964
      %3278 = vmatprep.subr.bf16.mxu0 %v2961
      %3279 = vmatpush2.bf16.msra.mxu0 %v2960
      %3280 = vmatprep.subr.bf16.mxu0 %v2957
      %3281 = vmatpush2.bf16.msra.mxu0 %v2956
      %3282 = vmatprep.subr.bf16.mxu0 %v2953
      %3283 = vmatpush2.bf16.msra.mxu0 %v2952
      %3284 = vmatprep.subr.bf16.mxu0 %v2949
      %3285 = vmatpush2.bf16.msra.mxu0 %v2948
      %3286 = vmatprep.subr.bf16.mxu0 %v2945
      %3287 = vmatpush2.bf16.msra.mxu0 %v2944
      %3288 = vmatprep.subr.bf16.mxu0 %v2941
      %3289 = vmatpush2.bf16.msra.mxu0 %v2940
      %3290 = vmatprep.subr.bf16.mxu0 %v2937
      %3291 = vmatpush2.bf16.msra.mxu0 %v2936
      %3292 = vmatprep.mubr.bf16.mxu0 %v2503
      %3293 = vmatmul.mubr.bf16.gmra.mxu0 %v2500
      %v3294 = vpop.f32.mrf.mxu0
      %v3295 = vadd.f32 0.0, %v3294
      %v3296 = vpop.f32.mrf.mxu0
      %v3297 = vadd.f32 0.0, %v3296
      %v3298 = vpop.f32.mrf.mxu0
      %v3299 = vadd.f32 0.0, %v3298
      %v3300 = vpop.f32.mrf.mxu0
      %v3301 = vadd.f32 0.0, %v3300
      %3302 = vmatprep.mubr.bf16.mxu0 %v2502
      %3303 = vmatmul.mubr.bf16.gmra.mxu0 %v2499
      %v3304 = vpop.f32.mrf.mxu0
      %v3305 = vadd.f32 0.0, %v3304
      %v3306 = vpop.f32.mrf.mxu0
      %v3307 = vadd.f32 0.0, %v3306
      %v3308 = vpop.f32.mrf.mxu0
      %v3309 = vpop.f32.mrf.mxu0
      %3310 = vdwg.mxu0
      %3311 = vmatprep.subr.bf16.mxu0 %v2997
      %3312 = vmatpush1.bf16.msra.mxu0 %v2996
      %3313 = vmatprep.subr.bf16.mxu0 %v2993
      %3314 = vmatpush1.bf16.msra.mxu0 %v2992
      %3315 = vmatprep.subr.bf16.mxu0 %v2989
      %3316 = vmatpush1.bf16.msra.mxu0 %v2988
      %3317 = vmatprep.subr.bf16.mxu0 %v2985
      %3318 = vmatpush1.bf16.msra.mxu0 %v2984
      %3319 = vmatprep.subr.bf16.mxu0 %v2981
      %3320 = vmatpush1.bf16.msra.mxu0 %v2980
      %3321 = vmatprep.subr.bf16.mxu0 %v2977
      %3322 = vmatpush1.bf16.msra.mxu0 %v2976
      %3323 = vmatprep.subr.bf16.mxu0 %v2973
      %3324 = vmatpush1.bf16.msra.mxu0 %v2972
      %3325 = vmatprep.subr.bf16.mxu0 %v2969
      %3326 = vmatpush1.bf16.msra.mxu0 %v2968
      %3327 = vmatprep.subr.bf16.mxu0 %v3029
      %3328 = vmatpush2.bf16.msra.mxu0 %v3028
      %3329 = vmatprep.subr.bf16.mxu0 %v3025
      %3330 = vmatpush2.bf16.msra.mxu0 %v3024
      %3331 = vmatprep.subr.bf16.mxu0 %v3021
      %3332 = vmatpush2.bf16.msra.mxu0 %v3020
      %3333 = vmatprep.subr.bf16.mxu0 %v3017
      %3334 = vmatpush2.bf16.msra.mxu0 %v3016
      %3335 = vmatprep.subr.bf16.mxu0 %v3013
      %3336 = vmatpush2.bf16.msra.mxu0 %v3012
      %3337 = vmatprep.subr.bf16.mxu0 %v3009
      %3338 = vmatpush2.bf16.msra.mxu0 %v3008
      %3339 = vmatprep.subr.bf16.mxu0 %v3005
      %3340 = vmatpush2.bf16.msra.mxu0 %v3004
      %3341 = vmatprep.subr.bf16.mxu0 %v3001
      %3342 = vmatpush2.bf16.msra.mxu0 %v3000
      %3343 = vmatprep.mubr.bf16.mxu0 %v2509
      %3344 = vmatmul.mubr.bf16.gmra.mxu0 %v2506
      %v3345 = vpop.f32.mrf.mxu0
      %v3346 = vadd.f32 %v3295, %v3345
      %v3347 = vpop.f32.mrf.mxu0
      %v3348 = vadd.f32 %v3297, %v3347
      %v3349 = vpop.f32.mrf.mxu0
      %v3350 = vadd.f32 %v3299, %v3349
      %v3351 = vpop.f32.mrf.mxu0
      %v3352 = vadd.f32 %v3301, %v3351
      %3353 = vmatprep.mubr.bf16.mxu0 %v2508
      %3354 = vmatmul.mubr.bf16.gmra.mxu0 %v2505
      %v3355 = vpop.f32.mrf.mxu0
      %v3356 = vadd.f32 %v3305, %v3355
      %v3357 = vpop.f32.mrf.mxu0
      %v3358 = vadd.f32 %v3307, %v3357
      %v3359 = vpop.f32.mrf.mxu0
      %v3360 = vpop.f32.mrf.mxu0
      %3361 = vdwg.mxu0
      %v3362 = vadd.f32 %v2250, %v3244
      %v3363 = vadd.f32 %v2252, %v3246
      %v3364 = vadd.f32 %v2352, %v3346
      %v3365 = vadd.f32 %v2354, %v3348
      %v3366 = vadd.f32 %v2254, %v3248
      %v3367 = vadd.f32 %v2256, %v3250
      %v3368 = vadd.f32 %v2356, %v3350
      %v3369 = vadd.f32 %v2358, %v3352
      %v3370 = vadd.f32 %v2260, %v3254
      %v3371 = vadd.f32 %v2262, %v3256
      %v3372 = vadd.f32 %v2362, %v3356
      %v3373 = vadd.f32 %v2364, %v3358
      %v3374 = vld [vmem:[%s2] sm:$0xf]
      %v3376 = vlaneseq
      %v3377 = vshrl.u32 %v3376, 7
      %v3378 = vsub.s32 0, %v3377
      %v3379 = vrot.slane %v3374, %v3378
      %v3380 = vlaneseq
      %v3381 = vshrl.u32 %v3380, 7
      %v3382 = vsub.s32 1, %v3381
      %v3383 = vrot.slane %v3374, %v3382
      %v3384 = vlaneseq
      %v3385 = vshrl.u32 %v3384, 7
      %v3386 = vsub.s32 2, %v3385
      %v3387 = vrot.slane %v3374, %v3386
      %v3388 = vlaneseq
      %v3389 = vshrl.u32 %v3388, 7
      %v3390 = vsub.s32 3, %v3389
      %v3391 = vrot.slane %v3374, %v3390
      %v3396 = vadd.f32 %v3362, %v3379
      %v3397 = vadd.f32 %v3363, %v3383
      %v3398 = vadd.f32 %v3364, %v3387
      %v3399 = vadd.f32 %v3365, %v3391
      %v3400 = vadd.f32 %v3366, %v3379
      %v3401 = vadd.f32 %v3367, %v3383
      %v3402 = vadd.f32 %v3368, %v3387
      %v3403 = vadd.f32 %v3369, %v3391
      %v3404 = vadd.f32 %v3370, %v3379
      %v3405 = vadd.f32 %v3371, %v3383
      %v3406 = vadd.f32 %v3372, %v3387
      %v3407 = vadd.f32 %v3373, %v3391
      %v3408 = vmax.f32 %v3396, 0.0
      %v3409 = vmax.f32 %v3397, 0.0
      %v3410 = vmax.f32 %v3398, 0.0
      %v3411 = vmax.f32 %v3399, 0.0
      %v3412 = vmax.f32 %v3400, 0.0
      %v3413 = vmax.f32 %v3401, 0.0
      %v3414 = vmax.f32 %v3402, 0.0
      %v3415 = vmax.f32 %v3403, 0.0
      %v3416 = vmax.f32 %v3404, 0.0
      %v3417 = vmax.f32 %v3405, 0.0
      %v3418 = vmax.f32 %v3406, 0.0
      %v3419 = vmax.f32 %v3407, 0.0
      %v3420 = vlaneseq
      %v3421 = vshrl.u32 %v3420, 7
      %v3422 = vadd.s32 %v3421, 8
      %v3423 = vadd.s32 %v3421, 16
      %s3424 = ssub.s32 %s251, 1
      %v3425 = vstv %s3424
      %v3426 = vadd.s32 %v3425, %v3421
      %v3427 = vadd.s32 %v3425, %v3422
      %v3428 = vadd.s32 %v3425, %v3423
      %vm3429 = vcmp.ge.s32.totalorder %v3426, 0
      %vm3430 = vcmp.ge.s32.totalorder %v3427, 0
      %vm3431 = vcmp.ge.s32.totalorder %v3428, 0
      %vm3432 = vcmp.lt.s32.totalorder %v3426, 16
      %vm3433 = vcmp.lt.s32.totalorder %v3427, 16
      %vm3434 = vcmp.lt.s32.totalorder %v3428, 16
      %vm3435 = vmand %vm3429, %vm3432
      %vm3436 = vmand %vm3430, %vm3433
      %vm3437 = vmand %vm3431, %vm3434
      %v3438 = vsel %vm3435, 1, 0
      %v3439 = vsel %vm3436, 1, 0
      %v3440 = vsel %vm3437, 1, 0
      %vm3441 = vcmp.eq.s32.totalorder %v3438, 1
      %vm3442 = vcmp.eq.s32.totalorder %v3439, 1
      %vm3443 = vcmp.eq.s32.totalorder %v3440, 1
      %v3444 = vsel %vm3441, %v3408, 0.0
      %v3445 = vsel %vm3441, %v3409, 0.0
      %v3446 = vsel %vm3441, %v3410, 0.0
      %v3447 = vsel %vm3441, %v3411, 0.0
      %v3448 = vsel %vm3442, %v3412, 0.0
      %v3449 = vsel %vm3442, %v3413, 0.0
      %v3450 = vsel %vm3442, %v3414, 0.0
      %v3451 = vsel %vm3442, %v3415, 0.0
      %v3452 = vsel %vm3443, %v3416, 0.0
      %v3453 = vsel %vm3443, %v3417, 0.0
      %v3454 = vsel %vm3443, %v3418, 0.0
      %v3455 = vsel %vm3443, %v3419, 0.0
      %v3456 = vpack.c.bf16 %v3448, %v3444
      %v3457 = vpack.c.bf16 %v3449, %v3445
      %v3458 = vpack.c.bf16 %v3450, %v3446
      %v3459 = vpack.c.bf16 %v3451, %v3447
      %v3460 = vpack.c.bf16 %v3452, %v3452
      %v3461 = vpack.c.bf16 %v3453, %v3453
      %v3462 = vpack.c.bf16 %v3454, %v3454
      %v3463 = vpack.c.bf16 %v3455, %v3455
      %v3464 = vld [vmem:[%s3] sm:$0xff]
      %v3465 = vld [vmem:[%s3 + $0x8] sm:$0xff]
      %v3466 = vld [vmem:[%s3 + $0x10] sm:$0xff]
      %v3467 = vld [vmem:[%s3 + $0x18] sm:$0xff]
      %v3468 = vld [vmem:[%s3 + $0x20] sm:$0xff]
      %v3469 = vld [vmem:[%s3 + $0x28] sm:$0xff]
      %v3470 = vld [vmem:[%s3 + $0x30] sm:$0xff]
      %v3471 = vld [vmem:[%s3 + $0x38] sm:$0xff]
      %v3472 = vld [vmem:[%s3 + $0x40] sm:$0xff]
      %v3473 = vld [vmem:[%s3 + $0x48] sm:$0xff]
      %v3474 = vld [vmem:[%s3 + $0x50] sm:$0xff]
      %v3475 = vld [vmem:[%s3 + $0x58] sm:$0xff]
      %v3476 = vld [vmem:[%s3 + $0x60] sm:$0xff]
      %v3477 = vld [vmem:[%s3 + $0x68] sm:$0xff]
      %v3478 = vld [vmem:[%s3 + $0x70] sm:$0xff]
      %v3479 = vld [vmem:[%s3 + $0x78] sm:$0xff]
      %v3480 = vld [vmem:[%s3 + $0x80] sm:$0xff]
      %v3481 = vld [vmem:[%s3 + $0x88] sm:$0xff]
      %v3482 = vld [vmem:[%s3 + $0x90] sm:$0xff]
      %v3483 = vld [vmem:[%s3 + $0x98] sm:$0xff]
      %v3484 = vld [vmem:[%s3 + $0xa0] sm:$0xff]
      %v3485 = vld [vmem:[%s3 + $0xa8] sm:$0xff]
      %v3486 = vld [vmem:[%s3 + $0xb0] sm:$0xff]
      %v3487 = vld [vmem:[%s3 + $0xb8] sm:$0xff]
      %v3488 = vld [vmem:[%s3 + $0xc0] sm:$0xff]
      %v3489 = vld [vmem:[%s3 + $0xc8] sm:$0xff]
      %v3490 = vld [vmem:[%s3 + $0xd0] sm:$0xff]
      %v3491 = vld [vmem:[%s3 + $0xd8] sm:$0xff]
      %v3492 = vld [vmem:[%s3 + $0xe0] sm:$0xff]
      %v3493 = vld [vmem:[%s3 + $0xe8] sm:$0xff]
      %v3494 = vld [vmem:[%s3 + $0xf0] sm:$0xff]
      %v3495 = vld [vmem:[%s3 + $0xf8] sm:$0xff]
      %v3496 = vld [vmem:[%s3 + $0x100] sm:$0xff]
      %v3497 = vld [vmem:[%s3 + $0x108] sm:$0xff]
      %v3498 = vld [vmem:[%s3 + $0x110] sm:$0xff]
      %v3499 = vld [vmem:[%s3 + $0x118] sm:$0xff]
      %v3500 = vld [vmem:[%s3 + $0x120] sm:$0xff]
      %v3501 = vld [vmem:[%s3 + $0x128] sm:$0xff]
      %v3502 = vld [vmem:[%s3 + $0x130] sm:$0xff]
      %v3503 = vld [vmem:[%s3 + $0x138] sm:$0xff]
      %v3504 = vld [vmem:[%s3 + $0x140] sm:$0xff]
      %v3505 = vld [vmem:[%s3 + $0x148] sm:$0xff]
      %v3506 = vld [vmem:[%s3 + $0x150] sm:$0xff]
      %v3507 = vld [vmem:[%s3 + $0x158] sm:$0xff]
      %v3508 = vld [vmem:[%s3 + $0x160] sm:$0xff]
      %v3509 = vld [vmem:[%s3 + $0x168] sm:$0xff]
      %v3510 = vld [vmem:[%s3 + $0x170] sm:$0xff]
      %v3511 = vld [vmem:[%s3 + $0x178] sm:$0xff]
      %v3512 = vld [vmem:[%s3 + $0x180] sm:$0xff]
      %v3513 = vld [vmem:[%s3 + $0x188] sm:$0xff]
      %v3514 = vld [vmem:[%s3 + $0x190] sm:$0xff]
      %v3515 = vld [vmem:[%s3 + $0x198] sm:$0xff]
      %v3516 = vld [vmem:[%s3 + $0x1a0] sm:$0xff]
      %v3517 = vld [vmem:[%s3 + $0x1a8] sm:$0xff]
      %v3518 = vld [vmem:[%s3 + $0x1b0] sm:$0xff]
      %v3519 = vld [vmem:[%s3 + $0x1b8] sm:$0xff]
      %v3520 = vld [vmem:[%s3 + $0x1c0] sm:$0xff]
      %v3521 = vld [vmem:[%s3 + $0x1c8] sm:$0xff]
      %v3522 = vld [vmem:[%s3 + $0x1d0] sm:$0xff]
      %v3523 = vld [vmem:[%s3 + $0x1d8] sm:$0xff]
      %v3524 = vld [vmem:[%s3 + $0x1e0] sm:$0xff]
      %v3525 = vld [vmem:[%s3 + $0x1e8] sm:$0xff]
      %v3526 = vld [vmem:[%s3 + $0x1f0] sm:$0xff]
      %v3527 = vld [vmem:[%s3 + $0x1f8] sm:$0xff]
      %v3528 = vld [vmem:[%s3 + $0x200] sm:$0xff]
      %v3529 = vld [vmem:[%s3 + $0x208] sm:$0xff]
      %v3530 = vld [vmem:[%s3 + $0x210] sm:$0xff]
      %v3531 = vld [vmem:[%s3 + $0x218] sm:$0xff]
      %v3532 = vld [vmem:[%s3 + $0x220] sm:$0xff]
      %v3533 = vld [vmem:[%s3 + $0x228] sm:$0xff]
      %v3534 = vld [vmem:[%s3 + $0x230] sm:$0xff]
      %v3535 = vld [vmem:[%s3 + $0x238] sm:$0xff]
      %v3536 = vld [vmem:[%s3 + $0x240] sm:$0xff]
      %v3537 = vld [vmem:[%s3 + $0x248] sm:$0xff]
      %v3538 = vld [vmem:[%s3 + $0x250] sm:$0xff]
      %v3539 = vld [vmem:[%s3 + $0x258] sm:$0xff]
      %v3540 = vld [vmem:[%s3 + $0x260] sm:$0xff]
      %v3541 = vld [vmem:[%s3 + $0x268] sm:$0xff]
      %v3542 = vld [vmem:[%s3 + $0x270] sm:$0xff]
      %v3543 = vld [vmem:[%s3 + $0x278] sm:$0xff]
      %v3544 = vld [vmem:[%s3 + $0x280] sm:$0xff]
      %v3545 = vld [vmem:[%s3 + $0x288] sm:$0xff]
      %v3546 = vld [vmem:[%s3 + $0x290] sm:$0xff]
      %v3547 = vld [vmem:[%s3 + $0x298] sm:$0xff]
      %v3548 = vld [vmem:[%s3 + $0x2a0] sm:$0xff]
      %v3549 = vld [vmem:[%s3 + $0x2a8] sm:$0xff]
      %v3550 = vld [vmem:[%s3 + $0x2b0] sm:$0xff]
      %v3551 = vld [vmem:[%s3 + $0x2b8] sm:$0xff]
      %v3552 = vld [vmem:[%s3 + $0x2c0] sm:$0xff]
      %v3553 = vld [vmem:[%s3 + $0x2c8] sm:$0xff]
      %v3554 = vld [vmem:[%s3 + $0x2d0] sm:$0xff]
      %v3555 = vld [vmem:[%s3 + $0x2d8] sm:$0xff]
      %v3556 = vld [vmem:[%s3 + $0x2e0] sm:$0xff]
      %v3557 = vld [vmem:[%s3 + $0x2e8] sm:$0xff]
      %v3558 = vld [vmem:[%s3 + $0x2f0] sm:$0xff]
      %v3559 = vld [vmem:[%s3 + $0x2f8] sm:$0xff]
      %v3560 = vld [vmem:[%s3 + $0x300] sm:$0xff]
      %v3561 = vld [vmem:[%s3 + $0x308] sm:$0xff]
      %v3562 = vld [vmem:[%s3 + $0x310] sm:$0xff]
      %v3563 = vld [vmem:[%s3 + $0x318] sm:$0xff]
      %v3564 = vld [vmem:[%s3 + $0x320] sm:$0xff]
      %v3565 = vld [vmem:[%s3 + $0x328] sm:$0xff]
      %v3566 = vld [vmem:[%s3 + $0x330] sm:$0xff]
      %v3567 = vld [vmem:[%s3 + $0x338] sm:$0xff]
      %v3568 = vld [vmem:[%s3 + $0x340] sm:$0xff]
      %v3569 = vld [vmem:[%s3 + $0x348] sm:$0xff]
      %v3570 = vld [vmem:[%s3 + $0x350] sm:$0xff]
      %v3571 = vld [vmem:[%s3 + $0x358] sm:$0xff]
      %v3572 = vld [vmem:[%s3 + $0x360] sm:$0xff]
      %v3573 = vld [vmem:[%s3 + $0x368] sm:$0xff]
      %v3574 = vld [vmem:[%s3 + $0x370] sm:$0xff]
      %v3575 = vld [vmem:[%s3 + $0x378] sm:$0xff]
      %v3576 = vld [vmem:[%s3 + $0x380] sm:$0xff]
      %v3577 = vld [vmem:[%s3 + $0x388] sm:$0xff]
      %v3578 = vld [vmem:[%s3 + $0x390] sm:$0xff]
      %v3579 = vld [vmem:[%s3 + $0x398] sm:$0xff]
      %v3580 = vld [vmem:[%s3 + $0x3a0] sm:$0xff]
      %v3581 = vld [vmem:[%s3 + $0x3a8] sm:$0xff]
      %v3582 = vld [vmem:[%s3 + $0x3b0] sm:$0xff]
      %v3583 = vld [vmem:[%s3 + $0x3b8] sm:$0xff]
      %v3584 = vld [vmem:[%s3 + $0x3c0] sm:$0xff]
      %v3585 = vld [vmem:[%s3 + $0x3c8] sm:$0xff]
      %v3586 = vld [vmem:[%s3 + $0x3d0] sm:$0xff]
      %v3587 = vld [vmem:[%s3 + $0x3d8] sm:$0xff]
      %v3588 = vld [vmem:[%s3 + $0x3e0] sm:$0xff]
      %v3589 = vld [vmem:[%s3 + $0x3e8] sm:$0xff]
      %v3590 = vld [vmem:[%s3 + $0x3f0] sm:$0xff]
      %v3591 = vld [vmem:[%s3 + $0x3f8] sm:$0xff]
      %s3592 = scalar_lea.vmem %s3, 1024
      %v3593 = vld [vmem:[%s3592] sm:$0xff]
      %v3594 = vld [vmem:[%s3592 + $0x8] sm:$0xff]
      %v3595 = vld [vmem:[%s3592 + $0x10] sm:$0xff]
      %v3596 = vld [vmem:[%s3592 + $0x18] sm:$0xff]
      %v3597 = vld [vmem:[%s3592 + $0x20] sm:$0xff]
      %v3598 = vld [vmem:[%s3592 + $0x28] sm:$0xff]
      %v3599 = vld [vmem:[%s3592 + $0x30] sm:$0xff]
      %v3600 = vld [vmem:[%s3592 + $0x38] sm:$0xff]
      %v3601 = vld [vmem:[%s3592 + $0x40] sm:$0xff]
      %v3602 = vld [vmem:[%s3592 + $0x48] sm:$0xff]
      %v3603 = vld [vmem:[%s3592 + $0x50] sm:$0xff]
      %v3604 = vld [vmem:[%s3592 + $0x58] sm:$0xff]
      %v3605 = vld [vmem:[%s3592 + $0x60] sm:$0xff]
      %v3606 = vld [vmem:[%s3592 + $0x68] sm:$0xff]
      %v3607 = vld [vmem:[%s3592 + $0x70] sm:$0xff]
      %v3608 = vld [vmem:[%s3592 + $0x78] sm:$0xff]
      %v3609 = vld [vmem:[%s3592 + $0x80] sm:$0xff]
      %v3610 = vld [vmem:[%s3592 + $0x88] sm:$0xff]
      %v3611 = vld [vmem:[%s3592 + $0x90] sm:$0xff]
      %v3612 = vld [vmem:[%s3592 + $0x98] sm:$0xff]
      %v3613 = vld [vmem:[%s3592 + $0xa0] sm:$0xff]
      %v3614 = vld [vmem:[%s3592 + $0xa8] sm:$0xff]
      %v3615 = vld [vmem:[%s3592 + $0xb0] sm:$0xff]
      %v3616 = vld [vmem:[%s3592 + $0xb8] sm:$0xff]
      %v3617 = vld [vmem:[%s3592 + $0xc0] sm:$0xff]
      %v3618 = vld [vmem:[%s3592 + $0xc8] sm:$0xff]
      %v3619 = vld [vmem:[%s3592 + $0xd0] sm:$0xff]
      %v3620 = vld [vmem:[%s3592 + $0xd8] sm:$0xff]
      %v3621 = vld [vmem:[%s3592 + $0xe0] sm:$0xff]
      %v3622 = vld [vmem:[%s3592 + $0xe8] sm:$0xff]
      %v3623 = vld [vmem:[%s3592 + $0xf0] sm:$0xff]
      %v3624 = vld [vmem:[%s3592 + $0xf8] sm:$0xff]
      %v3625 = vld [vmem:[%s3592 + $0x100] sm:$0xff]
      %v3626 = vld [vmem:[%s3592 + $0x108] sm:$0xff]
      %v3627 = vld [vmem:[%s3592 + $0x110] sm:$0xff]
      %v3628 = vld [vmem:[%s3592 + $0x118] sm:$0xff]
      %v3629 = vld [vmem:[%s3592 + $0x120] sm:$0xff]
      %v3630 = vld [vmem:[%s3592 + $0x128] sm:$0xff]
      %v3631 = vld [vmem:[%s3592 + $0x130] sm:$0xff]
      %v3632 = vld [vmem:[%s3592 + $0x138] sm:$0xff]
      %v3633 = vld [vmem:[%s3592 + $0x140] sm:$0xff]
      %v3634 = vld [vmem:[%s3592 + $0x148] sm:$0xff]
      %v3635 = vld [vmem:[%s3592 + $0x150] sm:$0xff]
      %v3636 = vld [vmem:[%s3592 + $0x158] sm:$0xff]
      %v3637 = vld [vmem:[%s3592 + $0x160] sm:$0xff]
      %v3638 = vld [vmem:[%s3592 + $0x168] sm:$0xff]
      %v3639 = vld [vmem:[%s3592 + $0x170] sm:$0xff]
      %v3640 = vld [vmem:[%s3592 + $0x178] sm:$0xff]
      %v3641 = vld [vmem:[%s3592 + $0x180] sm:$0xff]
      %v3642 = vld [vmem:[%s3592 + $0x188] sm:$0xff]
      %v3643 = vld [vmem:[%s3592 + $0x190] sm:$0xff]
      %v3644 = vld [vmem:[%s3592 + $0x198] sm:$0xff]
      %v3645 = vld [vmem:[%s3592 + $0x1a0] sm:$0xff]
      %v3646 = vld [vmem:[%s3592 + $0x1a8] sm:$0xff]
      %v3647 = vld [vmem:[%s3592 + $0x1b0] sm:$0xff]
      %v3648 = vld [vmem:[%s3592 + $0x1b8] sm:$0xff]
      %v3649 = vld [vmem:[%s3592 + $0x1c0] sm:$0xff]
      %v3650 = vld [vmem:[%s3592 + $0x1c8] sm:$0xff]
      %v3651 = vld [vmem:[%s3592 + $0x1d0] sm:$0xff]
      %v3652 = vld [vmem:[%s3592 + $0x1d8] sm:$0xff]
      %v3653 = vld [vmem:[%s3592 + $0x1e0] sm:$0xff]
      %v3654 = vld [vmem:[%s3592 + $0x1e8] sm:$0xff]
      %v3655 = vld [vmem:[%s3592 + $0x1f0] sm:$0xff]
      %v3656 = vld [vmem:[%s3592 + $0x1f8] sm:$0xff]
      %v3657 = vld [vmem:[%s3592 + $0x200] sm:$0xff]
      %v3658 = vld [vmem:[%s3592 + $0x208] sm:$0xff]
      %v3659 = vld [vmem:[%s3592 + $0x210] sm:$0xff]
      %v3660 = vld [vmem:[%s3592 + $0x218] sm:$0xff]
      %v3661 = vld [vmem:[%s3592 + $0x220] sm:$0xff]
      %v3662 = vld [vmem:[%s3592 + $0x228] sm:$0xff]
      %v3663 = vld [vmem:[%s3592 + $0x230] sm:$0xff]
      %v3664 = vld [vmem:[%s3592 + $0x238] sm:$0xff]
      %v3665 = vld [vmem:[%s3592 + $0x240] sm:$0xff]
      %v3666 = vld [vmem:[%s3592 + $0x248] sm:$0xff]
      %v3667 = vld [vmem:[%s3592 + $0x250] sm:$0xff]
      %v3668 = vld [vmem:[%s3592 + $0x258] sm:$0xff]
      %v3669 = vld [vmem:[%s3592 + $0x260] sm:$0xff]
      %v3670 = vld [vmem:[%s3592 + $0x268] sm:$0xff]
      %v3671 = vld [vmem:[%s3592 + $0x270] sm:$0xff]
      %v3672 = vld [vmem:[%s3592 + $0x278] sm:$0xff]
      %v3673 = vld [vmem:[%s3592 + $0x280] sm:$0xff]
      %v3674 = vld [vmem:[%s3592 + $0x288] sm:$0xff]
      %v3675 = vld [vmem:[%s3592 + $0x290] sm:$0xff]
      %v3676 = vld [vmem:[%s3592 + $0x298] sm:$0xff]
      %v3677 = vld [vmem:[%s3592 + $0x2a0] sm:$0xff]
      %v3678 = vld [vmem:[%s3592 + $0x2a8] sm:$0xff]
      %v3679 = vld [vmem:[%s3592 + $0x2b0] sm:$0xff]
      %v3680 = vld [vmem:[%s3592 + $0x2b8] sm:$0xff]
      %v3681 = vld [vmem:[%s3592 + $0x2c0] sm:$0xff]
      %v3682 = vld [vmem:[%s3592 + $0x2c8] sm:$0xff]
      %v3683 = vld [vmem:[%s3592 + $0x2d0] sm:$0xff]
      %v3684 = vld [vmem:[%s3592 + $0x2d8] sm:$0xff]
      %v3685 = vld [vmem:[%s3592 + $0x2e0] sm:$0xff]
      %v3686 = vld [vmem:[%s3592 + $0x2e8] sm:$0xff]
      %v3687 = vld [vmem:[%s3592 + $0x2f0] sm:$0xff]
      %v3688 = vld [vmem:[%s3592 + $0x2f8] sm:$0xff]
      %v3689 = vld [vmem:[%s3592 + $0x300] sm:$0xff]
      %v3690 = vld [vmem:[%s3592 + $0x308] sm:$0xff]
      %v3691 = vld [vmem:[%s3592 + $0x310] sm:$0xff]
      %v3692 = vld [vmem:[%s3592 + $0x318] sm:$0xff]
      %v3693 = vld [vmem:[%s3592 + $0x320] sm:$0xff]
      %v3694 = vld [vmem:[%s3592 + $0x328] sm:$0xff]
      %v3695 = vld [vmem:[%s3592 + $0x330] sm:$0xff]
      %v3696 = vld [vmem:[%s3592 + $0x338] sm:$0xff]
      %v3697 = vld [vmem:[%s3592 + $0x340] sm:$0xff]
      %v3698 = vld [vmem:[%s3592 + $0x348] sm:$0xff]
      %v3699 = vld [vmem:[%s3592 + $0x350] sm:$0xff]
      %v3700 = vld [vmem:[%s3592 + $0x358] sm:$0xff]
      %v3701 = vld [vmem:[%s3592 + $0x360] sm:$0xff]
      %v3702 = vld [vmem:[%s3592 + $0x368] sm:$0xff]
      %v3703 = vld [vmem:[%s3592 + $0x370] sm:$0xff]
      %v3704 = vld [vmem:[%s3592 + $0x378] sm:$0xff]
      %v3705 = vld [vmem:[%s3592 + $0x380] sm:$0xff]
      %v3706 = vld [vmem:[%s3592 + $0x388] sm:$0xff]
      %v3707 = vld [vmem:[%s3592 + $0x390] sm:$0xff]
      %v3708 = vld [vmem:[%s3592 + $0x398] sm:$0xff]
      %v3709 = vld [vmem:[%s3592 + $0x3a0] sm:$0xff]
      %v3710 = vld [vmem:[%s3592 + $0x3a8] sm:$0xff]
      %v3711 = vld [vmem:[%s3592 + $0x3b0] sm:$0xff]
      %v3712 = vld [vmem:[%s3592 + $0x3b8] sm:$0xff]
      %v3713 = vld [vmem:[%s3592 + $0x3c0] sm:$0xff]
      %v3714 = vld [vmem:[%s3592 + $0x3c8] sm:$0xff]
      %v3715 = vld [vmem:[%s3592 + $0x3d0] sm:$0xff]
      %v3716 = vld [vmem:[%s3592 + $0x3d8] sm:$0xff]
      %v3717 = vld [vmem:[%s3592 + $0x3e0] sm:$0xff]
      %v3718 = vld [vmem:[%s3592 + $0x3e8] sm:$0xff]
      %v3719 = vld [vmem:[%s3592 + $0x3f0] sm:$0xff]
      %v3720 = vld [vmem:[%s3592 + $0x3f8] sm:$0xff]
      %v3722 = vshrl.u32 %v3456, 16
      %v3724 = vshll.u32 %v3456, 16
      %v3726 = vrot.slane %v3724, 1
      %v3727 = vor.u32 %v3722, %v3726
      %v3729 = vshll.u32 %v3460, 16
      %v3731 = vrot.slane %v3729, 1
      %v3732 = vsel %vm599, %v3727, %v3731
      %v3734 = vshrl.u32 %v3457, 16
      %v3736 = vshll.u32 %v3457, 16
      %v3738 = vrot.slane %v3736, 1
      %v3739 = vor.u32 %v3734, %v3738
      %v3741 = vshll.u32 %v3461, 16
      %v3743 = vrot.slane %v3741, 1
      %v3744 = vsel %vm599, %v3739, %v3743
      %v3746 = vshrl.u32 %v3458, 16
      %v3748 = vshll.u32 %v3458, 16
      %v3750 = vrot.slane %v3748, 1
      %v3751 = vor.u32 %v3746, %v3750
      %v3753 = vshll.u32 %v3462, 16
      %v3755 = vrot.slane %v3753, 1
      %v3756 = vsel %vm599, %v3751, %v3755
      %v3758 = vshrl.u32 %v3459, 16
      %v3760 = vshll.u32 %v3459, 16
      %v3762 = vrot.slane %v3760, 1
      %v3763 = vor.u32 %v3758, %v3762
      %v3765 = vshll.u32 %v3463, 16
      %v3767 = vrot.slane %v3765, 1
      %v3768 = vsel %vm599, %v3763, %v3767
      %v3901 = vunpack.c.l.b16 %v3593
      %v3902 = vunpack.c.h.b16 %v3593
      %v3903 = vunpack.c.l.b16 %v3594
      %v3904 = vunpack.c.h.b16 %v3594
      %v3905 = vunpack.c.l.b16 %v3595
      %v3906 = vunpack.c.h.b16 %v3595
      %v3907 = vunpack.c.l.b16 %v3596
      %v3908 = vunpack.c.h.b16 %v3596
      %v3909 = vunpack.c.l.b16 %v3597
      %v3910 = vunpack.c.h.b16 %v3597
      %v3911 = vunpack.c.l.b16 %v3598
      %v3912 = vunpack.c.h.b16 %v3598
      %v3913 = vunpack.c.l.b16 %v3599
      %v3914 = vunpack.c.h.b16 %v3599
      %v3915 = vunpack.c.l.b16 %v3600
      %v3916 = vunpack.c.h.b16 %v3600
      %v3917 = vunpack.c.l.b16 %v3601
      %v3918 = vunpack.c.h.b16 %v3601
      %v3919 = vunpack.c.l.b16 %v3602
      %v3920 = vunpack.c.h.b16 %v3602
      %v3921 = vunpack.c.l.b16 %v3603
      %v3922 = vunpack.c.h.b16 %v3603
      %v3923 = vunpack.c.l.b16 %v3604
      %v3924 = vunpack.c.h.b16 %v3604
      %v3925 = vunpack.c.l.b16 %v3605
      %v3926 = vunpack.c.h.b16 %v3605
      %v3927 = vunpack.c.l.b16 %v3606
      %v3928 = vunpack.c.h.b16 %v3606
      %v3929 = vunpack.c.l.b16 %v3607
      %v3930 = vunpack.c.h.b16 %v3607
      %v3931 = vunpack.c.l.b16 %v3608
      %v3932 = vunpack.c.h.b16 %v3608
      %v3933 = vunpack.c.l.b16 %v3609
      %v3934 = vunpack.c.h.b16 %v3609
      %v3935 = vunpack.c.l.b16 %v3610
      %v3936 = vunpack.c.h.b16 %v3610
      %v3937 = vunpack.c.l.b16 %v3611
      %v3938 = vunpack.c.h.b16 %v3611
      %v3939 = vunpack.c.l.b16 %v3612
      %v3940 = vunpack.c.h.b16 %v3612
      %v3941 = vunpack.c.l.b16 %v3613
      %v3942 = vunpack.c.h.b16 %v3613
      %v3943 = vunpack.c.l.b16 %v3614
      %v3944 = vunpack.c.h.b16 %v3614
      %v3945 = vunpack.c.l.b16 %v3615
      %v3946 = vunpack.c.h.b16 %v3615
      %v3947 = vunpack.c.l.b16 %v3616
      %v3948 = vunpack.c.h.b16 %v3616
      %v3949 = vunpack.c.l.b16 %v3617
      %v3950 = vunpack.c.h.b16 %v3617
      %v3951 = vunpack.c.l.b16 %v3618
      %v3952 = vunpack.c.h.b16 %v3618
      %v3953 = vunpack.c.l.b16 %v3619
      %v3954 = vunpack.c.h.b16 %v3619
      %v3955 = vunpack.c.l.b16 %v3620
      %v3956 = vunpack.c.h.b16 %v3620
      %v3957 = vunpack.c.l.b16 %v3621
      %v3958 = vunpack.c.h.b16 %v3621
      %v3959 = vunpack.c.l.b16 %v3622
      %v3960 = vunpack.c.h.b16 %v3622
      %v3961 = vunpack.c.l.b16 %v3623
      %v3962 = vunpack.c.h.b16 %v3623
      %v3963 = vunpack.c.l.b16 %v3624
      %v3964 = vunpack.c.h.b16 %v3624
      %v3965 = vunpack.c.l.b16 %v3625
      %v3966 = vunpack.c.h.b16 %v3625
      %v3967 = vunpack.c.l.b16 %v3626
      %v3968 = vunpack.c.h.b16 %v3626
      %v3969 = vunpack.c.l.b16 %v3627
      %v3970 = vunpack.c.h.b16 %v3627
      %v3971 = vunpack.c.l.b16 %v3628
      %v3972 = vunpack.c.h.b16 %v3628
      %v3973 = vunpack.c.l.b16 %v3629
      %v3974 = vunpack.c.h.b16 %v3629
      %v3975 = vunpack.c.l.b16 %v3630
      %v3976 = vunpack.c.h.b16 %v3630
      %v3977 = vunpack.c.l.b16 %v3631
      %v3978 = vunpack.c.h.b16 %v3631
      %v3979 = vunpack.c.l.b16 %v3632
      %v3980 = vunpack.c.h.b16 %v3632
      %v3981 = vunpack.c.l.b16 %v3633
      %v3982 = vunpack.c.h.b16 %v3633
      %v3983 = vunpack.c.l.b16 %v3634
      %v3984 = vunpack.c.h.b16 %v3634
      %v3985 = vunpack.c.l.b16 %v3635
      %v3986 = vunpack.c.h.b16 %v3635
      %v3987 = vunpack.c.l.b16 %v3636
      %v3988 = vunpack.c.h.b16 %v3636
      %v3989 = vunpack.c.l.b16 %v3637
      %v3990 = vunpack.c.h.b16 %v3637
      %v3991 = vunpack.c.l.b16 %v3638
      %v3992 = vunpack.c.h.b16 %v3638
      %v3993 = vunpack.c.l.b16 %v3639
      %v3994 = vunpack.c.h.b16 %v3639
      %v3995 = vunpack.c.l.b16 %v3640
      %v3996 = vunpack.c.h.b16 %v3640
      %v3997 = vunpack.c.l.b16 %v3641
      %v3998 = vunpack.c.h.b16 %v3641
      %v3999 = vunpack.c.l.b16 %v3642
      %v4000 = vunpack.c.h.b16 %v3642
      %v4001 = vunpack.c.l.b16 %v3643
      %v4002 = vunpack.c.h.b16 %v3643
      %v4003 = vunpack.c.l.b16 %v3644
      %v4004 = vunpack.c.h.b16 %v3644
      %v4005 = vunpack.c.l.b16 %v3645
      %v4006 = vunpack.c.h.b16 %v3645
      %v4007 = vunpack.c.l.b16 %v3646
      %v4008 = vunpack.c.h.b16 %v3646
      %v4009 = vunpack.c.l.b16 %v3647
      %v4010 = vunpack.c.h.b16 %v3647
      %v4011 = vunpack.c.l.b16 %v3648
      %v4012 = vunpack.c.h.b16 %v3648
      %v4013 = vunpack.c.l.b16 %v3649
      %v4014 = vunpack.c.h.b16 %v3649
      %v4015 = vunpack.c.l.b16 %v3650
      %v4016 = vunpack.c.h.b16 %v3650
      %v4017 = vunpack.c.l.b16 %v3651
      %v4018 = vunpack.c.h.b16 %v3651
      %v4019 = vunpack.c.l.b16 %v3652
      %v4020 = vunpack.c.h.b16 %v3652
      %v4021 = vunpack.c.l.b16 %v3653
      %v4022 = vunpack.c.h.b16 %v3653
      %v4023 = vunpack.c.l.b16 %v3654
      %v4024 = vunpack.c.h.b16 %v3654
      %v4025 = vunpack.c.l.b16 %v3655
      %v4026 = vunpack.c.h.b16 %v3655
      %v4027 = vunpack.c.l.b16 %v3656
      %v4028 = vunpack.c.h.b16 %v3656
      %v4029 = vunpack.c.l.b16 %v3657
      %v4030 = vunpack.c.h.b16 %v3657
      %v4031 = vunpack.c.l.b16 %v3658
      %v4032 = vunpack.c.h.b16 %v3658
      %v4033 = vunpack.c.l.b16 %v3659
      %v4034 = vunpack.c.h.b16 %v3659
      %v4035 = vunpack.c.l.b16 %v3660
      %v4036 = vunpack.c.h.b16 %v3660
      %v4037 = vunpack.c.l.b16 %v3661
      %v4038 = vunpack.c.h.b16 %v3661
      %v4039 = vunpack.c.l.b16 %v3662
      %v4040 = vunpack.c.h.b16 %v3662
      %v4041 = vunpack.c.l.b16 %v3663
      %v4042 = vunpack.c.h.b16 %v3663
      %v4043 = vunpack.c.l.b16 %v3664
      %v4044 = vunpack.c.h.b16 %v3664
      %v4045 = vunpack.c.l.b16 %v3665
      %v4046 = vunpack.c.h.b16 %v3665
      %v4047 = vunpack.c.l.b16 %v3666
      %v4048 = vunpack.c.h.b16 %v3666
      %v4049 = vunpack.c.l.b16 %v3667
      %v4050 = vunpack.c.h.b16 %v3667
      %v4051 = vunpack.c.l.b16 %v3668
      %v4052 = vunpack.c.h.b16 %v3668
      %v4053 = vunpack.c.l.b16 %v3669
      %v4054 = vunpack.c.h.b16 %v3669
      %v4055 = vunpack.c.l.b16 %v3670
      %v4056 = vunpack.c.h.b16 %v3670
      %v4057 = vunpack.c.l.b16 %v3671
      %v4058 = vunpack.c.h.b16 %v3671
      %v4059 = vunpack.c.l.b16 %v3672
      %v4060 = vunpack.c.h.b16 %v3672
      %v4061 = vunpack.c.l.b16 %v3673
      %v4062 = vunpack.c.h.b16 %v3673
      %v4063 = vunpack.c.l.b16 %v3674
      %v4064 = vunpack.c.h.b16 %v3674
      %v4065 = vunpack.c.l.b16 %v3675
      %v4066 = vunpack.c.h.b16 %v3675
      %v4067 = vunpack.c.l.b16 %v3676
      %v4068 = vunpack.c.h.b16 %v3676
      %v4069 = vunpack.c.l.b16 %v3677
      %v4070 = vunpack.c.h.b16 %v3677
      %v4071 = vunpack.c.l.b16 %v3678
      %v4072 = vunpack.c.h.b16 %v3678
      %v4073 = vunpack.c.l.b16 %v3679
      %v4074 = vunpack.c.h.b16 %v3679
      %v4075 = vunpack.c.l.b16 %v3680
      %v4076 = vunpack.c.h.b16 %v3680
      %v4077 = vunpack.c.l.b16 %v3681
      %v4078 = vunpack.c.h.b16 %v3681
      %v4079 = vunpack.c.l.b16 %v3682
      %v4080 = vunpack.c.h.b16 %v3682
      %v4081 = vunpack.c.l.b16 %v3683
      %v4082 = vunpack.c.h.b16 %v3683
      %v4083 = vunpack.c.l.b16 %v3684
      %v4084 = vunpack.c.h.b16 %v3684
      %v4085 = vunpack.c.l.b16 %v3685
      %v4086 = vunpack.c.h.b16 %v3685
      %v4087 = vunpack.c.l.b16 %v3686
      %v4088 = vunpack.c.h.b16 %v3686
      %v4089 = vunpack.c.l.b16 %v3687
      %v4090 = vunpack.c.h.b16 %v3687
      %v4091 = vunpack.c.l.b16 %v3688
      %v4092 = vunpack.c.h.b16 %v3688
      %v4093 = vunpack.c.l.b16 %v3689
      %v4094 = vunpack.c.h.b16 %v3689
      %v4095 = vunpack.c.l.b16 %v3690
      %v4096 = vunpack.c.h.b16 %v3690
      %v4097 = vunpack.c.l.b16 %v3691
      %v4098 = vunpack.c.h.b16 %v3691
      %v4099 = vunpack.c.l.b16 %v3692
      %v4100 = vunpack.c.h.b16 %v3692
      %v4101 = vunpack.c.l.b16 %v3693
      %v4102 = vunpack.c.h.b16 %v3693
      %v4103 = vunpack.c.l.b16 %v3694
      %v4104 = vunpack.c.h.b16 %v3694
      %v4105 = vunpack.c.l.b16 %v3695
      %v4106 = vunpack.c.h.b16 %v3695
      %v4107 = vunpack.c.l.b16 %v3696
      %v4108 = vunpack.c.h.b16 %v3696
      %v4109 = vunpack.c.l.b16 %v3697
      %v4110 = vunpack.c.h.b16 %v3697
      %v4111 = vunpack.c.l.b16 %v3698
      %v4112 = vunpack.c.h.b16 %v3698
      %v4113 = vunpack.c.l.b16 %v3699
      %v4114 = vunpack.c.h.b16 %v3699
      %v4115 = vunpack.c.l.b16 %v3700
      %v4116 = vunpack.c.h.b16 %v3700
      %v4117 = vunpack.c.l.b16 %v3701
      %v4118 = vunpack.c.h.b16 %v3701
      %v4119 = vunpack.c.l.b16 %v3702
      %v4120 = vunpack.c.h.b16 %v3702
      %v4121 = vunpack.c.l.b16 %v3703
      %v4122 = vunpack.c.h.b16 %v3703
      %v4123 = vunpack.c.l.b16 %v3704
      %v4124 = vunpack.c.h.b16 %v3704
      %v4125 = vunpack.c.l.b16 %v3705
      %v4126 = vunpack.c.h.b16 %v3705
      %v4127 = vunpack.c.l.b16 %v3706
      %v4128 = vunpack.c.h.b16 %v3706
      %v4129 = vunpack.c.l.b16 %v3707
      %v4130 = vunpack.c.h.b16 %v3707
      %v4131 = vunpack.c.l.b16 %v3708
      %v4132 = vunpack.c.h.b16 %v3708
      %v4133 = vunpack.c.l.b16 %v3709
      %v4134 = vunpack.c.h.b16 %v3709
      %v4135 = vunpack.c.l.b16 %v3710
      %v4136 = vunpack.c.h.b16 %v3710
      %v4137 = vunpack.c.l.b16 %v3711
      %v4138 = vunpack.c.h.b16 %v3711
      %v4139 = vunpack.c.l.b16 %v3712
      %v4140 = vunpack.c.h.b16 %v3712
      %v4141 = vunpack.c.l.b16 %v3713
      %v4142 = vunpack.c.h.b16 %v3713
      %v4143 = vunpack.c.l.b16 %v3714
      %v4144 = vunpack.c.h.b16 %v3714
      %v4145 = vunpack.c.l.b16 %v3715
      %v4146 = vunpack.c.h.b16 %v3715
      %v4147 = vunpack.c.l.b16 %v3716
      %v4148 = vunpack.c.h.b16 %v3716
      %v4149 = vunpack.c.l.b16 %v3717
      %v4150 = vunpack.c.h.b16 %v3717
      %v4151 = vunpack.c.l.b16 %v3718
      %v4152 = vunpack.c.h.b16 %v3718
      %v4153 = vunpack.c.l.b16 %v3719
      %v4154 = vunpack.c.h.b16 %v3719
      %v4155 = vunpack.c.l.b16 %v3720
      %v4156 = vunpack.c.h.b16 %v3720
      %v4157 = vpack.c.b16 %v3905, %v3901
      %v4158 = vpack.c.b16 %v3906, %v3902
      %v4159 = vpack.c.b16 %v3907, %v3903
      %v4160 = vpack.c.b16 %v3908, %v3904
      %v4161 = vpack.c.b16 %v3913, %v3909
      %v4162 = vpack.c.b16 %v3914, %v3910
      %v4163 = vpack.c.b16 %v3915, %v3911
      %v4164 = vpack.c.b16 %v3916, %v3912
      %v4165 = vpack.c.b16 %v3921, %v3917
      %v4166 = vpack.c.b16 %v3922, %v3918
      %v4167 = vpack.c.b16 %v3923, %v3919
      %v4168 = vpack.c.b16 %v3924, %v3920
      %v4169 = vpack.c.b16 %v3929, %v3925
      %v4170 = vpack.c.b16 %v3930, %v3926
      %v4171 = vpack.c.b16 %v3931, %v3927
      %v4172 = vpack.c.b16 %v3932, %v3928
      %v4173 = vpack.c.b16 %v3937, %v3933
      %v4174 = vpack.c.b16 %v3938, %v3934
      %v4175 = vpack.c.b16 %v3939, %v3935
      %v4176 = vpack.c.b16 %v3940, %v3936
      %v4177 = vpack.c.b16 %v3945, %v3941
      %v4178 = vpack.c.b16 %v3946, %v3942
      %v4179 = vpack.c.b16 %v3947, %v3943
      %v4180 = vpack.c.b16 %v3948, %v3944
      %v4181 = vpack.c.b16 %v3953, %v3949
      %v4182 = vpack.c.b16 %v3954, %v3950
      %v4183 = vpack.c.b16 %v3955, %v3951
      %v4184 = vpack.c.b16 %v3956, %v3952
      %v4185 = vpack.c.b16 %v3961, %v3957
      %v4186 = vpack.c.b16 %v3962, %v3958
      %v4187 = vpack.c.b16 %v3963, %v3959
      %v4188 = vpack.c.b16 %v3964, %v3960
      %v4189 = vpack.c.b16 %v3969, %v3965
      %v4190 = vpack.c.b16 %v3970, %v3966
      %v4191 = vpack.c.b16 %v3971, %v3967
      %v4192 = vpack.c.b16 %v3972, %v3968
      %v4193 = vpack.c.b16 %v3977, %v3973
      %v4194 = vpack.c.b16 %v3978, %v3974
      %v4195 = vpack.c.b16 %v3979, %v3975
      %v4196 = vpack.c.b16 %v3980, %v3976
      %v4197 = vpack.c.b16 %v3985, %v3981
      %v4198 = vpack.c.b16 %v3986, %v3982
      %v4199 = vpack.c.b16 %v3987, %v3983
      %v4200 = vpack.c.b16 %v3988, %v3984
      %v4201 = vpack.c.b16 %v3993, %v3989
      %v4202 = vpack.c.b16 %v3994, %v3990
      %v4203 = vpack.c.b16 %v3995, %v3991
      %v4204 = vpack.c.b16 %v3996, %v3992
      %v4205 = vpack.c.b16 %v4001, %v3997
      %v4206 = vpack.c.b16 %v4002, %v3998
      %v4207 = vpack.c.b16 %v4003, %v3999
      %v4208 = vpack.c.b16 %v4004, %v4000
      %v4209 = vpack.c.b16 %v4009, %v4005
      %v4210 = vpack.c.b16 %v4010, %v4006
      %v4211 = vpack.c.b16 %v4011, %v4007
      %v4212 = vpack.c.b16 %v4012, %v4008
      %v4213 = vpack.c.b16 %v4017, %v4013
      %v4214 = vpack.c.b16 %v4018, %v4014
      %v4215 = vpack.c.b16 %v4019, %v4015
      %v4216 = vpack.c.b16 %v4020, %v4016
      %v4217 = vpack.c.b16 %v4025, %v4021
      %v4218 = vpack.c.b16 %v4026, %v4022
      %v4219 = vpack.c.b16 %v4027, %v4023
      %v4220 = vpack.c.b16 %v4028, %v4024
      %v4221 = vpack.c.b16 %v4033, %v4029
      %v4222 = vpack.c.b16 %v4034, %v4030
      %v4223 = vpack.c.b16 %v4035, %v4031
      %v4224 = vpack.c.b16 %v4036, %v4032
      %v4225 = vpack.c.b16 %v4041, %v4037
      %v4226 = vpack.c.b16 %v4042, %v4038
      %v4227 = vpack.c.b16 %v4043, %v4039
      %v4228 = vpack.c.b16 %v4044, %v4040
      %v4229 = vpack.c.b16 %v4049, %v4045
      %v4230 = vpack.c.b16 %v4050, %v4046
      %v4231 = vpack.c.b16 %v4051, %v4047
      %v4232 = vpack.c.b16 %v4052, %v4048
      %v4233 = vpack.c.b16 %v4057, %v4053
      %v4234 = vpack.c.b16 %v4058, %v4054
      %v4235 = vpack.c.b16 %v4059, %v4055
      %v4236 = vpack.c.b16 %v4060, %v4056
      %v4237 = vpack.c.b16 %v4065, %v4061
      %v4238 = vpack.c.b16 %v4066, %v4062
      %v4239 = vpack.c.b16 %v4067, %v4063
      %v4240 = vpack.c.b16 %v4068, %v4064
      %v4241 = vpack.c.b16 %v4073, %v4069
      %v4242 = vpack.c.b16 %v4074, %v4070
      %v4243 = vpack.c.b16 %v4075, %v4071
      %v4244 = vpack.c.b16 %v4076, %v4072
      %v4245 = vpack.c.b16 %v4081, %v4077
      %v4246 = vpack.c.b16 %v4082, %v4078
      %v4247 = vpack.c.b16 %v4083, %v4079
      %v4248 = vpack.c.b16 %v4084, %v4080
      %v4249 = vpack.c.b16 %v4089, %v4085
      %v4250 = vpack.c.b16 %v4090, %v4086
      %v4251 = vpack.c.b16 %v4091, %v4087
      %v4252 = vpack.c.b16 %v4092, %v4088
      %v4253 = vpack.c.b16 %v4097, %v4093
      %v4254 = vpack.c.b16 %v4098, %v4094
      %v4255 = vpack.c.b16 %v4099, %v4095
      %v4256 = vpack.c.b16 %v4100, %v4096
      %v4257 = vpack.c.b16 %v4105, %v4101
      %v4258 = vpack.c.b16 %v4106, %v4102
      %v4259 = vpack.c.b16 %v4107, %v4103
      %v4260 = vpack.c.b16 %v4108, %v4104
      %v4261 = vpack.c.b16 %v4113, %v4109
      %v4262 = vpack.c.b16 %v4114, %v4110
      %v4263 = vpack.c.b16 %v4115, %v4111
      %v4264 = vpack.c.b16 %v4116, %v4112
      %v4265 = vpack.c.b16 %v4121, %v4117
      %v4266 = vpack.c.b16 %v4122, %v4118
      %v4267 = vpack.c.b16 %v4123, %v4119
      %v4268 = vpack.c.b16 %v4124, %v4120
      %v4269 = vpack.c.b16 %v4129, %v4125
      %v4270 = vpack.c.b16 %v4130, %v4126
      %v4271 = vpack.c.b16 %v4131, %v4127
      %v4272 = vpack.c.b16 %v4132, %v4128
      %v4273 = vpack.c.b16 %v4137, %v4133
      %v4274 = vpack.c.b16 %v4138, %v4134
      %v4275 = vpack.c.b16 %v4139, %v4135
      %v4276 = vpack.c.b16 %v4140, %v4136
      %v4277 = vpack.c.b16 %v4145, %v4141
      %v4278 = vpack.c.b16 %v4146, %v4142
      %v4279 = vpack.c.b16 %v4147, %v4143
      %v4280 = vpack.c.b16 %v4148, %v4144
      %v4281 = vpack.c.b16 %v4153, %v4149
      %v4282 = vpack.c.b16 %v4154, %v4150
      %v4283 = vpack.c.b16 %v4155, %v4151
      %v4284 = vpack.c.b16 %v4156, %v4152
      %4413 = vmatprep.subr.bf16.mxu0 %v4186
      %4414 = vmatpush1.bf16.msra.mxu0 %v4185
      %4415 = vmatprep.subr.bf16.mxu0 %v4182
      %4416 = vmatpush1.bf16.msra.mxu0 %v4181
      %4417 = vmatprep.subr.bf16.mxu0 %v4178
      %4418 = vmatpush1.bf16.msra.mxu0 %v4177
      %4419 = vmatprep.subr.bf16.mxu0 %v4174
      %4420 = vmatpush1.bf16.msra.mxu0 %v4173
      %4421 = vmatprep.subr.bf16.mxu0 %v4170
      %4422 = vmatpush1.bf16.msra.mxu0 %v4169
      %4423 = vmatprep.subr.bf16.mxu0 %v4166
      %4424 = vmatpush1.bf16.msra.mxu0 %v4165
      %4425 = vmatprep.subr.bf16.mxu0 %v4162
      %4426 = vmatpush1.bf16.msra.mxu0 %v4161
      %4427 = vmatprep.subr.bf16.mxu0 %v4158
      %4428 = vmatpush1.bf16.msra.mxu0 %v4157
      %4429 = vmatprep.subr.bf16.mxu0 %v4218
      %4430 = vmatpush2.bf16.msra.mxu0 %v4217
      %4431 = vmatprep.subr.bf16.mxu0 %v4214
      %4432 = vmatpush2.bf16.msra.mxu0 %v4213
      %4433 = vmatprep.subr.bf16.mxu0 %v4210
      %4434 = vmatpush2.bf16.msra.mxu0 %v4209
      %4435 = vmatprep.subr.bf16.mxu0 %v4206
      %4436 = vmatpush2.bf16.msra.mxu0 %v4205
      %4437 = vmatprep.subr.bf16.mxu0 %v4202
      %4438 = vmatpush2.bf16.msra.mxu0 %v4201
      %4439 = vmatprep.subr.bf16.mxu0 %v4198
      %4440 = vmatpush2.bf16.msra.mxu0 %v4197
      %4441 = vmatprep.subr.bf16.mxu0 %v4194
      %4442 = vmatpush2.bf16.msra.mxu0 %v4193
      %4443 = vmatprep.subr.bf16.mxu0 %v4190
      %4444 = vmatpush2.bf16.msra.mxu0 %v4189
      %4445 = vmatprep.mubr.bf16.mxu0 %v3744
      %4446 = vmatmul.mubr.bf16.gmra.mxu0 %v3732
      %v4447 = vpop.f32.mrf.mxu0
      %v4448 = vadd.f32 0.0, %v4447
      %v4449 = vpop.f32.mrf.mxu0
      %v4450 = vadd.f32 0.0, %v4449
      %v4451 = vpop.f32.mrf.mxu0
      %v4452 = vadd.f32 0.0, %v4451
      %v4453 = vpop.f32.mrf.mxu0
      %v4454 = vadd.f32 0.0, %v4453
      %4455 = vdwg.mxu0
      %4456 = vmatprep.subr.bf16.mxu0 %v4250
      %4457 = vmatpush1.bf16.msra.mxu0 %v4249
      %4458 = vmatprep.subr.bf16.mxu0 %v4246
      %4459 = vmatpush1.bf16.msra.mxu0 %v4245
      %4460 = vmatprep.subr.bf16.mxu0 %v4242
      %4461 = vmatpush1.bf16.msra.mxu0 %v4241
      %4462 = vmatprep.subr.bf16.mxu0 %v4238
      %4463 = vmatpush1.bf16.msra.mxu0 %v4237
      %4464 = vmatprep.subr.bf16.mxu0 %v4234
      %4465 = vmatpush1.bf16.msra.mxu0 %v4233
      %4466 = vmatprep.subr.bf16.mxu0 %v4230
      %4467 = vmatpush1.bf16.msra.mxu0 %v4229
      %4468 = vmatprep.subr.bf16.mxu0 %v4226
      %4469 = vmatpush1.bf16.msra.mxu0 %v4225
      %4470 = vmatprep.subr.bf16.mxu0 %v4222
      %4471 = vmatpush1.bf16.msra.mxu0 %v4221
      %4472 = vmatprep.subr.bf16.mxu0 %v4282
      %4473 = vmatpush2.bf16.msra.mxu0 %v4281
      %4474 = vmatprep.subr.bf16.mxu0 %v4278
      %4475 = vmatpush2.bf16.msra.mxu0 %v4277
      %4476 = vmatprep.subr.bf16.mxu0 %v4274
      %4477 = vmatpush2.bf16.msra.mxu0 %v4273
      %4478 = vmatprep.subr.bf16.mxu0 %v4270
      %4479 = vmatpush2.bf16.msra.mxu0 %v4269
      %4480 = vmatprep.subr.bf16.mxu0 %v4266
      %4481 = vmatpush2.bf16.msra.mxu0 %v4265
      %4482 = vmatprep.subr.bf16.mxu0 %v4262
      %4483 = vmatpush2.bf16.msra.mxu0 %v4261
      %4484 = vmatprep.subr.bf16.mxu0 %v4258
      %4485 = vmatpush2.bf16.msra.mxu0 %v4257
      %4486 = vmatprep.subr.bf16.mxu0 %v4254
      %4487 = vmatpush2.bf16.msra.mxu0 %v4253
      %4488 = vmatprep.mubr.bf16.mxu0 %v3768
      %4489 = vmatmul.mubr.bf16.gmra.mxu0 %v3756
      %v4490 = vpop.f32.mrf.mxu0
      %v4491 = vadd.f32 %v4448, %v4490
      %v4492 = vpop.f32.mrf.mxu0
      %v4493 = vadd.f32 %v4450, %v4492
      %v4494 = vpop.f32.mrf.mxu0
      %v4495 = vadd.f32 %v4452, %v4494
      %v4496 = vpop.f32.mrf.mxu0
      %v4497 = vadd.f32 %v4454, %v4496
      %4498 = vdwg.mxu0
      %4499 = vmatprep.subr.bf16.mxu0 %v4188
      %4500 = vmatpush1.bf16.msra.mxu0 %v4187
      %4501 = vmatprep.subr.bf16.mxu0 %v4184
      %4502 = vmatpush1.bf16.msra.mxu0 %v4183
      %4503 = vmatprep.subr.bf16.mxu0 %v4180
      %4504 = vmatpush1.bf16.msra.mxu0 %v4179
      %4505 = vmatprep.subr.bf16.mxu0 %v4176
      %4506 = vmatpush1.bf16.msra.mxu0 %v4175
      %4507 = vmatprep.subr.bf16.mxu0 %v4172
      %4508 = vmatpush1.bf16.msra.mxu0 %v4171
      %4509 = vmatprep.subr.bf16.mxu0 %v4168
      %4510 = vmatpush1.bf16.msra.mxu0 %v4167
      %4511 = vmatprep.subr.bf16.mxu0 %v4164
      %4512 = vmatpush1.bf16.msra.mxu0 %v4163
      %4513 = vmatprep.subr.bf16.mxu0 %v4160
      %4514 = vmatpush1.bf16.msra.mxu0 %v4159
      %4515 = vmatprep.subr.bf16.mxu0 %v4220
      %4516 = vmatpush2.bf16.msra.mxu0 %v4219
      %4517 = vmatprep.subr.bf16.mxu0 %v4216
      %4518 = vmatpush2.bf16.msra.mxu0 %v4215
      %4519 = vmatprep.subr.bf16.mxu0 %v4212
      %4520 = vmatpush2.bf16.msra.mxu0 %v4211
      %4521 = vmatprep.subr.bf16.mxu0 %v4208
      %4522 = vmatpush2.bf16.msra.mxu0 %v4207
      %4523 = vmatprep.subr.bf16.mxu0 %v4204
      %4524 = vmatpush2.bf16.msra.mxu0 %v4203
      %4525 = vmatprep.subr.bf16.mxu0 %v4200
      %4526 = vmatpush2.bf16.msra.mxu0 %v4199
      %4527 = vmatprep.subr.bf16.mxu0 %v4196
      %4528 = vmatpush2.bf16.msra.mxu0 %v4195
      %4529 = vmatprep.subr.bf16.mxu0 %v4192
      %4530 = vmatpush2.bf16.msra.mxu0 %v4191
      %4531 = vmatprep.mubr.bf16.mxu0 %v3744
      %4532 = vmatmul.mubr.bf16.gmra.mxu0 %v3732
      %v4533 = vpop.f32.mrf.mxu0
      %v4534 = vadd.f32 0.0, %v4533
      %v4535 = vpop.f32.mrf.mxu0
      %v4536 = vadd.f32 0.0, %v4535
      %v4537 = vpop.f32.mrf.mxu0
      %v4538 = vadd.f32 0.0, %v4537
      %v4539 = vpop.f32.mrf.mxu0
      %v4540 = vadd.f32 0.0, %v4539
      %4541 = vdwg.mxu0
      %4542 = vmatprep.subr.bf16.mxu0 %v4252
      %4543 = vmatpush1.bf16.msra.mxu0 %v4251
      %4544 = vmatprep.subr.bf16.mxu0 %v4248
      %4545 = vmatpush1.bf16.msra.mxu0 %v4247
      %4546 = vmatprep.subr.bf16.mxu0 %v4244
      %4547 = vmatpush1.bf16.msra.mxu0 %v4243
      %4548 = vmatprep.subr.bf16.mxu0 %v4240
      %4549 = vmatpush1.bf16.msra.mxu0 %v4239
      %4550 = vmatprep.subr.bf16.mxu0 %v4236
      %4551 = vmatpush1.bf16.msra.mxu0 %v4235
      %4552 = vmatprep.subr.bf16.mxu0 %v4232
      %4553 = vmatpush1.bf16.msra.mxu0 %v4231
      %4554 = vmatprep.subr.bf16.mxu0 %v4228
      %4555 = vmatpush1.bf16.msra.mxu0 %v4227
      %4556 = vmatprep.subr.bf16.mxu0 %v4224
      %4557 = vmatpush1.bf16.msra.mxu0 %v4223
      %4558 = vmatprep.subr.bf16.mxu0 %v4284
      %4559 = vmatpush2.bf16.msra.mxu0 %v4283
      %4560 = vmatprep.subr.bf16.mxu0 %v4280
      %4561 = vmatpush2.bf16.msra.mxu0 %v4279
      %4562 = vmatprep.subr.bf16.mxu0 %v4276
      %4563 = vmatpush2.bf16.msra.mxu0 %v4275
      %4564 = vmatprep.subr.bf16.mxu0 %v4272
      %4565 = vmatpush2.bf16.msra.mxu0 %v4271
      %4566 = vmatprep.subr.bf16.mxu0 %v4268
      %4567 = vmatpush2.bf16.msra.mxu0 %v4267
      %4568 = vmatprep.subr.bf16.mxu0 %v4264
      %4569 = vmatpush2.bf16.msra.mxu0 %v4263
      %4570 = vmatprep.subr.bf16.mxu0 %v4260
      %4571 = vmatpush2.bf16.msra.mxu0 %v4259
      %4572 = vmatprep.subr.bf16.mxu0 %v4256
      %4573 = vmatpush2.bf16.msra.mxu0 %v4255
      %4574 = vmatprep.mubr.bf16.mxu0 %v3768
      %4575 = vmatmul.mubr.bf16.gmra.mxu0 %v3756
      %v4576 = vpop.f32.mrf.mxu0
      %v4577 = vadd.f32 %v4534, %v4576
      %v4578 = vpop.f32.mrf.mxu0
      %v4579 = vadd.f32 %v4536, %v4578
      %v4580 = vpop.f32.mrf.mxu0
      %v4581 = vadd.f32 %v4538, %v4580
      %v4582 = vpop.f32.mrf.mxu0
      %v4583 = vadd.f32 %v4540, %v4582
      %4584 = vdwg.mxu0
      %v4713 = vunpack.c.l.b16 %v3464
      %v4714 = vunpack.c.h.b16 %v3464
      %v4715 = vunpack.c.l.b16 %v3465
      %v4716 = vunpack.c.h.b16 %v3465
      %v4717 = vunpack.c.l.b16 %v3466
      %v4718 = vunpack.c.h.b16 %v3466
      %v4719 = vunpack.c.l.b16 %v3467
      %v4720 = vunpack.c.h.b16 %v3467
      %v4721 = vunpack.c.l.b16 %v3468
      %v4722 = vunpack.c.h.b16 %v3468
      %v4723 = vunpack.c.l.b16 %v3469
      %v4724 = vunpack.c.h.b16 %v3469
      %v4725 = vunpack.c.l.b16 %v3470
      %v4726 = vunpack.c.h.b16 %v3470
      %v4727 = vunpack.c.l.b16 %v3471
      %v4728 = vunpack.c.h.b16 %v3471
      %v4729 = vunpack.c.l.b16 %v3472
      %v4730 = vunpack.c.h.b16 %v3472
      %v4731 = vunpack.c.l.b16 %v3473
      %v4732 = vunpack.c.h.b16 %v3473
      %v4733 = vunpack.c.l.b16 %v3474
      %v4734 = vunpack.c.h.b16 %v3474
      %v4735 = vunpack.c.l.b16 %v3475
      %v4736 = vunpack.c.h.b16 %v3475
      %v4737 = vunpack.c.l.b16 %v3476
      %v4738 = vunpack.c.h.b16 %v3476
      %v4739 = vunpack.c.l.b16 %v3477
      %v4740 = vunpack.c.h.b16 %v3477
      %v4741 = vunpack.c.l.b16 %v3478
      %v4742 = vunpack.c.h.b16 %v3478
      %v4743 = vunpack.c.l.b16 %v3479
      %v4744 = vunpack.c.h.b16 %v3479
      %v4745 = vunpack.c.l.b16 %v3480
      %v4746 = vunpack.c.h.b16 %v3480
      %v4747 = vunpack.c.l.b16 %v3481
      %v4748 = vunpack.c.h.b16 %v3481
      %v4749 = vunpack.c.l.b16 %v3482
      %v4750 = vunpack.c.h.b16 %v3482
      %v4751 = vunpack.c.l.b16 %v3483
      %v4752 = vunpack.c.h.b16 %v3483
      %v4753 = vunpack.c.l.b16 %v3484
      %v4754 = vunpack.c.h.b16 %v3484
      %v4755 = vunpack.c.l.b16 %v3485
      %v4756 = vunpack.c.h.b16 %v3485
      %v4757 = vunpack.c.l.b16 %v3486
      %v4758 = vunpack.c.h.b16 %v3486
      %v4759 = vunpack.c.l.b16 %v3487
      %v4760 = vunpack.c.h.b16 %v3487
      %v4761 = vunpack.c.l.b16 %v3488
      %v4762 = vunpack.c.h.b16 %v3488
      %v4763 = vunpack.c.l.b16 %v3489
      %v4764 = vunpack.c.h.b16 %v3489
      %v4765 = vunpack.c.l.b16 %v3490
      %v4766 = vunpack.c.h.b16 %v3490
      %v4767 = vunpack.c.l.b16 %v3491
      %v4768 = vunpack.c.h.b16 %v3491
      %v4769 = vunpack.c.l.b16 %v3492
      %v4770 = vunpack.c.h.b16 %v3492
      %v4771 = vunpack.c.l.b16 %v3493
      %v4772 = vunpack.c.h.b16 %v3493
      %v4773 = vunpack.c.l.b16 %v3494
      %v4774 = vunpack.c.h.b16 %v3494
      %v4775 = vunpack.c.l.b16 %v3495
      %v4776 = vunpack.c.h.b16 %v3495
      %v4777 = vunpack.c.l.b16 %v3496
      %v4778 = vunpack.c.h.b16 %v3496
      %v4779 = vunpack.c.l.b16 %v3497
      %v4780 = vunpack.c.h.b16 %v3497
      %v4781 = vunpack.c.l.b16 %v3498
      %v4782 = vunpack.c.h.b16 %v3498
      %v4783 = vunpack.c.l.b16 %v3499
      %v4784 = vunpack.c.h.b16 %v3499
      %v4785 = vunpack.c.l.b16 %v3500
      %v4786 = vunpack.c.h.b16 %v3500
      %v4787 = vunpack.c.l.b16 %v3501
      %v4788 = vunpack.c.h.b16 %v3501
      %v4789 = vunpack.c.l.b16 %v3502
      %v4790 = vunpack.c.h.b16 %v3502
      %v4791 = vunpack.c.l.b16 %v3503
      %v4792 = vunpack.c.h.b16 %v3503
      %v4793 = vunpack.c.l.b16 %v3504
      %v4794 = vunpack.c.h.b16 %v3504
      %v4795 = vunpack.c.l.b16 %v3505
      %v4796 = vunpack.c.h.b16 %v3505
      %v4797 = vunpack.c.l.b16 %v3506
      %v4798 = vunpack.c.h.b16 %v3506
      %v4799 = vunpack.c.l.b16 %v3507
      %v4800 = vunpack.c.h.b16 %v3507
      %v4801 = vunpack.c.l.b16 %v3508
      %v4802 = vunpack.c.h.b16 %v3508
      %v4803 = vunpack.c.l.b16 %v3509
      %v4804 = vunpack.c.h.b16 %v3509
      %v4805 = vunpack.c.l.b16 %v3510
      %v4806 = vunpack.c.h.b16 %v3510
      %v4807 = vunpack.c.l.b16 %v3511
      %v4808 = vunpack.c.h.b16 %v3511
      %v4809 = vunpack.c.l.b16 %v3512
      %v4810 = vunpack.c.h.b16 %v3512
      %v4811 = vunpack.c.l.b16 %v3513
      %v4812 = vunpack.c.h.b16 %v3513
      %v4813 = vunpack.c.l.b16 %v3514
      %v4814 = vunpack.c.h.b16 %v3514
      %v4815 = vunpack.c.l.b16 %v3515
      %v4816 = vunpack.c.h.b16 %v3515
      %v4817 = vunpack.c.l.b16 %v3516
      %v4818 = vunpack.c.h.b16 %v3516
      %v4819 = vunpack.c.l.b16 %v3517
      %v4820 = vunpack.c.h.b16 %v3517
      %v4821 = vunpack.c.l.b16 %v3518
      %v4822 = vunpack.c.h.b16 %v3518
      %v4823 = vunpack.c.l.b16 %v3519
      %v4824 = vunpack.c.h.b16 %v3519
      %v4825 = vunpack.c.l.b16 %v3520
      %v4826 = vunpack.c.h.b16 %v3520
      %v4827 = vunpack.c.l.b16 %v3521
      %v4828 = vunpack.c.h.b16 %v3521
      %v4829 = vunpack.c.l.b16 %v3522
      %v4830 = vunpack.c.h.b16 %v3522
      %v4831 = vunpack.c.l.b16 %v3523
      %v4832 = vunpack.c.h.b16 %v3523
      %v4833 = vunpack.c.l.b16 %v3524
      %v4834 = vunpack.c.h.b16 %v3524
      %v4835 = vunpack.c.l.b16 %v3525
      %v4836 = vunpack.c.h.b16 %v3525
      %v4837 = vunpack.c.l.b16 %v3526
      %v4838 = vunpack.c.h.b16 %v3526
      %v4839 = vunpack.c.l.b16 %v3527
      %v4840 = vunpack.c.h.b16 %v3527
      %v4841 = vunpack.c.l.b16 %v3528
      %v4842 = vunpack.c.h.b16 %v3528
      %v4843 = vunpack.c.l.b16 %v3529
      %v4844 = vunpack.c.h.b16 %v3529
      %v4845 = vunpack.c.l.b16 %v3530
      %v4846 = vunpack.c.h.b16 %v3530
      %v4847 = vunpack.c.l.b16 %v3531
      %v4848 = vunpack.c.h.b16 %v3531
      %v4849 = vunpack.c.l.b16 %v3532
      %v4850 = vunpack.c.h.b16 %v3532
      %v4851 = vunpack.c.l.b16 %v3533
      %v4852 = vunpack.c.h.b16 %v3533
      %v4853 = vunpack.c.l.b16 %v3534
      %v4854 = vunpack.c.h.b16 %v3534
      %v4855 = vunpack.c.l.b16 %v3535
      %v4856 = vunpack.c.h.b16 %v3535
      %v4857 = vunpack.c.l.b16 %v3536
      %v4858 = vunpack.c.h.b16 %v3536
      %v4859 = vunpack.c.l.b16 %v3537
      %v4860 = vunpack.c.h.b16 %v3537
      %v4861 = vunpack.c.l.b16 %v3538
      %v4862 = vunpack.c.h.b16 %v3538
      %v4863 = vunpack.c.l.b16 %v3539
      %v4864 = vunpack.c.h.b16 %v3539
      %v4865 = vunpack.c.l.b16 %v3540
      %v4866 = vunpack.c.h.b16 %v3540
      %v4867 = vunpack.c.l.b16 %v3541
      %v4868 = vunpack.c.h.b16 %v3541
      %v4869 = vunpack.c.l.b16 %v3542
      %v4870 = vunpack.c.h.b16 %v3542
      %v4871 = vunpack.c.l.b16 %v3543
      %v4872 = vunpack.c.h.b16 %v3543
      %v4873 = vunpack.c.l.b16 %v3544
      %v4874 = vunpack.c.h.b16 %v3544
      %v4875 = vunpack.c.l.b16 %v3545
      %v4876 = vunpack.c.h.b16 %v3545
      %v4877 = vunpack.c.l.b16 %v3546
      %v4878 = vunpack.c.h.b16 %v3546
      %v4879 = vunpack.c.l.b16 %v3547
      %v4880 = vunpack.c.h.b16 %v3547
      %v4881 = vunpack.c.l.b16 %v3548
      %v4882 = vunpack.c.h.b16 %v3548
      %v4883 = vunpack.c.l.b16 %v3549
      %v4884 = vunpack.c.h.b16 %v3549
      %v4885 = vunpack.c.l.b16 %v3550
      %v4886 = vunpack.c.h.b16 %v3550
      %v4887 = vunpack.c.l.b16 %v3551
      %v4888 = vunpack.c.h.b16 %v3551
      %v4889 = vunpack.c.l.b16 %v3552
      %v4890 = vunpack.c.h.b16 %v3552
      %v4891 = vunpack.c.l.b16 %v3553
      %v4892 = vunpack.c.h.b16 %v3553
      %v4893 = vunpack.c.l.b16 %v3554
      %v4894 = vunpack.c.h.b16 %v3554
      %v4895 = vunpack.c.l.b16 %v3555
      %v4896 = vunpack.c.h.b16 %v3555
      %v4897 = vunpack.c.l.b16 %v3556
      %v4898 = vunpack.c.h.b16 %v3556
      %v4899 = vunpack.c.l.b16 %v3557
      %v4900 = vunpack.c.h.b16 %v3557
      %v4901 = vunpack.c.l.b16 %v3558
      %v4902 = vunpack.c.h.b16 %v3558
      %v4903 = vunpack.c.l.b16 %v3559
      %v4904 = vunpack.c.h.b16 %v3559
      %v4905 = vunpack.c.l.b16 %v3560
      %v4906 = vunpack.c.h.b16 %v3560
      %v4907 = vunpack.c.l.b16 %v3561
      %v4908 = vunpack.c.h.b16 %v3561
      %v4909 = vunpack.c.l.b16 %v3562
      %v4910 = vunpack.c.h.b16 %v3562
      %v4911 = vunpack.c.l.b16 %v3563
      %v4912 = vunpack.c.h.b16 %v3563
      %v4913 = vunpack.c.l.b16 %v3564
      %v4914 = vunpack.c.h.b16 %v3564
      %v4915 = vunpack.c.l.b16 %v3565
      %v4916 = vunpack.c.h.b16 %v3565
      %v4917 = vunpack.c.l.b16 %v3566
      %v4918 = vunpack.c.h.b16 %v3566
      %v4919 = vunpack.c.l.b16 %v3567
      %v4920 = vunpack.c.h.b16 %v3567
      %v4921 = vunpack.c.l.b16 %v3568
      %v4922 = vunpack.c.h.b16 %v3568
      %v4923 = vunpack.c.l.b16 %v3569
      %v4924 = vunpack.c.h.b16 %v3569
      %v4925 = vunpack.c.l.b16 %v3570
      %v4926 = vunpack.c.h.b16 %v3570
      %v4927 = vunpack.c.l.b16 %v3571
      %v4928 = vunpack.c.h.b16 %v3571
      %v4929 = vunpack.c.l.b16 %v3572
      %v4930 = vunpack.c.h.b16 %v3572
      %v4931 = vunpack.c.l.b16 %v3573
      %v4932 = vunpack.c.h.b16 %v3573
      %v4933 = vunpack.c.l.b16 %v3574
      %v4934 = vunpack.c.h.b16 %v3574
      %v4935 = vunpack.c.l.b16 %v3575
      %v4936 = vunpack.c.h.b16 %v3575
      %v4937 = vunpack.c.l.b16 %v3576
      %v4938 = vunpack.c.h.b16 %v3576
      %v4939 = vunpack.c.l.b16 %v3577
      %v4940 = vunpack.c.h.b16 %v3577
      %v4941 = vunpack.c.l.b16 %v3578
      %v4942 = vunpack.c.h.b16 %v3578
      %v4943 = vunpack.c.l.b16 %v3579
      %v4944 = vunpack.c.h.b16 %v3579
      %v4945 = vunpack.c.l.b16 %v3580
      %v4946 = vunpack.c.h.b16 %v3580
      %v4947 = vunpack.c.l.b16 %v3581
      %v4948 = vunpack.c.h.b16 %v3581
      %v4949 = vunpack.c.l.b16 %v3582
      %v4950 = vunpack.c.h.b16 %v3582
      %v4951 = vunpack.c.l.b16 %v3583
      %v4952 = vunpack.c.h.b16 %v3583
      %v4953 = vunpack.c.l.b16 %v3584
      %v4954 = vunpack.c.h.b16 %v3584
      %v4955 = vunpack.c.l.b16 %v3585
      %v4956 = vunpack.c.h.b16 %v3585
      %v4957 = vunpack.c.l.b16 %v3586
      %v4958 = vunpack.c.h.b16 %v3586
      %v4959 = vunpack.c.l.b16 %v3587
      %v4960 = vunpack.c.h.b16 %v3587
      %v4961 = vunpack.c.l.b16 %v3588
      %v4962 = vunpack.c.h.b16 %v3588
      %v4963 = vunpack.c.l.b16 %v3589
      %v4964 = vunpack.c.h.b16 %v3589
      %v4965 = vunpack.c.l.b16 %v3590
      %v4966 = vunpack.c.h.b16 %v3590
      %v4967 = vunpack.c.l.b16 %v3591
      %v4968 = vunpack.c.h.b16 %v3591
      %v4969 = vpack.c.b16 %v4717, %v4713
      %v4970 = vpack.c.b16 %v4718, %v4714
      %v4971 = vpack.c.b16 %v4719, %v4715
      %v4972 = vpack.c.b16 %v4720, %v4716
      %v4973 = vpack.c.b16 %v4725, %v4721
      %v4974 = vpack.c.b16 %v4726, %v4722
      %v4975 = vpack.c.b16 %v4727, %v4723
      %v4976 = vpack.c.b16 %v4728, %v4724
      %v4977 = vpack.c.b16 %v4733, %v4729
      %v4978 = vpack.c.b16 %v4734, %v4730
      %v4979 = vpack.c.b16 %v4735, %v4731
      %v4980 = vpack.c.b16 %v4736, %v4732
      %v4981 = vpack.c.b16 %v4741, %v4737
      %v4982 = vpack.c.b16 %v4742, %v4738
      %v4983 = vpack.c.b16 %v4743, %v4739
      %v4984 = vpack.c.b16 %v4744, %v4740
      %v4985 = vpack.c.b16 %v4749, %v4745
      %v4986 = vpack.c.b16 %v4750, %v4746
      %v4987 = vpack.c.b16 %v4751, %v4747
      %v4988 = vpack.c.b16 %v4752, %v4748
      %v4989 = vpack.c.b16 %v4757, %v4753
      %v4990 = vpack.c.b16 %v4758, %v4754
      %v4991 = vpack.c.b16 %v4759, %v4755
      %v4992 = vpack.c.b16 %v4760, %v4756
      %v4993 = vpack.c.b16 %v4765, %v4761
      %v4994 = vpack.c.b16 %v4766, %v4762
      %v4995 = vpack.c.b16 %v4767, %v4763
      %v4996 = vpack.c.b16 %v4768, %v4764
      %v4997 = vpack.c.b16 %v4773, %v4769
      %v4998 = vpack.c.b16 %v4774, %v4770
      %v4999 = vpack.c.b16 %v4775, %v4771
      %v5000 = vpack.c.b16 %v4776, %v4772
      %v5001 = vpack.c.b16 %v4781, %v4777
      %v5002 = vpack.c.b16 %v4782, %v4778
      %v5003 = vpack.c.b16 %v4783, %v4779
      %v5004 = vpack.c.b16 %v4784, %v4780
      %v5005 = vpack.c.b16 %v4789, %v4785
      %v5006 = vpack.c.b16 %v4790, %v4786
      %v5007 = vpack.c.b16 %v4791, %v4787
      %v5008 = vpack.c.b16 %v4792, %v4788
      %v5009 = vpack.c.b16 %v4797, %v4793
      %v5010 = vpack.c.b16 %v4798, %v4794
      %v5011 = vpack.c.b16 %v4799, %v4795
      %v5012 = vpack.c.b16 %v4800, %v4796
      %v5013 = vpack.c.b16 %v4805, %v4801
      %v5014 = vpack.c.b16 %v4806, %v4802
      %v5015 = vpack.c.b16 %v4807, %v4803
      %v5016 = vpack.c.b16 %v4808, %v4804
      %v5017 = vpack.c.b16 %v4813, %v4809
      %v5018 = vpack.c.b16 %v4814, %v4810
      %v5019 = vpack.c.b16 %v4815, %v4811
      %v5020 = vpack.c.b16 %v4816, %v4812
      %v5021 = vpack.c.b16 %v4821, %v4817
      %v5022 = vpack.c.b16 %v4822, %v4818
      %v5023 = vpack.c.b16 %v4823, %v4819
      %v5024 = vpack.c.b16 %v4824, %v4820
      %v5025 = vpack.c.b16 %v4829, %v4825
      %v5026 = vpack.c.b16 %v4830, %v4826
      %v5027 = vpack.c.b16 %v4831, %v4827
      %v5028 = vpack.c.b16 %v4832, %v4828
      %v5029 = vpack.c.b16 %v4837, %v4833
      %v5030 = vpack.c.b16 %v4838, %v4834
      %v5031 = vpack.c.b16 %v4839, %v4835
      %v5032 = vpack.c.b16 %v4840, %v4836
      %v5033 = vpack.c.b16 %v4845, %v4841
      %v5034 = vpack.c.b16 %v4846, %v4842
      %v5035 = vpack.c.b16 %v4847, %v4843
      %v5036 = vpack.c.b16 %v4848, %v4844
      %v5037 = vpack.c.b16 %v4853, %v4849
      %v5038 = vpack.c.b16 %v4854, %v4850
      %v5039 = vpack.c.b16 %v4855, %v4851
      %v5040 = vpack.c.b16 %v4856, %v4852
      %v5041 = vpack.c.b16 %v4861, %v4857
      %v5042 = vpack.c.b16 %v4862, %v4858
      %v5043 = vpack.c.b16 %v4863, %v4859
      %v5044 = vpack.c.b16 %v4864, %v4860
      %v5045 = vpack.c.b16 %v4869, %v4865
      %v5046 = vpack.c.b16 %v4870, %v4866
      %v5047 = vpack.c.b16 %v4871, %v4867
      %v5048 = vpack.c.b16 %v4872, %v4868
      %v5049 = vpack.c.b16 %v4877, %v4873
      %v5050 = vpack.c.b16 %v4878, %v4874
      %v5051 = vpack.c.b16 %v4879, %v4875
      %v5052 = vpack.c.b16 %v4880, %v4876
      %v5053 = vpack.c.b16 %v4885, %v4881
      %v5054 = vpack.c.b16 %v4886, %v4882
      %v5055 = vpack.c.b16 %v4887, %v4883
      %v5056 = vpack.c.b16 %v4888, %v4884
      %v5057 = vpack.c.b16 %v4893, %v4889
      %v5058 = vpack.c.b16 %v4894, %v4890
      %v5059 = vpack.c.b16 %v4895, %v4891
      %v5060 = vpack.c.b16 %v4896, %v4892
      %v5061 = vpack.c.b16 %v4901, %v4897
      %v5062 = vpack.c.b16 %v4902, %v4898
      %v5063 = vpack.c.b16 %v4903, %v4899
      %v5064 = vpack.c.b16 %v4904, %v4900
      %v5065 = vpack.c.b16 %v4909, %v4905
      %v5066 = vpack.c.b16 %v4910, %v4906
      %v5067 = vpack.c.b16 %v4911, %v4907
      %v5068 = vpack.c.b16 %v4912, %v4908
      %v5069 = vpack.c.b16 %v4917, %v4913
      %v5070 = vpack.c.b16 %v4918, %v4914
      %v5071 = vpack.c.b16 %v4919, %v4915
      %v5072 = vpack.c.b16 %v4920, %v4916
      %v5073 = vpack.c.b16 %v4925, %v4921
      %v5074 = vpack.c.b16 %v4926, %v4922
      %v5075 = vpack.c.b16 %v4927, %v4923
      %v5076 = vpack.c.b16 %v4928, %v4924
      %v5077 = vpack.c.b16 %v4933, %v4929
      %v5078 = vpack.c.b16 %v4934, %v4930
      %v5079 = vpack.c.b16 %v4935, %v4931
      %v5080 = vpack.c.b16 %v4936, %v4932
      %v5081 = vpack.c.b16 %v4941, %v4937
      %v5082 = vpack.c.b16 %v4942, %v4938
      %v5083 = vpack.c.b16 %v4943, %v4939
      %v5084 = vpack.c.b16 %v4944, %v4940
      %v5085 = vpack.c.b16 %v4949, %v4945
      %v5086 = vpack.c.b16 %v4950, %v4946
      %v5087 = vpack.c.b16 %v4951, %v4947
      %v5088 = vpack.c.b16 %v4952, %v4948
      %v5089 = vpack.c.b16 %v4957, %v4953
      %v5090 = vpack.c.b16 %v4958, %v4954
      %v5091 = vpack.c.b16 %v4959, %v4955
      %v5092 = vpack.c.b16 %v4960, %v4956
      %v5093 = vpack.c.b16 %v4965, %v4961
      %v5094 = vpack.c.b16 %v4966, %v4962
      %v5095 = vpack.c.b16 %v4967, %v4963
      %v5096 = vpack.c.b16 %v4968, %v4964
      %5225 = vmatprep.subr.bf16.mxu0 %v4998
      %5226 = vmatpush1.bf16.msra.mxu0 %v4997
      %5227 = vmatprep.subr.bf16.mxu0 %v4994
      %5228 = vmatpush1.bf16.msra.mxu0 %v4993
      %5229 = vmatprep.subr.bf16.mxu0 %v4990
      %5230 = vmatpush1.bf16.msra.mxu0 %v4989
      %5231 = vmatprep.subr.bf16.mxu0 %v4986
      %5232 = vmatpush1.bf16.msra.mxu0 %v4985
      %5233 = vmatprep.subr.bf16.mxu0 %v4982
      %5234 = vmatpush1.bf16.msra.mxu0 %v4981
      %5235 = vmatprep.subr.bf16.mxu0 %v4978
      %5236 = vmatpush1.bf16.msra.mxu0 %v4977
      %5237 = vmatprep.subr.bf16.mxu0 %v4974
      %5238 = vmatpush1.bf16.msra.mxu0 %v4973
      %5239 = vmatprep.subr.bf16.mxu0 %v4970
      %5240 = vmatpush1.bf16.msra.mxu0 %v4969
      %5241 = vmatprep.subr.bf16.mxu0 %v5030
      %5242 = vmatpush2.bf16.msra.mxu0 %v5029
      %5243 = vmatprep.subr.bf16.mxu0 %v5026
      %5244 = vmatpush2.bf16.msra.mxu0 %v5025
      %5245 = vmatprep.subr.bf16.mxu0 %v5022
      %5246 = vmatpush2.bf16.msra.mxu0 %v5021
      %5247 = vmatprep.subr.bf16.mxu0 %v5018
      %5248 = vmatpush2.bf16.msra.mxu0 %v5017
      %5249 = vmatprep.subr.bf16.mxu0 %v5014
      %5250 = vmatpush2.bf16.msra.mxu0 %v5013
      %5251 = vmatprep.subr.bf16.mxu0 %v5010
      %5252 = vmatpush2.bf16.msra.mxu0 %v5009
      %5253 = vmatprep.subr.bf16.mxu0 %v5006
      %5254 = vmatpush2.bf16.msra.mxu0 %v5005
      %5255 = vmatprep.subr.bf16.mxu0 %v5002
      %5256 = vmatpush2.bf16.msra.mxu0 %v5001
      %5257 = vmatprep.mubr.bf16.mxu0 %v3457
      %5258 = vmatmul.mubr.bf16.gmra.mxu0 %v3456
      %v5259 = vpop.f32.mrf.mxu0
      %v5260 = vadd.f32 %v4491, %v5259
      %v5261 = vpop.f32.mrf.mxu0
      %v5262 = vadd.f32 %v4493, %v5261
      %v5263 = vpop.f32.mrf.mxu0
      %v5264 = vadd.f32 %v4495, %v5263
      %v5265 = vpop.f32.mrf.mxu0
      %v5266 = vadd.f32 %v4497, %v5265
      %5267 = vdwg.mxu0
      %5268 = vmatprep.subr.bf16.mxu0 %v5062
      %5269 = vmatpush1.bf16.msra.mxu0 %v5061
      %5270 = vmatprep.subr.bf16.mxu0 %v5058
      %5271 = vmatpush1.bf16.msra.mxu0 %v5057
      %5272 = vmatprep.subr.bf16.mxu0 %v5054
      %5273 = vmatpush1.bf16.msra.mxu0 %v5053
      %5274 = vmatprep.subr.bf16.mxu0 %v5050
      %5275 = vmatpush1.bf16.msra.mxu0 %v5049
      %5276 = vmatprep.subr.bf16.mxu0 %v5046
      %5277 = vmatpush1.bf16.msra.mxu0 %v5045
      %5278 = vmatprep.subr.bf16.mxu0 %v5042
      %5279 = vmatpush1.bf16.msra.mxu0 %v5041
      %5280 = vmatprep.subr.bf16.mxu0 %v5038
      %5281 = vmatpush1.bf16.msra.mxu0 %v5037
      %5282 = vmatprep.subr.bf16.mxu0 %v5034
      %5283 = vmatpush1.bf16.msra.mxu0 %v5033
      %5284 = vmatprep.subr.bf16.mxu0 %v5094
      %5285 = vmatpush2.bf16.msra.mxu0 %v5093
      %5286 = vmatprep.subr.bf16.mxu0 %v5090
      %5287 = vmatpush2.bf16.msra.mxu0 %v5089
      %5288 = vmatprep.subr.bf16.mxu0 %v5086
      %5289 = vmatpush2.bf16.msra.mxu0 %v5085
      %5290 = vmatprep.subr.bf16.mxu0 %v5082
      %5291 = vmatpush2.bf16.msra.mxu0 %v5081
      %5292 = vmatprep.subr.bf16.mxu0 %v5078
      %5293 = vmatpush2.bf16.msra.mxu0 %v5077
      %5294 = vmatprep.subr.bf16.mxu0 %v5074
      %5295 = vmatpush2.bf16.msra.mxu0 %v5073
      %5296 = vmatprep.subr.bf16.mxu0 %v5070
      %5297 = vmatpush2.bf16.msra.mxu0 %v5069
      %5298 = vmatprep.subr.bf16.mxu0 %v5066
      %5299 = vmatpush2.bf16.msra.mxu0 %v5065
      %5300 = vmatprep.mubr.bf16.mxu0 %v3459
      %5301 = vmatmul.mubr.bf16.gmra.mxu0 %v3458
      %v5302 = vpop.f32.mrf.mxu0
      %v5303 = vadd.f32 %v5260, %v5302
      %v5304 = vpop.f32.mrf.mxu0
      %v5305 = vadd.f32 %v5262, %v5304
      %v5306 = vpop.f32.mrf.mxu0
      %v5307 = vadd.f32 %v5264, %v5306
      %v5308 = vpop.f32.mrf.mxu0
      %v5309 = vadd.f32 %v5266, %v5308
      %5310 = vdwg.mxu0
      %5311 = vmatprep.subr.bf16.mxu0 %v5000
      %5312 = vmatpush1.bf16.msra.mxu0 %v4999
      %5313 = vmatprep.subr.bf16.mxu0 %v4996
      %5314 = vmatpush1.bf16.msra.mxu0 %v4995
      %5315 = vmatprep.subr.bf16.mxu0 %v4992
      %5316 = vmatpush1.bf16.msra.mxu0 %v4991
      %5317 = vmatprep.subr.bf16.mxu0 %v4988
      %5318 = vmatpush1.bf16.msra.mxu0 %v4987
      %5319 = vmatprep.subr.bf16.mxu0 %v4984
      %5320 = vmatpush1.bf16.msra.mxu0 %v4983
      %5321 = vmatprep.subr.bf16.mxu0 %v4980
      %5322 = vmatpush1.bf16.msra.mxu0 %v4979
      %5323 = vmatprep.subr.bf16.mxu0 %v4976
      %5324 = vmatpush1.bf16.msra.mxu0 %v4975
      %5325 = vmatprep.subr.bf16.mxu0 %v4972
      %5326 = vmatpush1.bf16.msra.mxu0 %v4971
      %5327 = vmatprep.subr.bf16.mxu0 %v5032
      %5328 = vmatpush2.bf16.msra.mxu0 %v5031
      %5329 = vmatprep.subr.bf16.mxu0 %v5028
      %5330 = vmatpush2.bf16.msra.mxu0 %v5027
      %5331 = vmatprep.subr.bf16.mxu0 %v5024
      %5332 = vmatpush2.bf16.msra.mxu0 %v5023
      %5333 = vmatprep.subr.bf16.mxu0 %v5020
      %5334 = vmatpush2.bf16.msra.mxu0 %v5019
      %5335 = vmatprep.subr.bf16.mxu0 %v5016
      %5336 = vmatpush2.bf16.msra.mxu0 %v5015
      %5337 = vmatprep.subr.bf16.mxu0 %v5012
      %5338 = vmatpush2.bf16.msra.mxu0 %v5011
      %5339 = vmatprep.subr.bf16.mxu0 %v5008
      %5340 = vmatpush2.bf16.msra.mxu0 %v5007
      %5341 = vmatprep.subr.bf16.mxu0 %v5004
      %5342 = vmatpush2.bf16.msra.mxu0 %v5003
      %5343 = vmatprep.mubr.bf16.mxu0 %v3457
      %5344 = vmatmul.mubr.bf16.gmra.mxu0 %v3456
      %v5345 = vpop.f32.mrf.mxu0
      %v5346 = vadd.f32 %v4577, %v5345
      %v5347 = vpop.f32.mrf.mxu0
      %v5348 = vadd.f32 %v4579, %v5347
      %v5349 = vpop.f32.mrf.mxu0
      %v5350 = vadd.f32 %v4581, %v5349
      %v5351 = vpop.f32.mrf.mxu0
      %v5352 = vadd.f32 %v4583, %v5351
      %5353 = vdwg.mxu0
      %5354 = vmatprep.subr.bf16.mxu0 %v5064
      %5355 = vmatpush1.bf16.msra.mxu0 %v5063
      %5356 = vmatprep.subr.bf16.mxu0 %v5060
      %5357 = vmatpush1.bf16.msra.mxu0 %v5059
      %5358 = vmatprep.subr.bf16.mxu0 %v5056
      %5359 = vmatpush1.bf16.msra.mxu0 %v5055
      %5360 = vmatprep.subr.bf16.mxu0 %v5052
      %5361 = vmatpush1.bf16.msra.mxu0 %v5051
      %5362 = vmatprep.subr.bf16.mxu0 %v5048
      %5363 = vmatpush1.bf16.msra.mxu0 %v5047
      %5364 = vmatprep.subr.bf16.mxu0 %v5044
      %5365 = vmatpush1.bf16.msra.mxu0 %v5043
      %5366 = vmatprep.subr.bf16.mxu0 %v5040
      %5367 = vmatpush1.bf16.msra.mxu0 %v5039
      %5368 = vmatprep.subr.bf16.mxu0 %v5036
      %5369 = vmatpush1.bf16.msra.mxu0 %v5035
      %5370 = vmatprep.subr.bf16.mxu0 %v5096
      %5371 = vmatpush2.bf16.msra.mxu0 %v5095
      %5372 = vmatprep.subr.bf16.mxu0 %v5092
      %5373 = vmatpush2.bf16.msra.mxu0 %v5091
      %5374 = vmatprep.subr.bf16.mxu0 %v5088
      %5375 = vmatpush2.bf16.msra.mxu0 %v5087
      %5376 = vmatprep.subr.bf16.mxu0 %v5084
      %5377 = vmatpush2.bf16.msra.mxu0 %v5083
      %5378 = vmatprep.subr.bf16.mxu0 %v5080
      %5379 = vmatpush2.bf16.msra.mxu0 %v5079
      %5380 = vmatprep.subr.bf16.mxu0 %v5076
      %5381 = vmatpush2.bf16.msra.mxu0 %v5075
      %5382 = vmatprep.subr.bf16.mxu0 %v5072
      %5383 = vmatpush2.bf16.msra.mxu0 %v5071
      %5384 = vmatprep.subr.bf16.mxu0 %v5068
      %5385 = vmatpush2.bf16.msra.mxu0 %v5067
      %5386 = vmatprep.mubr.bf16.mxu0 %v3459
      %5387 = vmatmul.mubr.bf16.gmra.mxu0 %v3458
      %v5388 = vpop.f32.mrf.mxu0
      %v5389 = vadd.f32 %v5346, %v5388
      %v5390 = vpop.f32.mrf.mxu0
      %v5391 = vadd.f32 %v5348, %v5390
      %v5392 = vpop.f32.mrf.mxu0
      %v5393 = vadd.f32 %v5350, %v5392
      %v5394 = vpop.f32.mrf.mxu0
      %v5395 = vadd.f32 %v5352, %v5394
      %5396 = vdwg.mxu0
      %s5397 = scalar_lea.vmem %s3, 2048
      %v5398 = vld [vmem:[%s5397] sm:$0xff]
      %v5399 = vld [vmem:[%s5397 + $0x8] sm:$0xff]
      %v5400 = vld [vmem:[%s5397 + $0x10] sm:$0xff]
      %v5401 = vld [vmem:[%s5397 + $0x18] sm:$0xff]
      %v5402 = vld [vmem:[%s5397 + $0x20] sm:$0xff]
      %v5403 = vld [vmem:[%s5397 + $0x28] sm:$0xff]
      %v5404 = vld [vmem:[%s5397 + $0x30] sm:$0xff]
      %v5405 = vld [vmem:[%s5397 + $0x38] sm:$0xff]
      %v5406 = vld [vmem:[%s5397 + $0x40] sm:$0xff]
      %v5407 = vld [vmem:[%s5397 + $0x48] sm:$0xff]
      %v5408 = vld [vmem:[%s5397 + $0x50] sm:$0xff]
      %v5409 = vld [vmem:[%s5397 + $0x58] sm:$0xff]
      %v5410 = vld [vmem:[%s5397 + $0x60] sm:$0xff]
      %v5411 = vld [vmem:[%s5397 + $0x68] sm:$0xff]
      %v5412 = vld [vmem:[%s5397 + $0x70] sm:$0xff]
      %v5413 = vld [vmem:[%s5397 + $0x78] sm:$0xff]
      %v5414 = vld [vmem:[%s5397 + $0x80] sm:$0xff]
      %v5415 = vld [vmem:[%s5397 + $0x88] sm:$0xff]
      %v5416 = vld [vmem:[%s5397 + $0x90] sm:$0xff]
      %v5417 = vld [vmem:[%s5397 + $0x98] sm:$0xff]
      %v5418 = vld [vmem:[%s5397 + $0xa0] sm:$0xff]
      %v5419 = vld [vmem:[%s5397 + $0xa8] sm:$0xff]
      %v5420 = vld [vmem:[%s5397 + $0xb0] sm:$0xff]
      %v5421 = vld [vmem:[%s5397 + $0xb8] sm:$0xff]
      %v5422 = vld [vmem:[%s5397 + $0xc0] sm:$0xff]
      %v5423 = vld [vmem:[%s5397 + $0xc8] sm:$0xff]
      %v5424 = vld [vmem:[%s5397 + $0xd0] sm:$0xff]
      %v5425 = vld [vmem:[%s5397 + $0xd8] sm:$0xff]
      %v5426 = vld [vmem:[%s5397 + $0xe0] sm:$0xff]
      %v5427 = vld [vmem:[%s5397 + $0xe8] sm:$0xff]
      %v5428 = vld [vmem:[%s5397 + $0xf0] sm:$0xff]
      %v5429 = vld [vmem:[%s5397 + $0xf8] sm:$0xff]
      %v5430 = vld [vmem:[%s5397 + $0x100] sm:$0xff]
      %v5431 = vld [vmem:[%s5397 + $0x108] sm:$0xff]
      %v5432 = vld [vmem:[%s5397 + $0x110] sm:$0xff]
      %v5433 = vld [vmem:[%s5397 + $0x118] sm:$0xff]
      %v5434 = vld [vmem:[%s5397 + $0x120] sm:$0xff]
      %v5435 = vld [vmem:[%s5397 + $0x128] sm:$0xff]
      %v5436 = vld [vmem:[%s5397 + $0x130] sm:$0xff]
      %v5437 = vld [vmem:[%s5397 + $0x138] sm:$0xff]
      %v5438 = vld [vmem:[%s5397 + $0x140] sm:$0xff]
      %v5439 = vld [vmem:[%s5397 + $0x148] sm:$0xff]
      %v5440 = vld [vmem:[%s5397 + $0x150] sm:$0xff]
      %v5441 = vld [vmem:[%s5397 + $0x158] sm:$0xff]
      %v5442 = vld [vmem:[%s5397 + $0x160] sm:$0xff]
      %v5443 = vld [vmem:[%s5397 + $0x168] sm:$0xff]
      %v5444 = vld [vmem:[%s5397 + $0x170] sm:$0xff]
      %v5445 = vld [vmem:[%s5397 + $0x178] sm:$0xff]
      %v5446 = vld [vmem:[%s5397 + $0x180] sm:$0xff]
      %v5447 = vld [vmem:[%s5397 + $0x188] sm:$0xff]
      %v5448 = vld [vmem:[%s5397 + $0x190] sm:$0xff]
      %v5449 = vld [vmem:[%s5397 + $0x198] sm:$0xff]
      %v5450 = vld [vmem:[%s5397 + $0x1a0] sm:$0xff]
      %v5451 = vld [vmem:[%s5397 + $0x1a8] sm:$0xff]
      %v5452 = vld [vmem:[%s5397 + $0x1b0] sm:$0xff]
      %v5453 = vld [vmem:[%s5397 + $0x1b8] sm:$0xff]
      %v5454 = vld [vmem:[%s5397 + $0x1c0] sm:$0xff]
      %v5455 = vld [vmem:[%s5397 + $0x1c8] sm:$0xff]
      %v5456 = vld [vmem:[%s5397 + $0x1d0] sm:$0xff]
      %v5457 = vld [vmem:[%s5397 + $0x1d8] sm:$0xff]
      %v5458 = vld [vmem:[%s5397 + $0x1e0] sm:$0xff]
      %v5459 = vld [vmem:[%s5397 + $0x1e8] sm:$0xff]
      %v5460 = vld [vmem:[%s5397 + $0x1f0] sm:$0xff]
      %v5461 = vld [vmem:[%s5397 + $0x1f8] sm:$0xff]
      %v5462 = vld [vmem:[%s5397 + $0x200] sm:$0xff]
      %v5463 = vld [vmem:[%s5397 + $0x208] sm:$0xff]
      %v5464 = vld [vmem:[%s5397 + $0x210] sm:$0xff]
      %v5465 = vld [vmem:[%s5397 + $0x218] sm:$0xff]
      %v5466 = vld [vmem:[%s5397 + $0x220] sm:$0xff]
      %v5467 = vld [vmem:[%s5397 + $0x228] sm:$0xff]
      %v5468 = vld [vmem:[%s5397 + $0x230] sm:$0xff]
      %v5469 = vld [vmem:[%s5397 + $0x238] sm:$0xff]
      %v5470 = vld [vmem:[%s5397 + $0x240] sm:$0xff]
      %v5471 = vld [vmem:[%s5397 + $0x248] sm:$0xff]
      %v5472 = vld [vmem:[%s5397 + $0x250] sm:$0xff]
      %v5473 = vld [vmem:[%s5397 + $0x258] sm:$0xff]
      %v5474 = vld [vmem:[%s5397 + $0x260] sm:$0xff]
      %v5475 = vld [vmem:[%s5397 + $0x268] sm:$0xff]
      %v5476 = vld [vmem:[%s5397 + $0x270] sm:$0xff]
      %v5477 = vld [vmem:[%s5397 + $0x278] sm:$0xff]
      %v5478 = vld [vmem:[%s5397 + $0x280] sm:$0xff]
      %v5479 = vld [vmem:[%s5397 + $0x288] sm:$0xff]
      %v5480 = vld [vmem:[%s5397 + $0x290] sm:$0xff]
      %v5481 = vld [vmem:[%s5397 + $0x298] sm:$0xff]
      %v5482 = vld [vmem:[%s5397 + $0x2a0] sm:$0xff]
      %v5483 = vld [vmem:[%s5397 + $0x2a8] sm:$0xff]
      %v5484 = vld [vmem:[%s5397 + $0x2b0] sm:$0xff]
      %v5485 = vld [vmem:[%s5397 + $0x2b8] sm:$0xff]
      %v5486 = vld [vmem:[%s5397 + $0x2c0] sm:$0xff]
      %v5487 = vld [vmem:[%s5397 + $0x2c8] sm:$0xff]
      %v5488 = vld [vmem:[%s5397 + $0x2d0] sm:$0xff]
      %v5489 = vld [vmem:[%s5397 + $0x2d8] sm:$0xff]
      %v5490 = vld [vmem:[%s5397 + $0x2e0] sm:$0xff]
      %v5491 = vld [vmem:[%s5397 + $0x2e8] sm:$0xff]
      %v5492 = vld [vmem:[%s5397 + $0x2f0] sm:$0xff]
      %v5493 = vld [vmem:[%s5397 + $0x2f8] sm:$0xff]
      %v5494 = vld [vmem:[%s5397 + $0x300] sm:$0xff]
      %v5495 = vld [vmem:[%s5397 + $0x308] sm:$0xff]
      %v5496 = vld [vmem:[%s5397 + $0x310] sm:$0xff]
      %v5497 = vld [vmem:[%s5397 + $0x318] sm:$0xff]
      %v5498 = vld [vmem:[%s5397 + $0x320] sm:$0xff]
      %v5499 = vld [vmem:[%s5397 + $0x328] sm:$0xff]
      %v5500 = vld [vmem:[%s5397 + $0x330] sm:$0xff]
      %v5501 = vld [vmem:[%s5397 + $0x338] sm:$0xff]
      %v5502 = vld [vmem:[%s5397 + $0x340] sm:$0xff]
      %v5503 = vld [vmem:[%s5397 + $0x348] sm:$0xff]
      %v5504 = vld [vmem:[%s5397 + $0x350] sm:$0xff]
      %v5505 = vld [vmem:[%s5397 + $0x358] sm:$0xff]
      %v5506 = vld [vmem:[%s5397 + $0x360] sm:$0xff]
      %v5507 = vld [vmem:[%s5397 + $0x368] sm:$0xff]
      %v5508 = vld [vmem:[%s5397 + $0x370] sm:$0xff]
      %v5509 = vld [vmem:[%s5397 + $0x378] sm:$0xff]
      %v5510 = vld [vmem:[%s5397 + $0x380] sm:$0xff]
      %v5511 = vld [vmem:[%s5397 + $0x388] sm:$0xff]
      %v5512 = vld [vmem:[%s5397 + $0x390] sm:$0xff]
      %v5513 = vld [vmem:[%s5397 + $0x398] sm:$0xff]
      %v5514 = vld [vmem:[%s5397 + $0x3a0] sm:$0xff]
      %v5515 = vld [vmem:[%s5397 + $0x3a8] sm:$0xff]
      %v5516 = vld [vmem:[%s5397 + $0x3b0] sm:$0xff]
      %v5517 = vld [vmem:[%s5397 + $0x3b8] sm:$0xff]
      %v5518 = vld [vmem:[%s5397 + $0x3c0] sm:$0xff]
      %v5519 = vld [vmem:[%s5397 + $0x3c8] sm:$0xff]
      %v5520 = vld [vmem:[%s5397 + $0x3d0] sm:$0xff]
      %v5521 = vld [vmem:[%s5397 + $0x3d8] sm:$0xff]
      %v5522 = vld [vmem:[%s5397 + $0x3e0] sm:$0xff]
      %v5523 = vld [vmem:[%s5397 + $0x3e8] sm:$0xff]
      %v5524 = vld [vmem:[%s5397 + $0x3f0] sm:$0xff]
      %v5525 = vld [vmem:[%s5397 + $0x3f8] sm:$0xff]
      %v5534 = vrot.slane %v3456, 1
      %v5535 = vrot.slane %v3460, 1
      %v5536 = vsel %vm2497, %v5534, %v5535
      %v5537 = vrot.slane %v3457, 1
      %v5538 = vrot.slane %v3461, 1
      %v5539 = vsel %vm2497, %v5537, %v5538
      %v5540 = vrot.slane %v3458, 1
      %v5541 = vrot.slane %v3462, 1
      %v5542 = vsel %vm2497, %v5540, %v5541
      %v5543 = vrot.slane %v3459, 1
      %v5544 = vrot.slane %v3463, 1
      %v5545 = vsel %vm2497, %v5543, %v5544
      %v5678 = vunpack.c.l.b16 %v5398
      %v5679 = vunpack.c.h.b16 %v5398
      %v5680 = vunpack.c.l.b16 %v5399
      %v5681 = vunpack.c.h.b16 %v5399
      %v5682 = vunpack.c.l.b16 %v5400
      %v5683 = vunpack.c.h.b16 %v5400
      %v5684 = vunpack.c.l.b16 %v5401
      %v5685 = vunpack.c.h.b16 %v5401
      %v5686 = vunpack.c.l.b16 %v5402
      %v5687 = vunpack.c.h.b16 %v5402
      %v5688 = vunpack.c.l.b16 %v5403
      %v5689 = vunpack.c.h.b16 %v5403
      %v5690 = vunpack.c.l.b16 %v5404
      %v5691 = vunpack.c.h.b16 %v5404
      %v5692 = vunpack.c.l.b16 %v5405
      %v5693 = vunpack.c.h.b16 %v5405
      %v5694 = vunpack.c.l.b16 %v5406
      %v5695 = vunpack.c.h.b16 %v5406
      %v5696 = vunpack.c.l.b16 %v5407
      %v5697 = vunpack.c.h.b16 %v5407
      %v5698 = vunpack.c.l.b16 %v5408
      %v5699 = vunpack.c.h.b16 %v5408
      %v5700 = vunpack.c.l.b16 %v5409
      %v5701 = vunpack.c.h.b16 %v5409
      %v5702 = vunpack.c.l.b16 %v5410
      %v5703 = vunpack.c.h.b16 %v5410
      %v5704 = vunpack.c.l.b16 %v5411
      %v5705 = vunpack.c.h.b16 %v5411
      %v5706 = vunpack.c.l.b16 %v5412
      %v5707 = vunpack.c.h.b16 %v5412
      %v5708 = vunpack.c.l.b16 %v5413
      %v5709 = vunpack.c.h.b16 %v5413
      %v5710 = vunpack.c.l.b16 %v5414
      %v5711 = vunpack.c.h.b16 %v5414
      %v5712 = vunpack.c.l.b16 %v5415
      %v5713 = vunpack.c.h.b16 %v5415
      %v5714 = vunpack.c.l.b16 %v5416
      %v5715 = vunpack.c.h.b16 %v5416
      %v5716 = vunpack.c.l.b16 %v5417
      %v5717 = vunpack.c.h.b16 %v5417
      %v5718 = vunpack.c.l.b16 %v5418
      %v5719 = vunpack.c.h.b16 %v5418
      %v5720 = vunpack.c.l.b16 %v5419
      %v5721 = vunpack.c.h.b16 %v5419
      %v5722 = vunpack.c.l.b16 %v5420
      %v5723 = vunpack.c.h.b16 %v5420
      %v5724 = vunpack.c.l.b16 %v5421
      %v5725 = vunpack.c.h.b16 %v5421
      %v5726 = vunpack.c.l.b16 %v5422
      %v5727 = vunpack.c.h.b16 %v5422
      %v5728 = vunpack.c.l.b16 %v5423
      %v5729 = vunpack.c.h.b16 %v5423
      %v5730 = vunpack.c.l.b16 %v5424
      %v5731 = vunpack.c.h.b16 %v5424
      %v5732 = vunpack.c.l.b16 %v5425
      %v5733 = vunpack.c.h.b16 %v5425
      %v5734 = vunpack.c.l.b16 %v5426
      %v5735 = vunpack.c.h.b16 %v5426
      %v5736 = vunpack.c.l.b16 %v5427
      %v5737 = vunpack.c.h.b16 %v5427
      %v5738 = vunpack.c.l.b16 %v5428
      %v5739 = vunpack.c.h.b16 %v5428
      %v5740 = vunpack.c.l.b16 %v5429
      %v5741 = vunpack.c.h.b16 %v5429
      %v5742 = vunpack.c.l.b16 %v5430
      %v5743 = vunpack.c.h.b16 %v5430
      %v5744 = vunpack.c.l.b16 %v5431
      %v5745 = vunpack.c.h.b16 %v5431
      %v5746 = vunpack.c.l.b16 %v5432
      %v5747 = vunpack.c.h.b16 %v5432
      %v5748 = vunpack.c.l.b16 %v5433
      %v5749 = vunpack.c.h.b16 %v5433
      %v5750 = vunpack.c.l.b16 %v5434
      %v5751 = vunpack.c.h.b16 %v5434
      %v5752 = vunpack.c.l.b16 %v5435
      %v5753 = vunpack.c.h.b16 %v5435
      %v5754 = vunpack.c.l.b16 %v5436
      %v5755 = vunpack.c.h.b16 %v5436
      %v5756 = vunpack.c.l.b16 %v5437
      %v5757 = vunpack.c.h.b16 %v5437
      %v5758 = vunpack.c.l.b16 %v5438
      %v5759 = vunpack.c.h.b16 %v5438
      %v5760 = vunpack.c.l.b16 %v5439
      %v5761 = vunpack.c.h.b16 %v5439
      %v5762 = vunpack.c.l.b16 %v5440
      %v5763 = vunpack.c.h.b16 %v5440
      %v5764 = vunpack.c.l.b16 %v5441
      %v5765 = vunpack.c.h.b16 %v5441
      %v5766 = vunpack.c.l.b16 %v5442
      %v5767 = vunpack.c.h.b16 %v5442
      %v5768 = vunpack.c.l.b16 %v5443
      %v5769 = vunpack.c.h.b16 %v5443
      %v5770 = vunpack.c.l.b16 %v5444
      %v5771 = vunpack.c.h.b16 %v5444
      %v5772 = vunpack.c.l.b16 %v5445
      %v5773 = vunpack.c.h.b16 %v5445
      %v5774 = vunpack.c.l.b16 %v5446
      %v5775 = vunpack.c.h.b16 %v5446
      %v5776 = vunpack.c.l.b16 %v5447
      %v5777 = vunpack.c.h.b16 %v5447
      %v5778 = vunpack.c.l.b16 %v5448
      %v5779 = vunpack.c.h.b16 %v5448
      %v5780 = vunpack.c.l.b16 %v5449
      %v5781 = vunpack.c.h.b16 %v5449
      %v5782 = vunpack.c.l.b16 %v5450
      %v5783 = vunpack.c.h.b16 %v5450
      %v5784 = vunpack.c.l.b16 %v5451
      %v5785 = vunpack.c.h.b16 %v5451
      %v5786 = vunpack.c.l.b16 %v5452
      %v5787 = vunpack.c.h.b16 %v5452
      %v5788 = vunpack.c.l.b16 %v5453
      %v5789 = vunpack.c.h.b16 %v5453
      %v5790 = vunpack.c.l.b16 %v5454
      %v5791 = vunpack.c.h.b16 %v5454
      %v5792 = vunpack.c.l.b16 %v5455
      %v5793 = vunpack.c.h.b16 %v5455
      %v5794 = vunpack.c.l.b16 %v5456
      %v5795 = vunpack.c.h.b16 %v5456
      %v5796 = vunpack.c.l.b16 %v5457
      %v5797 = vunpack.c.h.b16 %v5457
      %v5798 = vunpack.c.l.b16 %v5458
      %v5799 = vunpack.c.h.b16 %v5458
      %v5800 = vunpack.c.l.b16 %v5459
      %v5801 = vunpack.c.h.b16 %v5459
      %v5802 = vunpack.c.l.b16 %v5460
      %v5803 = vunpack.c.h.b16 %v5460
      %v5804 = vunpack.c.l.b16 %v5461
      %v5805 = vunpack.c.h.b16 %v5461
      %v5806 = vunpack.c.l.b16 %v5462
      %v5807 = vunpack.c.h.b16 %v5462
      %v5808 = vunpack.c.l.b16 %v5463
      %v5809 = vunpack.c.h.b16 %v5463
      %v5810 = vunpack.c.l.b16 %v5464
      %v5811 = vunpack.c.h.b16 %v5464
      %v5812 = vunpack.c.l.b16 %v5465
      %v5813 = vunpack.c.h.b16 %v5465
      %v5814 = vunpack.c.l.b16 %v5466
      %v5815 = vunpack.c.h.b16 %v5466
      %v5816 = vunpack.c.l.b16 %v5467
      %v5817 = vunpack.c.h.b16 %v5467
      %v5818 = vunpack.c.l.b16 %v5468
      %v5819 = vunpack.c.h.b16 %v5468
      %v5820 = vunpack.c.l.b16 %v5469
      %v5821 = vunpack.c.h.b16 %v5469
      %v5822 = vunpack.c.l.b16 %v5470
      %v5823 = vunpack.c.h.b16 %v5470
      %v5824 = vunpack.c.l.b16 %v5471
      %v5825 = vunpack.c.h.b16 %v5471
      %v5826 = vunpack.c.l.b16 %v5472
      %v5827 = vunpack.c.h.b16 %v5472
      %v5828 = vunpack.c.l.b16 %v5473
      %v5829 = vunpack.c.h.b16 %v5473
      %v5830 = vunpack.c.l.b16 %v5474
      %v5831 = vunpack.c.h.b16 %v5474
      %v5832 = vunpack.c.l.b16 %v5475
      %v5833 = vunpack.c.h.b16 %v5475
      %v5834 = vunpack.c.l.b16 %v5476
      %v5835 = vunpack.c.h.b16 %v5476
      %v5836 = vunpack.c.l.b16 %v5477
      %v5837 = vunpack.c.h.b16 %v5477
      %v5838 = vunpack.c.l.b16 %v5478
      %v5839 = vunpack.c.h.b16 %v5478
      %v5840 = vunpack.c.l.b16 %v5479
      %v5841 = vunpack.c.h.b16 %v5479
      %v5842 = vunpack.c.l.b16 %v5480
      %v5843 = vunpack.c.h.b16 %v5480
      %v5844 = vunpack.c.l.b16 %v5481
      %v5845 = vunpack.c.h.b16 %v5481
      %v5846 = vunpack.c.l.b16 %v5482
      %v5847 = vunpack.c.h.b16 %v5482
      %v5848 = vunpack.c.l.b16 %v5483
      %v5849 = vunpack.c.h.b16 %v5483
      %v5850 = vunpack.c.l.b16 %v5484
      %v5851 = vunpack.c.h.b16 %v5484
      %v5852 = vunpack.c.l.b16 %v5485
      %v5853 = vunpack.c.h.b16 %v5485
      %v5854 = vunpack.c.l.b16 %v5486
      %v5855 = vunpack.c.h.b16 %v5486
      %v5856 = vunpack.c.l.b16 %v5487
      %v5857 = vunpack.c.h.b16 %v5487
      %v5858 = vunpack.c.l.b16 %v5488
      %v5859 = vunpack.c.h.b16 %v5488
      %v5860 = vunpack.c.l.b16 %v5489
      %v5861 = vunpack.c.h.b16 %v5489
      %v5862 = vunpack.c.l.b16 %v5490
      %v5863 = vunpack.c.h.b16 %v5490
      %v5864 = vunpack.c.l.b16 %v5491
      %v5865 = vunpack.c.h.b16 %v5491
      %v5866 = vunpack.c.l.b16 %v5492
      %v5867 = vunpack.c.h.b16 %v5492
      %v5868 = vunpack.c.l.b16 %v5493
      %v5869 = vunpack.c.h.b16 %v5493
      %v5870 = vunpack.c.l.b16 %v5494
      %v5871 = vunpack.c.h.b16 %v5494
      %v5872 = vunpack.c.l.b16 %v5495
      %v5873 = vunpack.c.h.b16 %v5495
      %v5874 = vunpack.c.l.b16 %v5496
      %v5875 = vunpack.c.h.b16 %v5496
      %v5876 = vunpack.c.l.b16 %v5497
      %v5877 = vunpack.c.h.b16 %v5497
      %v5878 = vunpack.c.l.b16 %v5498
      %v5879 = vunpack.c.h.b16 %v5498
      %v5880 = vunpack.c.l.b16 %v5499
      %v5881 = vunpack.c.h.b16 %v5499
      %v5882 = vunpack.c.l.b16 %v5500
      %v5883 = vunpack.c.h.b16 %v5500
      %v5884 = vunpack.c.l.b16 %v5501
      %v5885 = vunpack.c.h.b16 %v5501
      %v5886 = vunpack.c.l.b16 %v5502
      %v5887 = vunpack.c.h.b16 %v5502
      %v5888 = vunpack.c.l.b16 %v5503
      %v5889 = vunpack.c.h.b16 %v5503
      %v5890 = vunpack.c.l.b16 %v5504
      %v5891 = vunpack.c.h.b16 %v5504
      %v5892 = vunpack.c.l.b16 %v5505
      %v5893 = vunpack.c.h.b16 %v5505
      %v5894 = vunpack.c.l.b16 %v5506
      %v5895 = vunpack.c.h.b16 %v5506
      %v5896 = vunpack.c.l.b16 %v5507
      %v5897 = vunpack.c.h.b16 %v5507
      %v5898 = vunpack.c.l.b16 %v5508
      %v5899 = vunpack.c.h.b16 %v5508
      %v5900 = vunpack.c.l.b16 %v5509
      %v5901 = vunpack.c.h.b16 %v5509
      %v5902 = vunpack.c.l.b16 %v5510
      %v5903 = vunpack.c.h.b16 %v5510
      %v5904 = vunpack.c.l.b16 %v5511
      %v5905 = vunpack.c.h.b16 %v5511
      %v5906 = vunpack.c.l.b16 %v5512
      %v5907 = vunpack.c.h.b16 %v5512
      %v5908 = vunpack.c.l.b16 %v5513
      %v5909 = vunpack.c.h.b16 %v5513
      %v5910 = vunpack.c.l.b16 %v5514
      %v5911 = vunpack.c.h.b16 %v5514
      %v5912 = vunpack.c.l.b16 %v5515
      %v5913 = vunpack.c.h.b16 %v5515
      %v5914 = vunpack.c.l.b16 %v5516
      %v5915 = vunpack.c.h.b16 %v5516
      %v5916 = vunpack.c.l.b16 %v5517
      %v5917 = vunpack.c.h.b16 %v5517
      %v5918 = vunpack.c.l.b16 %v5518
      %v5919 = vunpack.c.h.b16 %v5518
      %v5920 = vunpack.c.l.b16 %v5519
      %v5921 = vunpack.c.h.b16 %v5519
      %v5922 = vunpack.c.l.b16 %v5520
      %v5923 = vunpack.c.h.b16 %v5520
      %v5924 = vunpack.c.l.b16 %v5521
      %v5925 = vunpack.c.h.b16 %v5521
      %v5926 = vunpack.c.l.b16 %v5522
      %v5927 = vunpack.c.h.b16 %v5522
      %v5928 = vunpack.c.l.b16 %v5523
      %v5929 = vunpack.c.h.b16 %v5523
      %v5930 = vunpack.c.l.b16 %v5524
      %v5931 = vunpack.c.h.b16 %v5524
      %v5932 = vunpack.c.l.b16 %v5525
      %v5933 = vunpack.c.h.b16 %v5525
      %v5934 = vpack.c.b16 %v5682, %v5678
      %v5935 = vpack.c.b16 %v5683, %v5679
      %v5936 = vpack.c.b16 %v5684, %v5680
      %v5937 = vpack.c.b16 %v5685, %v5681
      %v5938 = vpack.c.b16 %v5690, %v5686
      %v5939 = vpack.c.b16 %v5691, %v5687
      %v5940 = vpack.c.b16 %v5692, %v5688
      %v5941 = vpack.c.b16 %v5693, %v5689
      %v5942 = vpack.c.b16 %v5698, %v5694
      %v5943 = vpack.c.b16 %v5699, %v5695
      %v5944 = vpack.c.b16 %v5700, %v5696
      %v5945 = vpack.c.b16 %v5701, %v5697
      %v5946 = vpack.c.b16 %v5706, %v5702
      %v5947 = vpack.c.b16 %v5707, %v5703
      %v5948 = vpack.c.b16 %v5708, %v5704
      %v5949 = vpack.c.b16 %v5709, %v5705
      %v5950 = vpack.c.b16 %v5714, %v5710
      %v5951 = vpack.c.b16 %v5715, %v5711
      %v5952 = vpack.c.b16 %v5716, %v5712
      %v5953 = vpack.c.b16 %v5717, %v5713
      %v5954 = vpack.c.b16 %v5722, %v5718
      %v5955 = vpack.c.b16 %v5723, %v5719
      %v5956 = vpack.c.b16 %v5724, %v5720
      %v5957 = vpack.c.b16 %v5725, %v5721
      %v5958 = vpack.c.b16 %v5730, %v5726
      %v5959 = vpack.c.b16 %v5731, %v5727
      %v5960 = vpack.c.b16 %v5732, %v5728
      %v5961 = vpack.c.b16 %v5733, %v5729
      %v5962 = vpack.c.b16 %v5738, %v5734
      %v5963 = vpack.c.b16 %v5739, %v5735
      %v5964 = vpack.c.b16 %v5740, %v5736
      %v5965 = vpack.c.b16 %v5741, %v5737
      %v5966 = vpack.c.b16 %v5746, %v5742
      %v5967 = vpack.c.b16 %v5747, %v5743
      %v5968 = vpack.c.b16 %v5748, %v5744
      %v5969 = vpack.c.b16 %v5749, %v5745
      %v5970 = vpack.c.b16 %v5754, %v5750
      %v5971 = vpack.c.b16 %v5755, %v5751
      %v5972 = vpack.c.b16 %v5756, %v5752
      %v5973 = vpack.c.b16 %v5757, %v5753
      %v5974 = vpack.c.b16 %v5762, %v5758
      %v5975 = vpack.c.b16 %v5763, %v5759
      %v5976 = vpack.c.b16 %v5764, %v5760
      %v5977 = vpack.c.b16 %v5765, %v5761
      %v5978 = vpack.c.b16 %v5770, %v5766
      %v5979 = vpack.c.b16 %v5771, %v5767
      %v5980 = vpack.c.b16 %v5772, %v5768
      %v5981 = vpack.c.b16 %v5773, %v5769
      %v5982 = vpack.c.b16 %v5778, %v5774
      %v5983 = vpack.c.b16 %v5779, %v5775
      %v5984 = vpack.c.b16 %v5780, %v5776
      %v5985 = vpack.c.b16 %v5781, %v5777
      %v5986 = vpack.c.b16 %v5786, %v5782
      %v5987 = vpack.c.b16 %v5787, %v5783
      %v5988 = vpack.c.b16 %v5788, %v5784
      %v5989 = vpack.c.b16 %v5789, %v5785
      %v5990 = vpack.c.b16 %v5794, %v5790
      %v5991 = vpack.c.b16 %v5795, %v5791
      %v5992 = vpack.c.b16 %v5796, %v5792
      %v5993 = vpack.c.b16 %v5797, %v5793
      %v5994 = vpack.c.b16 %v5802, %v5798
      %v5995 = vpack.c.b16 %v5803, %v5799
      %v5996 = vpack.c.b16 %v5804, %v5800
      %v5997 = vpack.c.b16 %v5805, %v5801
      %v5998 = vpack.c.b16 %v5810, %v5806
      %v5999 = vpack.c.b16 %v5811, %v5807
      %v6000 = vpack.c.b16 %v5812, %v5808
      %v6001 = vpack.c.b16 %v5813, %v5809
      %v6002 = vpack.c.b16 %v5818, %v5814
      %v6003 = vpack.c.b16 %v5819, %v5815
      %v6004 = vpack.c.b16 %v5820, %v5816
      %v6005 = vpack.c.b16 %v5821, %v5817
      %v6006 = vpack.c.b16 %v5826, %v5822
      %v6007 = vpack.c.b16 %v5827, %v5823
      %v6008 = vpack.c.b16 %v5828, %v5824
      %v6009 = vpack.c.b16 %v5829, %v5825
      %v6010 = vpack.c.b16 %v5834, %v5830
      %v6011 = vpack.c.b16 %v5835, %v5831
      %v6012 = vpack.c.b16 %v5836, %v5832
      %v6013 = vpack.c.b16 %v5837, %v5833
      %v6014 = vpack.c.b16 %v5842, %v5838
      %v6015 = vpack.c.b16 %v5843, %v5839
      %v6016 = vpack.c.b16 %v5844, %v5840
      %v6017 = vpack.c.b16 %v5845, %v5841
      %v6018 = vpack.c.b16 %v5850, %v5846
      %v6019 = vpack.c.b16 %v5851, %v5847
      %v6020 = vpack.c.b16 %v5852, %v5848
      %v6021 = vpack.c.b16 %v5853, %v5849
      %v6022 = vpack.c.b16 %v5858, %v5854
      %v6023 = vpack.c.b16 %v5859, %v5855
      %v6024 = vpack.c.b16 %v5860, %v5856
      %v6025 = vpack.c.b16 %v5861, %v5857
      %v6026 = vpack.c.b16 %v5866, %v5862
      %v6027 = vpack.c.b16 %v5867, %v5863
      %v6028 = vpack.c.b16 %v5868, %v5864
      %v6029 = vpack.c.b16 %v5869, %v5865
      %v6030 = vpack.c.b16 %v5874, %v5870
      %v6031 = vpack.c.b16 %v5875, %v5871
      %v6032 = vpack.c.b16 %v5876, %v5872
      %v6033 = vpack.c.b16 %v5877, %v5873
      %v6034 = vpack.c.b16 %v5882, %v5878
      %v6035 = vpack.c.b16 %v5883, %v5879
      %v6036 = vpack.c.b16 %v5884, %v5880
      %v6037 = vpack.c.b16 %v5885, %v5881
      %v6038 = vpack.c.b16 %v5890, %v5886
      %v6039 = vpack.c.b16 %v5891, %v5887
      %v6040 = vpack.c.b16 %v5892, %v5888
      %v6041 = vpack.c.b16 %v5893, %v5889
      %v6042 = vpack.c.b16 %v5898, %v5894
      %v6043 = vpack.c.b16 %v5899, %v5895
      %v6044 = vpack.c.b16 %v5900, %v5896
      %v6045 = vpack.c.b16 %v5901, %v5897
      %v6046 = vpack.c.b16 %v5906, %v5902
      %v6047 = vpack.c.b16 %v5907, %v5903
      %v6048 = vpack.c.b16 %v5908, %v5904
      %v6049 = vpack.c.b16 %v5909, %v5905
      %v6050 = vpack.c.b16 %v5914, %v5910
      %v6051 = vpack.c.b16 %v5915, %v5911
      %v6052 = vpack.c.b16 %v5916, %v5912
      %v6053 = vpack.c.b16 %v5917, %v5913
      %v6054 = vpack.c.b16 %v5922, %v5918
      %v6055 = vpack.c.b16 %v5923, %v5919
      %v6056 = vpack.c.b16 %v5924, %v5920
      %v6057 = vpack.c.b16 %v5925, %v5921
      %v6058 = vpack.c.b16 %v5930, %v5926
      %v6059 = vpack.c.b16 %v5931, %v5927
      %v6060 = vpack.c.b16 %v5932, %v5928
      %v6061 = vpack.c.b16 %v5933, %v5929
      %6190 = vmatprep.subr.bf16.mxu0 %v5963
      %6191 = vmatpush1.bf16.msra.mxu0 %v5962
      %6192 = vmatprep.subr.bf16.mxu0 %v5959
      %6193 = vmatpush1.bf16.msra.mxu0 %v5958
      %6194 = vmatprep.subr.bf16.mxu0 %v5955
      %6195 = vmatpush1.bf16.msra.mxu0 %v5954
      %6196 = vmatprep.subr.bf16.mxu0 %v5951
      %6197 = vmatpush1.bf16.msra.mxu0 %v5950
      %6198 = vmatprep.subr.bf16.mxu0 %v5947
      %6199 = vmatpush1.bf16.msra.mxu0 %v5946
      %6200 = vmatprep.subr.bf16.mxu0 %v5943
      %6201 = vmatpush1.bf16.msra.mxu0 %v5942
      %6202 = vmatprep.subr.bf16.mxu0 %v5939
      %6203 = vmatpush1.bf16.msra.mxu0 %v5938
      %6204 = vmatprep.subr.bf16.mxu0 %v5935
      %6205 = vmatpush1.bf16.msra.mxu0 %v5934
      %6206 = vmatprep.subr.bf16.mxu0 %v5995
      %6207 = vmatpush2.bf16.msra.mxu0 %v5994
      %6208 = vmatprep.subr.bf16.mxu0 %v5991
      %6209 = vmatpush2.bf16.msra.mxu0 %v5990
      %6210 = vmatprep.subr.bf16.mxu0 %v5987
      %6211 = vmatpush2.bf16.msra.mxu0 %v5986
      %6212 = vmatprep.subr.bf16.mxu0 %v5983
      %6213 = vmatpush2.bf16.msra.mxu0 %v5982
      %6214 = vmatprep.subr.bf16.mxu0 %v5979
      %6215 = vmatpush2.bf16.msra.mxu0 %v5978
      %6216 = vmatprep.subr.bf16.mxu0 %v5975
      %6217 = vmatpush2.bf16.msra.mxu0 %v5974
      %6218 = vmatprep.subr.bf16.mxu0 %v5971
      %6219 = vmatpush2.bf16.msra.mxu0 %v5970
      %6220 = vmatprep.subr.bf16.mxu0 %v5967
      %6221 = vmatpush2.bf16.msra.mxu0 %v5966
      %6222 = vmatprep.mubr.bf16.mxu0 %v5539
      %6223 = vmatmul.mubr.bf16.gmra.mxu0 %v5536
      %v6224 = vpop.f32.mrf.mxu0
      %v6225 = vadd.f32 0.0, %v6224
      %v6226 = vpop.f32.mrf.mxu0
      %v6227 = vadd.f32 0.0, %v6226
      %v6228 = vpop.f32.mrf.mxu0
      %v6229 = vadd.f32 0.0, %v6228
      %v6230 = vpop.f32.mrf.mxu0
      %v6231 = vadd.f32 0.0, %v6230
      %6232 = vdwg.mxu0
      %6233 = vmatprep.subr.bf16.mxu0 %v6027
      %6234 = vmatpush1.bf16.msra.mxu0 %v6026
      %6235 = vmatprep.subr.bf16.mxu0 %v6023
      %6236 = vmatpush1.bf16.msra.mxu0 %v6022
      %6237 = vmatprep.subr.bf16.mxu0 %v6019
      %6238 = vmatpush1.bf16.msra.mxu0 %v6018
      %6239 = vmatprep.subr.bf16.mxu0 %v6015
      %6240 = vmatpush1.bf16.msra.mxu0 %v6014
      %6241 = vmatprep.subr.bf16.mxu0 %v6011
      %6242 = vmatpush1.bf16.msra.mxu0 %v6010
      %6243 = vmatprep.subr.bf16.mxu0 %v6007
      %6244 = vmatpush1.bf16.msra.mxu0 %v6006
      %6245 = vmatprep.subr.bf16.mxu0 %v6003
      %6246 = vmatpush1.bf16.msra.mxu0 %v6002
      %6247 = vmatprep.subr.bf16.mxu0 %v5999
      %6248 = vmatpush1.bf16.msra.mxu0 %v5998
      %6249 = vmatprep.subr.bf16.mxu0 %v6059
      %6250 = vmatpush2.bf16.msra.mxu0 %v6058
      %6251 = vmatprep.subr.bf16.mxu0 %v6055
      %6252 = vmatpush2.bf16.msra.mxu0 %v6054
      %6253 = vmatprep.subr.bf16.mxu0 %v6051
      %6254 = vmatpush2.bf16.msra.mxu0 %v6050
      %6255 = vmatprep.subr.bf16.mxu0 %v6047
      %6256 = vmatpush2.bf16.msra.mxu0 %v6046
      %6257 = vmatprep.subr.bf16.mxu0 %v6043
      %6258 = vmatpush2.bf16.msra.mxu0 %v6042
      %6259 = vmatprep.subr.bf16.mxu0 %v6039
      %6260 = vmatpush2.bf16.msra.mxu0 %v6038
      %6261 = vmatprep.subr.bf16.mxu0 %v6035
      %6262 = vmatpush2.bf16.msra.mxu0 %v6034
      %6263 = vmatprep.subr.bf16.mxu0 %v6031
      %6264 = vmatpush2.bf16.msra.mxu0 %v6030
      %6265 = vmatprep.mubr.bf16.mxu0 %v5545
      %6266 = vmatmul.mubr.bf16.gmra.mxu0 %v5542
      %v6267 = vpop.f32.mrf.mxu0
      %v6268 = vadd.f32 %v6225, %v6267
      %v6269 = vpop.f32.mrf.mxu0
      %v6270 = vadd.f32 %v6227, %v6269
      %v6271 = vpop.f32.mrf.mxu0
      %v6272 = vadd.f32 %v6229, %v6271
      %v6273 = vpop.f32.mrf.mxu0
      %v6274 = vadd.f32 %v6231, %v6273
      %6275 = vdwg.mxu0
      %6276 = vmatprep.subr.bf16.mxu0 %v5965
      %6277 = vmatpush1.bf16.msra.mxu0 %v5964
      %6278 = vmatprep.subr.bf16.mxu0 %v5961
      %6279 = vmatpush1.bf16.msra.mxu0 %v5960
      %6280 = vmatprep.subr.bf16.mxu0 %v5957
      %6281 = vmatpush1.bf16.msra.mxu0 %v5956
      %6282 = vmatprep.subr.bf16.mxu0 %v5953
      %6283 = vmatpush1.bf16.msra.mxu0 %v5952
      %6284 = vmatprep.subr.bf16.mxu0 %v5949
      %6285 = vmatpush1.bf16.msra.mxu0 %v5948
      %6286 = vmatprep.subr.bf16.mxu0 %v5945
      %6287 = vmatpush1.bf16.msra.mxu0 %v5944
      %6288 = vmatprep.subr.bf16.mxu0 %v5941
      %6289 = vmatpush1.bf16.msra.mxu0 %v5940
      %6290 = vmatprep.subr.bf16.mxu0 %v5937
      %6291 = vmatpush1.bf16.msra.mxu0 %v5936
      %6292 = vmatprep.subr.bf16.mxu0 %v5997
      %6293 = vmatpush2.bf16.msra.mxu0 %v5996
      %6294 = vmatprep.subr.bf16.mxu0 %v5993
      %6295 = vmatpush2.bf16.msra.mxu0 %v5992
      %6296 = vmatprep.subr.bf16.mxu0 %v5989
      %6297 = vmatpush2.bf16.msra.mxu0 %v5988
      %6298 = vmatprep.subr.bf16.mxu0 %v5985
      %6299 = vmatpush2.bf16.msra.mxu0 %v5984
      %6300 = vmatprep.subr.bf16.mxu0 %v5981
      %6301 = vmatpush2.bf16.msra.mxu0 %v5980
      %6302 = vmatprep.subr.bf16.mxu0 %v5977
      %6303 = vmatpush2.bf16.msra.mxu0 %v5976
      %6304 = vmatprep.subr.bf16.mxu0 %v5973
      %6305 = vmatpush2.bf16.msra.mxu0 %v5972
      %6306 = vmatprep.subr.bf16.mxu0 %v5969
      %6307 = vmatpush2.bf16.msra.mxu0 %v5968
      %6308 = vmatprep.mubr.bf16.mxu0 %v5539
      %6309 = vmatmul.mubr.bf16.gmra.mxu0 %v5536
      %v6310 = vpop.f32.mrf.mxu0
      %v6311 = vadd.f32 0.0, %v6310
      %v6312 = vpop.f32.mrf.mxu0
      %v6313 = vadd.f32 0.0, %v6312
      %v6314 = vpop.f32.mrf.mxu0
      %v6315 = vadd.f32 0.0, %v6314
      %v6316 = vpop.f32.mrf.mxu0
      %v6317 = vadd.f32 0.0, %v6316
      %6318 = vdwg.mxu0
      %6319 = vmatprep.subr.bf16.mxu0 %v6029
      %6320 = vmatpush1.bf16.msra.mxu0 %v6028
      %6321 = vmatprep.subr.bf16.mxu0 %v6025
      %6322 = vmatpush1.bf16.msra.mxu0 %v6024
      %6323 = vmatprep.subr.bf16.mxu0 %v6021
      %6324 = vmatpush1.bf16.msra.mxu0 %v6020
      %6325 = vmatprep.subr.bf16.mxu0 %v6017
      %6326 = vmatpush1.bf16.msra.mxu0 %v6016
      %6327 = vmatprep.subr.bf16.mxu0 %v6013
      %6328 = vmatpush1.bf16.msra.mxu0 %v6012
      %6329 = vmatprep.subr.bf16.mxu0 %v6009
      %6330 = vmatpush1.bf16.msra.mxu0 %v6008
      %6331 = vmatprep.subr.bf16.mxu0 %v6005
      %6332 = vmatpush1.bf16.msra.mxu0 %v6004
      %6333 = vmatprep.subr.bf16.mxu0 %v6001
      %6334 = vmatpush1.bf16.msra.mxu0 %v6000
      %6335 = vmatprep.subr.bf16.mxu0 %v6061
      %6336 = vmatpush2.bf16.msra.mxu0 %v6060
      %6337 = vmatprep.subr.bf16.mxu0 %v6057
      %6338 = vmatpush2.bf16.msra.mxu0 %v6056
      %6339 = vmatprep.subr.bf16.mxu0 %v6053
      %6340 = vmatpush2.bf16.msra.mxu0 %v6052
      %6341 = vmatprep.subr.bf16.mxu0 %v6049
      %6342 = vmatpush2.bf16.msra.mxu0 %v6048
      %6343 = vmatprep.subr.bf16.mxu0 %v6045
      %6344 = vmatpush2.bf16.msra.mxu0 %v6044
      %6345 = vmatprep.subr.bf16.mxu0 %v6041
      %6346 = vmatpush2.bf16.msra.mxu0 %v6040
      %6347 = vmatprep.subr.bf16.mxu0 %v6037
      %6348 = vmatpush2.bf16.msra.mxu0 %v6036
      %6349 = vmatprep.subr.bf16.mxu0 %v6033
      %6350 = vmatpush2.bf16.msra.mxu0 %v6032
      %6351 = vmatprep.mubr.bf16.mxu0 %v5545
      %6352 = vmatmul.mubr.bf16.gmra.mxu0 %v5542
      %v6353 = vpop.f32.mrf.mxu0
      %v6354 = vadd.f32 %v6311, %v6353
      %v6355 = vpop.f32.mrf.mxu0
      %v6356 = vadd.f32 %v6313, %v6355
      %v6357 = vpop.f32.mrf.mxu0
      %v6358 = vadd.f32 %v6315, %v6357
      %v6359 = vpop.f32.mrf.mxu0
      %v6360 = vadd.f32 %v6317, %v6359
      %6361 = vdwg.mxu0
      %v6362 = vadd.f32 %v5303, %v6268
      %v6363 = vadd.f32 %v5305, %v6270
      %v6364 = vadd.f32 %v5389, %v6354
      %v6365 = vadd.f32 %v5391, %v6356
      %v6366 = vadd.f32 %v5307, %v6272
      %v6367 = vadd.f32 %v5309, %v6274
      %v6368 = vadd.f32 %v5393, %v6358
      %v6369 = vadd.f32 %v5395, %v6360
      %v6370 = vld [vmem:[%s4] sm:$0xf]
      %v6372 = vlaneseq
      %v6373 = vshrl.u32 %v6372, 7
      %v6374 = vsub.s32 0, %v6373
      %v6375 = vrot.slane %v6370, %v6374
      %v6376 = vlaneseq
      %v6377 = vshrl.u32 %v6376, 7
      %v6378 = vsub.s32 1, %v6377
      %v6379 = vrot.slane %v6370, %v6378
      %v6380 = vlaneseq
      %v6381 = vshrl.u32 %v6380, 7
      %v6382 = vsub.s32 2, %v6381
      %v6383 = vrot.slane %v6370, %v6382
      %v6384 = vlaneseq
      %v6385 = vshrl.u32 %v6384, 7
      %v6386 = vsub.s32 3, %v6385
      %v6387 = vrot.slane %v6370, %v6386
      %v6392 = vadd.f32 %v6362, %v6375
      %v6393 = vadd.f32 %v6363, %v6379
      %v6394 = vadd.f32 %v6364, %v6383
      %v6395 = vadd.f32 %v6365, %v6387
      %v6396 = vadd.f32 %v6366, %v6375
      %v6397 = vadd.f32 %v6367, %v6379
      %v6398 = vadd.f32 %v6368, %v6383
      %v6399 = vadd.f32 %v6369, %v6387
      %v6400 = vunpack.c.l.bf16 %v302
      %v6401 = vunpack.c.h.bf16 %v302
      %v6402 = vunpack.c.l.bf16 %v303
      %v6403 = vunpack.c.h.bf16 %v303
      %v6404 = vunpack.c.l.bf16 %v304
      %v6405 = vunpack.c.h.bf16 %v304
      %v6406 = vunpack.c.l.bf16 %v305
      %v6407 = vunpack.c.h.bf16 %v305
      %v6408 = vunpack.c.l.bf16 %v306
      %v6409 = vunpack.c.h.bf16 %v306
      %v6410 = vunpack.c.l.bf16 %v307
      %v6411 = vunpack.c.h.bf16 %v307
      %vm6424 = vcmask 1045504
      %v6425 = vrot.slane %v6400, 2
      %v6426 = vrot.slane %v6404, 2
      %v6427 = vsel %vm6424, %v6425, %v6426
      %v6428 = vrot.slane %v6401, 2
      %v6429 = vrot.slane %v6405, 2
      %v6430 = vsel %vm6424, %v6428, %v6429
      %v6431 = vrot.slane %v6402, 2
      %v6432 = vrot.slane %v6406, 2
      %v6433 = vsel %vm6424, %v6431, %v6432
      %v6434 = vrot.slane %v6403, 2
      %v6435 = vrot.slane %v6407, 2
      %v6436 = vsel %vm6424, %v6434, %v6435
      %v6437 = vrot.slane %v6408, 2
      %v6438 = vsel %vm6424, %v6426, %v6437
      %v6439 = vrot.slane %v6409, 2
      %v6440 = vsel %vm6424, %v6429, %v6439
      %v6441 = vrot.slane %v6410, 2
      %v6442 = vsel %vm6424, %v6432, %v6441
      %v6443 = vrot.slane %v6411, 2
      %v6444 = vsel %vm6424, %v6435, %v6443
      %v6453 = vadd.f32 %v6392, %v6427
      %v6454 = vadd.f32 %v6393, %v6430
      %v6455 = vadd.f32 %v6394, %v6433
      %v6456 = vadd.f32 %v6395, %v6436
      %v6457 = vadd.f32 %v6396, %v6438
      %v6458 = vadd.f32 %v6397, %v6440
      %v6459 = vadd.f32 %v6398, %v6442
      %v6460 = vadd.f32 %v6399, %v6444
      %6461 = vst [vmem:[%s248] sm:$0xff] %v6453
      %6462 = vst [vmem:[%s248 + $0x8] sm:$0xff] %v6454
      %6463 = vst [vmem:[%s248 + $0x10] sm:$0xff] %v6455
      %6464 = vst [vmem:[%s248 + $0x18] sm:$0xff] %v6456
      %6465 = vst [vmem:[%s248 + $0x20] sm:$0xff] %v6457
      %6466 = vst [vmem:[%s248 + $0x28] sm:$0xff] %v6458
      %6467 = vst [vmem:[%s248 + $0x30] sm:$0xff] %v6459
      %6468 = vst [vmem:[%s248 + $0x38] sm:$0xff] %v6460
      %s6469 = smul.u32 2, %s21
      %p6470 = scmp.lt.s32.totalorder %s20, 1
      %s6471 = scalar_select %p6470, %s20, 1
      %p6472 = scmp.lt.s32.totalorder %s6469, 1
      %s6473 = scalar_select %p6472, %s6469, 1
      %s6474 = smul.addr %s6473, 4
      %s6475 = smul.addr %s6471, 8
      %s6476 = sadd.s32 %s6474, %s6475
      %s6477 = smul.addr %s6476, 8
      %s6478 = scalar_lea.vmem %s5, %s6477
      // Predicated region
      $region45: #{resblock_forward.1} parent=39 // pred_check
        %p6479 = pneg %p158
      $region46: #{resblock_forward.1} parent=39 // pred_check_branch
        %6481 = sbr.rel (%p6479) target = $region48
      $region47: #{resblock_forward.1} parent=39 // pred_region
        %s6482 = smul.u32 2, %s21
      $region48: #{resblock_forward.1} parent=39 // pred_fallthru
        _
    $region40: #{resblock_forward.1} parent=5 // pred_fallthru
      _
    %p6483 = scmp.le.s32.totalorder 2, %s11
    // Predicated region
    $region49: #{resblock_forward.1} parent=5 // pred_check
      %p6484 = pneg %p6483
    $region50: #{resblock_forward.1} parent=5 // pred_check_branch
      %6486 = sbr.rel (%p6484) target = $region52
    $region51: #{resblock_forward.1} parent=5 // pred_region
      %s6487 = ssub.s32 %s11, 2
      // Predicated region
      $region53: #{resblock_forward.1} parent=51 // pred_check
        %p6488 = pneg %p164
      $region54: #{resblock_forward.1} parent=51 // pred_check_branch
        %6490 = sbr.rel (%p6488) target = $region56
      $region55: #{resblock_forward.1} parent=51 // pred_region
        %s6491 = smul.u32 2, %s23
        %p6492 = scmp.lt.s32.totalorder %s22, 1
        %s6493 = scalar_select %p6492, %s22, 1
        %p6494 = scmp.lt.s32.totalorder %s6491, 1
        %s6495 = scalar_select %p6494, %s6491, 1
        %s6496 = smul.addr %s6495, 4
        %s6497 = smul.addr %s6493, 8
        %s6498 = sadd.s32 %s6496, %s6497
        %s6499 = smul.addr %s6498, 8
        %s6500 = scalar_lea.vmem %s5, %s6499
      $region56: #{resblock_forward.1} parent=51 // pred_fallthru
        _
    $region52: #{resblock_forward.1} parent=5 // pred_fallthru
      _
  $region6: #{resblock_forward.1} parent=0 // loop_footer
    %s15 = sadd.s32 1, %s11
  $region7: #{resblock_forward.1} parent=0 // loop_footer_branch
    %10 = sbr.rel target = $region3
  $region8: #{resblock_forward.1} parent=0 // loop_exit
    _

</llo_original>
